<compile_context>
chip_gen: v7x
topology: tpu7x:2x2x1
jax: 0.10.0
libtpu: 0.0.40
codegen_flags: <defaults>
</compile_context>

<pallas_src>
import jax
import jax.numpy as jnp
from jax.experimental import pallas as pl
from jax.experimental.pallas import tpu as pltpu


# ----------------------------------------------------------------------------
# Fused kernel: [linear -> median -> bias -> ReLU] -> [linear -> median -> bias]
# ----------------------------------------------------------------------------
def _fused_median_gcn_kernel(niter_ref,                       # scalar prefetch (SMEM)
                             x_ref, adjt_ref, k_ref,
                             w1_ref, b1_ref, w2_ref, b2_ref,
                             o_ref,
                             vals1_ref, vals2_ref,
                             cnt1_ref, med1_ref, cnt2_ref, med2_ref):
    niter = niter_ref[0]                           # max lower-median rank + 1 (dynamic)
    inf = jnp.float32(jnp.inf)

    adj_t = adjt_ref[...]                          # (N_nbr, N_tgt): adj_t[j,i]=1 iff i aggregates j
    nmask = (adj_t > 0.0)[None, :, :]              # (1, N_nbr, N_tgt), shared by both layers
    k_row = k_ref[...]                             # (1, N_tgt) lower-median rank per target node

    def median_aggregate(h_t, vals_ref, cnt_ref, med_ref):
        """Per-feature lower median over neighbours.  h_t: (D, N) -> (D, N)."""
        vals_ref[...] = jnp.where(nmask, h_t[:, :, None], inf)   # (D, N_nbr, N_tgt)
        cnt_ref[...] = jnp.zeros_like(cnt_ref)
        med_ref[...] = jnp.zeros_like(med_ref)

        @pl.loop(0, niter)
        def _(_):
            vals = vals_ref[...]
            cur = jnp.min(vals, axis=1)                            # (D, N) current column min
            is_cur = vals == cur[:, None, :]
            ties = jnp.sum(is_cur.astype(jnp.float32), axis=1)     # (D, N) multiplicity of cur
            cnt = cnt_ref[...]
            take = jnp.logical_and(cnt <= k_row, k_row < cnt + ties)  # rank k in [cnt, cnt+ties)
            med_ref[...] = jnp.where(take, cur, med_ref[...])
            cnt_ref[...] = cnt + ties
            vals_ref[...] = jnp.where(is_cur, inf, vals)            # blank all copies of cur

        return med_ref[...]                                         # (D, N)

    # ---- Layer 1: linear -> median -> +bias -> ReLU (Dropout = identity in eval)
    h1_t = jnp.dot(x_ref[...], w1_ref[...],
                   preferred_element_type=jnp.float32).T            # (HID, N)
    z1_t = jnp.maximum(
        median_aggregate(h1_t, vals1_ref, cnt1_ref, med1_ref) + b1_ref[...], 0.0)

    # ---- Layer 2: linear -> median -> +bias
    h2_t = jnp.dot(w2_ref[...].T, z1_t,
                   preferred_element_type=jnp.float32)               # (OUT, N)
    out_t = median_aggregate(h2_t, vals2_ref, cnt2_ref, med2_ref) + b2_ref[...]
    o_ref[...] = out_t.T.astype(o_ref.dtype)                         # (N, OUT)


@jax.jit
def median_gcn_forward(x, adj, params):
    """MedianGCN forward (eval mode: Dropout is identity). adj includes self loops."""
    (w1, b1), (w2, b2) = params
    n, in_dim = x.shape
    hid = w1.shape[1]
    out_dim = w2.shape[1]

    # Per-node lower-median rank and the dynamic loop bound (tiny jnp ops on adj).
    deg = jnp.sum(adj, axis=1)                                   # (N,), >= 1 (self loops)
    k = jnp.floor((deg - 1.0) * 0.5)                             # lower-median rank
    niter = jnp.reshape(jnp.max(k).astype(jnp.int32) + 1, (1,))  # global max rank + 1
    k_row = k.reshape(1, n).astype(jnp.float32)
    adj_t = adj.T                                                # (N_nbr, N_tgt)

    return pl.pallas_call(
        _fused_median_gcn_kernel,
        out_shape=jax.ShapeDtypeStruct((n, out_dim), jnp.float32),
        grid_spec=pltpu.PrefetchScalarGridSpec(
            num_scalar_prefetch=1,
            grid=(1,),
            in_specs=[
                pl.BlockSpec((n, in_dim), lambda i, nit: (0, 0)),     # x
                pl.BlockSpec((n, n), lambda i, nit: (0, 0)),          # adj^T
                pl.BlockSpec((1, n), lambda i, nit: (0, 0)),          # per-node rank k
                pl.BlockSpec((in_dim, hid), lambda i, nit: (0, 0)),   # w1
                pl.BlockSpec((hid, 1), lambda i, nit: (0, 0)),        # b1 (column)
                pl.BlockSpec((hid, out_dim), lambda i, nit: (0, 0)),  # w2
                pl.BlockSpec((out_dim, 1), lambda i, nit: (0, 0)),    # b2 (column)
            ],
            out_specs=pl.BlockSpec((n, out_dim), lambda i, nit: (0, 0)),
            scratch_shapes=[
                pltpu.VMEM((hid, n, n), jnp.float32),      # layer-1 candidate tensor
                pltpu.VMEM((out_dim, n, n), jnp.float32),  # layer-2 candidate tensor
                pltpu.VMEM((hid, n), jnp.float32),         # layer-1 rank counters
                pltpu.VMEM((hid, n), jnp.float32),         # layer-1 medians
                pltpu.VMEM((out_dim, n), jnp.float32),     # layer-2 rank counters
                pltpu.VMEM((out_dim, n), jnp.float32),     # layer-2 medians
            ],
        ),
        compiler_params=pltpu.CompilerParams(dimension_semantics=("arbitrary",)),
    )(niter, x, adj_t, k_row, w1, b1, w2, b2)


# ----------------------------------------------------------------------------
# Pure-JAX reference (for correctness check)
# ----------------------------------------------------------------------------
def ref_median_conv(x, adj, w, b, apply_relu):
    h = x @ w
    n, d = h.shape
    deg = adj.sum(axis=1).astype(jnp.int32)
    k = (deg - 1) // 2
    vals = jnp.where(adj[:, :, None] > 0, h[None, :, :], jnp.inf)
    s = jnp.sort(vals, axis=1)
    idx = jnp.broadcast_to(k[:, None, None], (n, 1, d))
    med = jnp.take_along_axis(s, idx, axis=1)[:, 0, :]
    out = med + b[:, 0][None, :]
    return jnp.maximum(out, 0.0) if apply_relu else out


def ref_forward(x, adj, params):
    (w1, b1), (w2, b2) = params
    h = ref_median_conv(x, adj, w1, b1, True)
    return ref_median_conv(h, adj, w2, b2, False)


# ----------------------------------------------------------------------------
def glorot(key, fan_in, fan_out):
    limit = (6.0 / (fan_in + fan_out)) ** 0.5
    return jax.random.uniform(key, (fan_in, fan_out), jnp.float32, -limit, limit)


if __name__ == "__main__":
    N, IN, HID, OUT = 64, 32, 16, 8

    key = jax.random.PRNGKey(0)
    kx, ksrc, kdst, kw1, kw2, kb1, kb2 = jax.random.split(key, 7)

    # node features
    x = jax.random.normal(kx, (N, IN), jnp.float32)

    # deterministic random graph, stored as dense adjacency A[dst, src]
    n_edges = 256
    src = jax.random.randint(ksrc, (n_edges,), 0, N)
    dst = jax.random.randint(kdst, (n_edges,), 0, N)
    adj = jnp.zeros((N, N), jnp.float32).at[dst, src].set(1.0)
    adj = jnp.maximum(adj, jnp.eye(N, dtype=jnp.float32))  # add self loops

    # parameters (glorot weights; per-layer bias stored as a column vector)
    w1 = glorot(kw1, IN, HID)
    b1 = jax.random.uniform(kb1, (HID, 1), jnp.float32, -0.1, 0.1)
    w2 = glorot(kw2, HID, OUT)
    b2 = jax.random.uniform(kb2, (OUT, 1), jnp.float32, -0.1, 0.1)
    params = ((w1, b1), (w2, b2))

    out = jax.block_until_ready(median_gcn_forward(x, adj, params))
    ref = jax.block_until_ready(ref_forward(x, adj, params))

    assert out.shape == (N, OUT) and out.dtype == jnp.float32
    assert jnp.allclose(out, ref, atol=1e-4, rtol=1e-4), "mismatch vs reference"
    print("KERNEL_OK")
</pallas_src>

<mosaic_0001>
module attributes {stable_mosaic.version = 11 : i64} {
  func.func @_fused_median_gcn_kernel(%arg0: i32, %arg1: memref<1xi32, #tpu.memory_space<smem>>, %arg2: memref<64x32xf32, #tpu.memory_space<vmem>>, %arg3: memref<64x64xf32, #tpu.memory_space<vmem>>, %arg4: memref<1x64xf32, #tpu.memory_space<vmem>>, %arg5: memref<32x16xf32, #tpu.memory_space<vmem>>, %arg6: memref<16x1xf32, #tpu.memory_space<vmem>>, %arg7: memref<16x8xf32, #tpu.memory_space<vmem>>, %arg8: memref<8x1xf32, #tpu.memory_space<vmem>>, %arg9: memref<64x8xf32, #tpu.memory_space<vmem>>, %arg10: memref<16x64x64xf32, #tpu.memory_space<vmem>>, %arg11: memref<8x64x64xf32, #tpu.memory_space<vmem>>, %arg12: memref<16x64xf32, #tpu.memory_space<vmem>>, %arg13: memref<16x64xf32, #tpu.memory_space<vmem>>, %arg14: memref<8x64xf32, #tpu.memory_space<vmem>>, %arg15: memref<8x64xf32, #tpu.memory_space<vmem>>) attributes {dimension_semantics = [#tpu.dimension_semantics<arbitrary>], iteration_bounds = array<i64: 1>, scalar_prefetch = 1 : i64, scratch_operands = 6 : i64, tpu.core_type = #tpu.core_type<tc>, window_params = [{pipeline_mode = #tpu.pipeline_mode<synchronous>, transform_indices = @transform_0, window_bounds = array<i64: 64, 32>}, {pipeline_mode = #tpu.pipeline_mode<synchronous>, transform_indices = @transform_1, window_bounds = array<i64: 64, 64>}, {pipeline_mode = #tpu.pipeline_mode<synchronous>, transform_indices = @transform_2, window_bounds = array<i64: 1, 64>}, {pipeline_mode = #tpu.pipeline_mode<synchronous>, transform_indices = @transform_3, window_bounds = array<i64: 32, 16>}, {pipeline_mode = #tpu.pipeline_mode<synchronous>, transform_indices = @transform_4, window_bounds = array<i64: 16, 1>}, {pipeline_mode = #tpu.pipeline_mode<synchronous>, transform_indices = @transform_5, window_bounds = array<i64: 16, 8>}, {pipeline_mode = #tpu.pipeline_mode<synchronous>, transform_indices = @transform_6, window_bounds = array<i64: 8, 1>}, {pipeline_mode = #tpu.pipeline_mode<synchronous>, transform_indices = @transform_7, window_bounds = array<i64: 64, 8>}]} {
    %c0 = arith.constant 0 : index
    %0 = memref.load %arg1[%c0] : memref<1xi32, #tpu.memory_space<smem>>
    %c0_0 = arith.constant 0 : index
    %c0_1 = arith.constant 0 : index
    %1 = vector.load %arg3[%c0_0, %c0_1] : memref<64x64xf32, #tpu.memory_space<vmem>>, vector<64x64xf32>
    %cst = arith.constant 0.000000e+00 : f32
    %2 = vector.broadcast %cst : f32 to vector<64x64xf32>
    %3 = arith.cmpf ogt, %1, %2 : vector<64x64xf32>
    %4 = vector.shape_cast %3 : vector<64x64xi1> to vector<1x64x64xi1>
    %c0_2 = arith.constant 0 : index
    %c0_3 = arith.constant 0 : index
    %5 = vector.load %arg4[%c0_2, %c0_3] : memref<1x64xf32, #tpu.memory_space<vmem>>, vector<1x64xf32>
    %c0_4 = arith.constant 0 : index
    %c0_5 = arith.constant 0 : index
    %6 = vector.load %arg2[%c0_4, %c0_5] : memref<64x32xf32, #tpu.memory_space<vmem>>, vector<64x32xf32>
    %c0_6 = arith.constant 0 : index
    %c0_7 = arith.constant 0 : index
    %7 = vector.load %arg5[%c0_6, %c0_7] : memref<32x16xf32, #tpu.memory_space<vmem>>, vector<32x16xf32>
    %cst_8 = arith.constant dense<0.000000e+00> : vector<64x16xf32>
    %8 = tpu.matmul %6, %7, %cst_8 {dimension_numbers = #tpu.dot_dimension_numbers<[1], [0], [0], [1], [0, 0, 1, 1], [], []>} : vector<64x32xf32>, vector<32x16xf32>, vector<64x16xf32> -> vector<64x16xf32>
    %9 = tpu.transpose %8, [1, 0] : vector<64x16xf32> -> vector<16x64xf32>
    %10 = vector.shape_cast %9 : vector<16x64xf32> to vector<16x64x1xf32>
    %cst_9 = arith.constant 0x7F800000 : f32
    %11 = vector.shape_cast %4 : vector<1x64x64xi1> to vector<1x64x64xi1>
    %12 = vector.broadcast %11 : vector<1x64x64xi1> to vector<16x64x64xi1>
    %13 = vector.shape_cast %10 : vector<16x64x1xf32> to vector<16x64x1xf32>
    %14 = vector.broadcast %13 : vector<16x64x1xf32> to vector<16x64x64xf32>
    %15 = vector.broadcast %cst_9 : f32 to vector<16x64x64xf32>
    %16 = arith.select %12, %14, %15 : vector<16x64x64xi1>, vector<16x64x64xf32>
    %c0_10 = arith.constant 0 : index
    %c0_11 = arith.constant 0 : index
    %c0_12 = arith.constant 0 : index
    %17 = vector.load %arg10[%c0_10, %c0_11, %c0_12] : memref<16x64x64xf32, #tpu.memory_space<vmem>>, vector<16x64x64xf32>
    tpu.vector_store %arg10[%c0_10, %c0_11, %c0_12], %16 {strides = array<i32>} : memref<16x64x64xf32, #tpu.memory_space<vmem>>, vector<16x64x64xf32>,
    %cst_13 = arith.constant 0.000000e+00 : f32
    %18 = vector.broadcast %cst_13 : f32 to vector<16x64xf32>
    %c0_14 = arith.constant 0 : index
    %c0_15 = arith.constant 0 : index
    %19 = vector.load %arg12[%c0_14, %c0_15] : memref<16x64xf32, #tpu.memory_space<vmem>>, vector<16x64xf32>
    tpu.vector_store %arg12[%c0_14, %c0_15], %18 {strides = array<i32>} : memref<16x64xf32, #tpu.memory_space<vmem>>, vector<16x64xf32>,
    %cst_16 = arith.constant 0.000000e+00 : f32
    %20 = vector.broadcast %cst_16 : f32 to vector<16x64xf32>
    %c0_17 = arith.constant 0 : index
    %c0_18 = arith.constant 0 : index
    %21 = vector.load %arg13[%c0_17, %c0_18] : memref<16x64xf32, #tpu.memory_space<vmem>>, vector<16x64xf32>
    tpu.vector_store %arg13[%c0_17, %c0_18], %20 {strides = array<i32>} : memref<16x64xf32, #tpu.memory_space<vmem>>, vector<16x64xf32>,
    %c0_i32 = arith.constant 0 : i32
    %22 = arith.subi %0, %c0_i32 : i32
    %c1_i32 = arith.constant 1 : i32
    %c1_i32_19 = arith.constant 1 : i32
    %23 = arith.subi %c1_i32, %c1_i32_19 : i32
    %24 = arith.addi %22, %23 : i32
    %c1_i32_20 = arith.constant 1 : i32
    %25 = arith.divsi %24, %c1_i32_20 : i32
    %c1_i32_21 = arith.constant 1 : i32
    %c0_i32_22 = arith.constant 0 : i32
    %cst_23 = arith.constant 0x7F800000 : f32
    %c0_i32_24 = arith.constant 0 : i32
    %26 = arith.subi %25, %c0_i32_24 : i32
    %27 = arith.addi %c0_i32_24, %26 : i32
    %c1_i32_25 = arith.constant 1 : i32
    scf.for %arg16 = %c0_i32_24 to %27 step %c1_i32_25  : i32 {
      %61 = arith.muli %arg16, %c1_i32_21 : i32
      %62 = arith.addi %c0_i32_22, %61 : i32
      %c0_59 = arith.constant 0 : index
      %c0_60 = arith.constant 0 : index
      %c0_61 = arith.constant 0 : index
      %63 = vector.load %arg10[%c0_59, %c0_60, %c0_61] : memref<16x64x64xf32, #tpu.memory_space<vmem>>, vector<16x64x64xf32>
      %cst_62 = arith.constant dense<0x7F800000> : vector<16x64xf32>
      %64 = vector.multi_reduction <minimumf>, %63, %cst_62 [1] : vector<16x64x64xf32> to vector<16x64xf32>
      %65 = vector.shape_cast %64 : vector<16x64xf32> to vector<16x1x64xf32>
      %66 = vector.broadcast %65 : vector<16x1x64xf32> to vector<16x64x64xf32>
      %67 = arith.cmpf oeq, %63, %66 : vector<16x64x64xf32>
      %68 = arith.extui %67 : vector<16x64x64xi1> to vector<16x64x64xi32>
      %69 = arith.sitofp %68 : vector<16x64x64xi32> to vector<16x64x64xf32>
      %cst_63 = arith.constant dense<0.000000e+00> : vector<16x64xf32>
      %70 = vector.multi_reduction <add>, %69, %cst_63 [1] : vector<16x64x64xf32> to vector<16x64xf32>
      %c0_64 = arith.constant 0 : index
      %c0_65 = arith.constant 0 : index
      %71 = vector.load %arg12[%c0_64, %c0_65] : memref<16x64xf32, #tpu.memory_space<vmem>>, vector<16x64xf32>
      %72 = vector.broadcast %5 : vector<1x64xf32> to vector<16x64xf32>
      %73 = arith.cmpf ole, %71, %72 : vector<16x64xf32>
      %74 = arith.addf %71, %70 : vector<16x64xf32>
      %75 = vector.broadcast %5 : vector<1x64xf32> to vector<16x64xf32>
      %76 = arith.cmpf olt, %75, %74 : vector<16x64xf32>
      %77 = arith.andi %73, %76 : vector<16x64xi1>
      %c0_66 = arith.constant 0 : index
      %c0_67 = arith.constant 0 : index
      %78 = vector.load %arg13[%c0_66, %c0_67] : memref<16x64xf32, #tpu.memory_space<vmem>>, vector<16x64xf32>
      %79 = arith.select %77, %64, %78 : vector<16x64xi1>, vector<16x64xf32>
      %c0_68 = arith.constant 0 : index
      %c0_69 = arith.constant 0 : index
      %80 = vector.load %arg13[%c0_68, %c0_69] : memref<16x64xf32, #tpu.memory_space<vmem>>, vector<16x64xf32>
      tpu.vector_store %arg13[%c0_68, %c0_69], %79 {strides = array<i32>} : memref<16x64xf32, #tpu.memory_space<vmem>>, vector<16x64xf32>,
      %81 = arith.addf %71, %70 : vector<16x64xf32>
      %c0_70 = arith.constant 0 : index
      %c0_71 = arith.constant 0 : index
      %82 = vector.load %arg12[%c0_70, %c0_71] : memref<16x64xf32, #tpu.memory_space<vmem>>, vector<16x64xf32>
      tpu.vector_store %arg12[%c0_70, %c0_71], %81 {strides = array<i32>} : memref<16x64xf32, #tpu.memory_space<vmem>>, vector<16x64xf32>,
      %83 = vector.broadcast %cst_23 : f32 to vector<16x64x64xf32>
      %84 = arith.select %67, %83, %63 : vector<16x64x64xi1>, vector<16x64x64xf32>
      %c0_72 = arith.constant 0 : index
      %c0_73 = arith.constant 0 : index
      %c0_74 = arith.constant 0 : index
      %85 = vector.load %arg10[%c0_72, %c0_73, %c0_74] : memref<16x64x64xf32, #tpu.memory_space<vmem>>, vector<16x64x64xf32>
      tpu.vector_store %arg10[%c0_72, %c0_73, %c0_74], %84 {strides = array<i32>} : memref<16x64x64xf32, #tpu.memory_space<vmem>>, vector<16x64x64xf32>,
    }
    %c0_26 = arith.constant 0 : index
    %c0_27 = arith.constant 0 : index
    %28 = vector.load %arg13[%c0_26, %c0_27] : memref<16x64xf32, #tpu.memory_space<vmem>>, vector<16x64xf32>
    %c0_28 = arith.constant 0 : index
    %c0_29 = arith.constant 0 : index
    %29 = vector.load %arg6[%c0_28, %c0_29] : memref<16x1xf32, #tpu.memory_space<vmem>>, vector<16x1xf32>
    %30 = vector.broadcast %29 : vector<16x1xf32> to vector<16x64xf32>
    %31 = arith.addf %28, %30 : vector<16x64xf32>
    %cst_30 = arith.constant 0.000000e+00 : f32
    %32 = vector.broadcast %cst_30 : f32 to vector<16x64xf32>
    %33 = arith.maximumf %31, %32 : vector<16x64xf32>
    %c0_31 = arith.constant 0 : index
    %c0_32 = arith.constant 0 : index
    %34 = vector.load %arg7[%c0_31, %c0_32] : memref<16x8xf32, #tpu.memory_space<vmem>>, vector<16x8xf32>
    %35 = tpu.transpose %34, [1, 0] : vector<16x8xf32> -> vector<8x16xf32>
    %cst_33 = arith.constant dense<0.000000e+00> : vector<8x64xf32>
    %36 = tpu.matmul %35, %33, %cst_33 {dimension_numbers = #tpu.dot_dimension_numbers<[1], [0], [0], [1], [0, 0, 1, 1], [], []>} : vector<8x16xf32>, vector<16x64xf32>, vector<8x64xf32> -> vector<8x64xf32>
    %37 = vector.shape_cast %36 : vector<8x64xf32> to vector<8x64x1xf32>
    %cst_34 = arith.constant 0x7F800000 : f32
    %38 = vector.shape_cast %4 : vector<1x64x64xi1> to vector<1x64x64xi1>
    %39 = vector.broadcast %38 : vector<1x64x64xi1> to vector<8x64x64xi1>
    %40 = vector.shape_cast %37 : vector<8x64x1xf32> to vector<8x64x1xf32>
    %41 = vector.broadcast %40 : vector<8x64x1xf32> to vector<8x64x64xf32>
    %42 = vector.broadcast %cst_34 : f32 to vector<8x64x64xf32>
    %43 = arith.select %39, %41, %42 : vector<8x64x64xi1>, vector<8x64x64xf32>
    %c0_35 = arith.constant 0 : index
    %c0_36 = arith.constant 0 : index
    %c0_37 = arith.constant 0 : index
    %44 = vector.load %arg11[%c0_35, %c0_36, %c0_37] : memref<8x64x64xf32, #tpu.memory_space<vmem>>, vector<8x64x64xf32>
    tpu.vector_store %arg11[%c0_35, %c0_36, %c0_37], %43 {strides = array<i32>} : memref<8x64x64xf32, #tpu.memory_space<vmem>>, vector<8x64x64xf32>,
    %cst_38 = arith.constant 0.000000e+00 : f32
    %45 = vector.broadcast %cst_38 : f32 to vector<8x64xf32>
    %c0_39 = arith.constant 0 : index
    %c0_40 = arith.constant 0 : index
    %46 = vector.load %arg14[%c0_39, %c0_40] : memref<8x64xf32, #tpu.memory_space<vmem>>, vector<8x64xf32>
    tpu.vector_store %arg14[%c0_39, %c0_40], %45 {strides = array<i32>} : memref<8x64xf32, #tpu.memory_space<vmem>>, vector<8x64xf32>,
    %cst_41 = arith.constant 0.000000e+00 : f32
    %47 = vector.broadcast %cst_41 : f32 to vector<8x64xf32>
    %c0_42 = arith.constant 0 : index
    %c0_43 = arith.constant 0 : index
    %48 = vector.load %arg15[%c0_42, %c0_43] : memref<8x64xf32, #tpu.memory_space<vmem>>, vector<8x64xf32>
    tpu.vector_store %arg15[%c0_42, %c0_43], %47 {strides = array<i32>} : memref<8x64xf32, #tpu.memory_space<vmem>>, vector<8x64xf32>,
    %c0_i32_44 = arith.constant 0 : i32
    %49 = arith.subi %0, %c0_i32_44 : i32
    %c1_i32_45 = arith.constant 1 : i32
    %c1_i32_46 = arith.constant 1 : i32
    %50 = arith.subi %c1_i32_45, %c1_i32_46 : i32
    %51 = arith.addi %49, %50 : i32
    %c1_i32_47 = arith.constant 1 : i32
    %52 = arith.divsi %51, %c1_i32_47 : i32
    %c1_i32_48 = arith.constant 1 : i32
    %c0_i32_49 = arith.constant 0 : i32
    %cst_50 = arith.constant 0x7F800000 : f32
    %c0_i32_51 = arith.constant 0 : i32
    %53 = arith.subi %52, %c0_i32_51 : i32
    %54 = arith.addi %c0_i32_51, %53 : i32
    %c1_i32_52 = arith.constant 1 : i32
    scf.for %arg16 = %c0_i32_51 to %54 step %c1_i32_52  : i32 {
      %61 = arith.muli %arg16, %c1_i32_48 : i32
      %62 = arith.addi %c0_i32_49, %61 : i32
      %c0_59 = arith.constant 0 : index
      %c0_60 = arith.constant 0 : index
      %c0_61 = arith.constant 0 : index
      %63 = vector.load %arg11[%c0_59, %c0_60, %c0_61] : memref<8x64x64xf32, #tpu.memory_space<vmem>>, vector<8x64x64xf32>
      %cst_62 = arith.constant dense<0x7F800000> : vector<8x64xf32>
      %64 = vector.multi_reduction <minimumf>, %63, %cst_62 [1] : vector<8x64x64xf32> to vector<8x64xf32>
      %65 = vector.shape_cast %64 : vector<8x64xf32> to vector<8x1x64xf32>
      %66 = vector.broadcast %65 : vector<8x1x64xf32> to vector<8x64x64xf32>
      %67 = arith.cmpf oeq, %63, %66 : vector<8x64x64xf32>
      %68 = arith.extui %67 : vector<8x64x64xi1> to vector<8x64x64xi32>
      %69 = arith.sitofp %68 : vector<8x64x64xi32> to vector<8x64x64xf32>
      %cst_63 = arith.constant dense<0.000000e+00> : vector<8x64xf32>
      %70 = vector.multi_reduction <add>, %69, %cst_63 [1] : vector<8x64x64xf32> to vector<8x64xf32>
      %c0_64 = arith.constant 0 : index
      %c0_65 = arith.constant 0 : index
      %71 = vector.load %arg14[%c0_64, %c0_65] : memref<8x64xf32, #tpu.memory_space<vmem>>, vector<8x64xf32>
      %72 = vector.broadcast %5 : vector<1x64xf32> to vector<8x64xf32>
      %73 = arith.cmpf ole, %71, %72 : vector<8x64xf32>
      %74 = arith.addf %71, %70 : vector<8x64xf32>
      %75 = vector.broadcast %5 : vector<1x64xf32> to vector<8x64xf32>
      %76 = arith.cmpf olt, %75, %74 : vector<8x64xf32>
      %77 = arith.andi %73, %76 : vector<8x64xi1>
      %c0_66 = arith.constant 0 : index
      %c0_67 = arith.constant 0 : index
      %78 = vector.load %arg15[%c0_66, %c0_67] : memref<8x64xf32, #tpu.memory_space<vmem>>, vector<8x64xf32>
      %79 = arith.select %77, %64, %78 : vector<8x64xi1>, vector<8x64xf32>
      %c0_68 = arith.constant 0 : index
      %c0_69 = arith.constant 0 : index
      %80 = vector.load %arg15[%c0_68, %c0_69] : memref<8x64xf32, #tpu.memory_space<vmem>>, vector<8x64xf32>
      tpu.vector_store %arg15[%c0_68, %c0_69], %79 {strides = array<i32>} : memref<8x64xf32, #tpu.memory_space<vmem>>, vector<8x64xf32>,
      %81 = arith.addf %71, %70 : vector<8x64xf32>
      %c0_70 = arith.constant 0 : index
      %c0_71 = arith.constant 0 : index
      %82 = vector.load %arg14[%c0_70, %c0_71] : memref<8x64xf32, #tpu.memory_space<vmem>>, vector<8x64xf32>
      tpu.vector_store %arg14[%c0_70, %c0_71], %81 {strides = array<i32>} : memref<8x64xf32, #tpu.memory_space<vmem>>, vector<8x64xf32>,
      %83 = vector.broadcast %cst_50 : f32 to vector<8x64x64xf32>
      %84 = arith.select %67, %83, %63 : vector<8x64x64xi1>, vector<8x64x64xf32>
      %c0_72 = arith.constant 0 : index
      %c0_73 = arith.constant 0 : index
      %c0_74 = arith.constant 0 : index
      %85 = vector.load %arg11[%c0_72, %c0_73, %c0_74] : memref<8x64x64xf32, #tpu.memory_space<vmem>>, vector<8x64x64xf32>
      tpu.vector_store %arg11[%c0_72, %c0_73, %c0_74], %84 {strides = array<i32>} : memref<8x64x64xf32, #tpu.memory_space<vmem>>, vector<8x64x64xf32>,
    }
    %c0_53 = arith.constant 0 : index
    %c0_54 = arith.constant 0 : index
    %55 = vector.load %arg15[%c0_53, %c0_54] : memref<8x64xf32, #tpu.memory_space<vmem>>, vector<8x64xf32>
    %c0_55 = arith.constant 0 : index
    %c0_56 = arith.constant 0 : index
    %56 = vector.load %arg8[%c0_55, %c0_56] : memref<8x1xf32, #tpu.memory_space<vmem>>, vector<8x1xf32>
    %57 = vector.broadcast %56 : vector<8x1xf32> to vector<8x64xf32>
    %58 = arith.addf %55, %57 : vector<8x64xf32>
    %59 = tpu.transpose %58, [1, 0] : vector<8x64xf32> -> vector<64x8xf32>
    %c0_57 = arith.constant 0 : index
    %c0_58 = arith.constant 0 : index
    %60 = vector.load %arg9[%c0_57, %c0_58] : memref<64x8xf32, #tpu.memory_space<vmem>>, vector<64x8xf32>
    tpu.vector_store %arg9[%c0_57, %c0_58], %59 {strides = array<i32>} : memref<64x8xf32, #tpu.memory_space<vmem>>, vector<64x8xf32>,
    return
  }
  func.func @transform_0(%arg0: i32, %arg1: memref<1xi32, #tpu.memory_space<smem>>) -> (i32, i32) {
    %c0_i32 = arith.constant 0 : i32
    %c0_i32_0 = arith.constant 0 : i32
    %c0_i32_1 = arith.constant 0 : i32
    return %c0_i32, %c0_i32_0 : i32, i32
  }
  func.func @transform_1(%arg0: i32, %arg1: memref<1xi32, #tpu.memory_space<smem>>) -> (i32, i32) {
    %c0_i32 = arith.constant 0 : i32
    %c0_i32_0 = arith.constant 0 : i32
    %c0_i32_1 = arith.constant 0 : i32
    return %c0_i32, %c0_i32_0 : i32, i32
  }
  func.func @transform_2(%arg0: i32, %arg1: memref<1xi32, #tpu.memory_space<smem>>) -> (i32, i32) {
    %c0_i32 = arith.constant 0 : i32
    %c0_i32_0 = arith.constant 0 : i32
    %c0_i32_1 = arith.constant 0 : i32
    return %c0_i32, %c0_i32_0 : i32, i32
  }
  func.func @transform_3(%arg0: i32, %arg1: memref<1xi32, #tpu.memory_space<smem>>) -> (i32, i32) {
    %c0_i32 = arith.constant 0 : i32
    %c0_i32_0 = arith.constant 0 : i32
    %c0_i32_1 = arith.constant 0 : i32
    return %c0_i32, %c0_i32_0 : i32, i32
  }
  func.func @transform_4(%arg0: i32, %arg1: memref<1xi32, #tpu.memory_space<smem>>) -> (i32, i32) {
    %c0_i32 = arith.constant 0 : i32
    %c0_i32_0 = arith.constant 0 : i32
    %c0_i32_1 = arith.constant 0 : i32
    return %c0_i32, %c0_i32_0 : i32, i32
  }
  func.func @transform_5(%arg0: i32, %arg1: memref<1xi32, #tpu.memory_space<smem>>) -> (i32, i32) {
    %c0_i32 = arith.constant 0 : i32
    %c0_i32_0 = arith.constant 0 : i32
    %c0_i32_1 = arith.constant 0 : i32
    return %c0_i32, %c0_i32_0 : i32, i32
  }
  func.func @transform_6(%arg0: i32, %arg1: memref<1xi32, #tpu.memory_space<smem>>) -> (i32, i32) {
    %c0_i32 = arith.constant 0 : i32
    %c0_i32_0 = arith.constant 0 : i32
    %c0_i32_1 = arith.constant 0 : i32
    return %c0_i32, %c0_i32_0 : i32, i32
  }
  func.func @transform_7(%arg0: i32, %arg1: memref<1xi32, #tpu.memory_space<smem>>) -> (i32, i32) {
    %c0_i32 = arith.constant 0 : i32
    %c0_i32_0 = arith.constant 0 : i32
    %c0_i32_1 = arith.constant 0 : i32
    return %c0_i32, %c0_i32_0 : i32, i32
  }
}

</mosaic_0001>

<llo_original>
// kernel: median_gcn_forward.1
$region0: #{median_gcn_forward.1}
  #allocation0 [shape = 'u32[]', space=smem, size = 0x4, offset = 0x4, fixed_abs, tag = 'smem constant byte address 0x4 - core index']
  #allocation1 [shape = 'u32[144,128]{1,0:T(1,128)}', space=vmem, size = 0x12000, scoped, tag = 'internal scratch']
  #allocation2 [shape = 'f32[16,64,64]{2,1,0:T(8,128)}', space=vmem, size = 0x80000, scoped, tag = 'scratch operand']
  #allocation3 [shape = 'f32[8,64,64]{2,1,0:T(8,128)}', space=vmem, size = 0x40000, scoped, tag = 'scratch operand']
  #allocation4 [shape = 'f32[16,64]{1,0:T(8,128)}', space=vmem, size = 0x2000, scoped, tag = 'scratch operand']
  #allocation5 [shape = 'f32[16,64]{1,0:T(8,128)}', space=vmem, size = 0x2000, scoped, tag = 'scratch operand']
  #allocation6 [shape = 'f32[8,64]{1,0:T(8,128)}', space=vmem, size = 0x1000, scoped, tag = 'scratch operand']
  #allocation7 [shape = 'f32[8,64]{1,0:T(8,128)}', space=vmem, size = 0x1000, scoped, tag = 'scratch operand']
  #allocation8 [shape = 's32[1]{0}', space=sflag, size = 0x4, scoped, tag = 'scoped memory for median_gcn_forward.1']
  #allocation9 [shape = 's32[1]{0:T(128)S(6)}', space=smem, size = 0x200, scoped, tag = 'prefetched SMEM operand 0']
  %s0 = inlined_call_operand.<no memory space> [shape: s32[1], index: 0, kind: input, shape index: {}]
  %s1 = inlined_call_operand.vmem [shape: f32[64,32], index: 1, kind: input, shape index: {}]
  %s2 = inlined_call_operand.vmem [shape: f32[64,64], index: 2, kind: input, shape index: {}]
  %s3 = inlined_call_operand.vmem [shape: f32[1,64], index: 3, kind: input, shape index: {}]
  %s4 = inlined_call_operand.vmem [shape: f32[32,16], index: 4, kind: input, shape index: {}]
  %s5 = inlined_call_operand.vmem [shape: f32[16,1], index: 5, kind: input, shape index: {}]
  %s6 = inlined_call_operand.vmem [shape: f32[16,8], index: 6, kind: input, shape index: {}]
  %s7 = inlined_call_operand.vmem [shape: f32[8,1], index: 7, kind: input, shape index: {}]
  %s8 = inlined_call_operand.vmem [shape: f32[64,8], index: 8, kind: output, shape index: {}]
  %s9 = sld [smem:[#allocation0]]
  $region52: #{median_gcn_forward.1} parent=0
    _
  %s11 = ssub.s32 1, %s9
  %s12 = scalar_select 0, %s11, %s9
  %13 = sst [smem:[#allocation9]] %s0
  // Predicated region
  $region2: #{median_gcn_forward.1} parent=0 // pred_check
    _
  $region3: #{median_gcn_forward.1} parent=0 // pred_check_branch
    %15 = sbr.rel (0) target = $region5
  $region4: #{median_gcn_forward.1} parent=0 // pred_region
    _
  $region5: #{median_gcn_forward.1} parent=0 // pred_fallthru
    _
  // Predicated region
  $region6: #{median_gcn_forward.1} parent=0 // pred_check
    _
  $region7: #{median_gcn_forward.1} parent=0 // pred_check_branch
    %17 = sbr.rel (0) target = $region9
  $region8: #{median_gcn_forward.1} parent=0 // pred_region
    _
  $region9: #{median_gcn_forward.1} parent=0 // pred_fallthru
    _
  // Predicated region
  $region10: #{median_gcn_forward.1} parent=0 // pred_check
    _
  $region11: #{median_gcn_forward.1} parent=0 // pred_check_branch
    %19 = sbr.rel (0) target = $region13
  $region12: #{median_gcn_forward.1} parent=0 // pred_region
    _
  $region13: #{median_gcn_forward.1} parent=0 // pred_fallthru
    _
  // Predicated region
  $region14: #{median_gcn_forward.1} parent=0 // pred_check
    _
  $region15: #{median_gcn_forward.1} parent=0 // pred_check_branch
    %21 = sbr.rel (0) target = $region17
  $region16: #{median_gcn_forward.1} parent=0 // pred_region
    _
  $region17: #{median_gcn_forward.1} parent=0 // pred_fallthru
    _
  // Predicated region
  $region18: #{median_gcn_forward.1} parent=0 // pred_check
    _
  $region19: #{median_gcn_forward.1} parent=0 // pred_check_branch
    %23 = sbr.rel (0) target = $region21
  $region20: #{median_gcn_forward.1} parent=0 // pred_region
    _
  $region21: #{median_gcn_forward.1} parent=0 // pred_fallthru
    _
  // Predicated region
  $region22: #{median_gcn_forward.1} parent=0 // pred_check
    _
  $region23: #{median_gcn_forward.1} parent=0 // pred_check_branch
    %25 = sbr.rel (0) target = $region25
  $region24: #{median_gcn_forward.1} parent=0 // pred_region
    _
  $region25: #{median_gcn_forward.1} parent=0 // pred_fallthru
    _
  // Predicated region
  $region26: #{median_gcn_forward.1} parent=0 // pred_check
    _
  $region27: #{median_gcn_forward.1} parent=0 // pred_check_branch
    %27 = sbr.rel (0) target = $region29
  $region28: #{median_gcn_forward.1} parent=0 // pred_region
    _
  $region29: #{median_gcn_forward.1} parent=0 // pred_fallthru
    _
  %s28 = sld [smem:[#allocation9]]
  %v29 = vld [vmem:[%s2] sm:$0xff]
  %v30 = vld [vmem:[%s2 + $0x8] sm:$0xff]
  %v31 = vld [vmem:[%s2 + $0x10] sm:$0xff]
  %v32 = vld [vmem:[%s2 + $0x18] sm:$0xff]
  %v33 = vld [vmem:[%s2 + $0x20] sm:$0xff]
  %v34 = vld [vmem:[%s2 + $0x28] sm:$0xff]
  %v35 = vld [vmem:[%s2 + $0x30] sm:$0xff]
  %v36 = vld [vmem:[%s2 + $0x38] sm:$0xff]
  %vm37 = vcmp.gt.f32.partialorder %v29, 0.0
  %vm38 = vcmp.gt.f32.partialorder %v30, 0.0
  %vm39 = vcmp.gt.f32.partialorder %v31, 0.0
  %vm40 = vcmp.gt.f32.partialorder %v32, 0.0
  %vm41 = vcmp.gt.f32.partialorder %v33, 0.0
  %vm42 = vcmp.gt.f32.partialorder %v34, 0.0
  %vm43 = vcmp.gt.f32.partialorder %v35, 0.0
  %vm44 = vcmp.gt.f32.partialorder %v36, 0.0
  %v45 = vld [vmem:[%s3] sm:$0x1]
  %v46 = vld [vmem:[%s1] sm:$0xff]
  %v47 = vld [vmem:[%s1 + $0x8] sm:$0xff]
  %v48 = vld [vmem:[%s1 + $0x10] sm:$0xff]
  %v49 = vld [vmem:[%s1 + $0x18] sm:$0xff]
  %v50 = vld [vmem:[%s1 + $0x20] sm:$0xff]
  %v51 = vld [vmem:[%s1 + $0x28] sm:$0xff]
  %v52 = vld [vmem:[%s1 + $0x30] sm:$0xff]
  %v53 = vld [vmem:[%s1 + $0x38] sm:$0xff]
  %v54 = vld [vmem:[%s4] sm:$0xff]
  %v55 = vld [vmem:[%s4 + $0x8] sm:$0xff]
  %v56 = vld [vmem:[%s4 + $0x10] sm:$0xff]
  %v57 = vld [vmem:[%s4 + $0x18] sm:$0xff]
  %vm58 = vcmask 261120
  %v60 = vsel %vm58, %v46, 0
  %v63 = vsel %vm58, %v47, 0
  %v66 = vsel %vm58, %v48, 0
  %v69 = vsel %vm58, %v49, 0
  %v72 = vsel %vm58, %v50, 0
  %v75 = vsel %vm58, %v51, 0
  %v78 = vsel %vm58, %v52, 0
  %v81 = vsel %vm58, %v53, 0
  %83 = vmatprep.subr.mxu0 0.0
  %84 = vmatpush1.msra.mxu0 %v54
  %85 = vmatprep.subr.mxu0 0.0
  %86 = vmatpush1.msra.mxu0 %v55
  %87 = vmatprep.subr.mxu0 0.0
  %88 = vmatpush1.msra.mxu0 %v56
  %89 = vmatprep.subr.mxu0 0.0
  %90 = vmatpush1.msra.mxu0 %v57
  %91 = vmatprep.subr.mxu0 0.0
  %92 = vmatpush1.msra.mxu0 0.0
  %93 = vmatprep.subr.mxu0 0.0
  %94 = vmatpush1.msra.mxu0 0.0
  %95 = vmatprep.subr.mxu0 0.0
  %96 = vmatpush1.msra.mxu0 0.0
  %97 = vmatprep.subr.mxu0 0.0
  %98 = vmatpush1.msra.mxu0 0.0
  %99 = vmatprep.subr.mxu0 0.0
  %100 = vmatpush1.msra.mxu0 0.0
  %101 = vmatprep.subr.mxu0 0.0
  %102 = vmatpush1.msra.mxu0 0.0
  %103 = vmatprep.subr.mxu0 0.0
  %104 = vmatpush1.msra.mxu0 0.0
  %105 = vmatprep.subr.mxu0 0.0
  %106 = vmatpush1.msra.mxu0 0.0
  %107 = vmatprep.subr.mxu0 0.0
  %108 = vmatpush1.msra.mxu0 0.0
  %109 = vmatprep.subr.mxu0 0.0
  %110 = vmatpush1.msra.mxu0 0.0
  %111 = vmatprep.subr.mxu0 0.0
  %112 = vmatpush1.msra.mxu0 0.0
  %113 = vmatprep.subr.mxu0 0.0
  %114 = vmatpush1.msra.mxu0 0.0
  %115 = vmatprep.subr.mxu0 0.0
  %116 = vmatpush1.msra.mxu0 0.0
  %117 = vmatprep.subr.mxu0 0.0
  %118 = vmatpush1.msra.mxu0 0.0
  %119 = vmatprep.subr.mxu0 0.0
  %120 = vmatpush1.msra.mxu0 0.0
  %121 = vmatprep.subr.mxu0 0.0
  %122 = vmatpush1.msra.mxu0 0.0
  %123 = vmatprep.subr.mxu0 0.0
  %124 = vmatpush1.msra.mxu0 0.0
  %125 = vmatprep.subr.mxu0 0.0
  %126 = vmatpush1.msra.mxu0 0.0
  %127 = vmatprep.subr.mxu0 0.0
  %128 = vmatpush1.msra.mxu0 0.0
  %129 = vmatprep.subr.mxu0 0.0
  %130 = vmatpush1.msra.mxu0 0.0
  %131 = vmatprep.subr.mxu0 0.0
  %132 = vmatpush1.msra.mxu0 0.0
  %133 = vmatprep.subr.mxu0 0.0
  %134 = vmatpush1.msra.mxu0 0.0
  %135 = vmatprep.subr.mxu0 0.0
  %136 = vmatpush1.msra.mxu0 0.0
  %137 = vmatprep.subr.mxu0 0.0
  %138 = vmatpush1.msra.mxu0 0.0
  %139 = vmatprep.subr.mxu0 0.0
  %140 = vmatpush1.msra.mxu0 0.0
  %141 = vmatprep.subr.mxu0 0.0
  %142 = vmatpush1.msra.mxu0 0.0
  %143 = vmatprep.subr.mxu0 0.0
  %144 = vmatpush1.msra.mxu0 0.0
  %145 = vmatprep.subr.mxu0 0.0
  %146 = vmatpush1.msra.mxu0 0.0
  %147 = vmatprep.mubr.f32.mxu0 0.0
  %148 = vmatmul.mubr.f32.gmra.mrb[0].mxu0 %v60
  %v149 = vpop.f32.mrb[0].mxu0
  %v150 = vadd.f32 0.0, %v149
  %v151 = vpop.f32.mrb[0].mxu0
  %152 = vmatprep.mubr.f32.mxu0 0.0
  %153 = vmatmul.mubr.f32.gmra.mrb[0].mxu0 %v63
  %v154 = vpop.f32.mrb[0].mxu0
  %v155 = vadd.f32 0.0, %v154
  %v156 = vpop.f32.mrb[0].mxu0
  %157 = vmatprep.mubr.f32.mxu0 0.0
  %158 = vmatmul.mubr.f32.gmra.mrb[0].mxu0 %v66
  %v159 = vpop.f32.mrb[0].mxu0
  %v160 = vadd.f32 0.0, %v159
  %v161 = vpop.f32.mrb[0].mxu0
  %162 = vmatprep.mubr.f32.mxu0 0.0
  %163 = vmatmul.mubr.f32.gmra.mrb[0].mxu0 %v69
  %v164 = vpop.f32.mrb[0].mxu0
  %v165 = vadd.f32 0.0, %v164
  %v166 = vpop.f32.mrb[0].mxu0
  %167 = vmatprep.mubr.f32.mxu0 0.0
  %168 = vmatmul.mubr.f32.gmra.mrb[0].mxu0 %v72
  %v169 = vpop.f32.mrb[0].mxu0
  %v170 = vadd.f32 0.0, %v169
  %v171 = vpop.f32.mrb[0].mxu0
  %172 = vmatprep.mubr.f32.mxu0 0.0
  %173 = vmatmul.mubr.f32.gmra.mrb[0].mxu0 %v75
  %v174 = vpop.f32.mrb[0].mxu0
  %v175 = vadd.f32 0.0, %v174
  %v176 = vpop.f32.mrb[0].mxu0
  %177 = vmatprep.mubr.f32.mxu0 0.0
  %178 = vmatmul.mubr.f32.gmra.mrb[0].mxu0 %v78
  %v179 = vpop.f32.mrb[0].mxu0
  %v180 = vadd.f32 0.0, %v179
  %v181 = vpop.f32.mrb[0].mxu0
  %182 = vmatprep.mubr.f32.mxu0 0.0
  %183 = vmatmul.mubr.f32.gmra.mrb[0].mxu0 %v81
  %v184 = vpop.f32.mrb[0].mxu0
  %v185 = vadd.f32 0.0, %v184
  %v186 = vpop.f32.mrb[0].mxu0
  %187 = vdwg.mxu0
  %188 = vxpose.xlu0.b32.start [1/16] %v150, 128
  %189 = vxpose.xlu0.b32.cont [2/16] %v155, 128
  %190 = vxpose.xlu0.b32.cont [3/16] %v160, 128
  %191 = vxpose.xlu0.b32.cont [4/16] %v165, 128
  %192 = vxpose.xlu0.b32.cont [5/16] %v170, 128
  %193 = vxpose.xlu0.b32.cont [6/16] %v175, 128
  %194 = vxpose.xlu0.b32.cont [7/16] %v180, 128
  %195 = vxpose.xlu0.b32.cont [8/16] %v185, 128
  %196 = vxpose.xlu0.b32.cont [9/16] 0.0, 128
  %197 = vxpose.xlu0.b32.cont [10/16] 0.0, 128
  %198 = vxpose.xlu0.b32.cont [11/16] 0.0, 128
  %199 = vxpose.xlu0.b32.cont [12/16] 0.0, 128
  %200 = vxpose.xlu0.b32.cont [13/16] 0.0, 128
  %201 = vxpose.xlu0.b32.cont [14/16] 0.0, 128
  %202 = vxpose.xlu0.b32.cont [15/16] 0.0, 128
  %203 = vxpose.xlu0.b32.end [16/16] 0.0, 128
  %v204 = vpop.trf.xlu0
  %v205 = vpop.trf.xlu0
  %v206 = vpop.trf.xlu0
  %v207 = vpop.trf.xlu0
  %v208 = vpop.trf.xlu0
  %v209 = vpop.trf.xlu0
  %v210 = vpop.trf.xlu0
  %v211 = vpop.trf.xlu0
  %v212 = vpop.trf.xlu0
  %v213 = vpop.trf.xlu0
  %v214 = vpop.trf.xlu0
  %v215 = vpop.trf.xlu0
  %v216 = vpop.trf.xlu0
  %v217 = vpop.trf.xlu0
  %v218 = vpop.trf.xlu0
  %v219 = vpop.trf.xlu0
  %v220 = vlaneseq
  %v221 = vshrl.u32 %v220, 7
  %v222 = vsub.s32 0, %v221
  %v223 = vrot.slane %v204, %v222
  %225 = vbcast.lane.b32.xlu0 %v223, 256
  %v226 = vpop.permute.xlu0 %225
  %s228 = sor.u32 256, 8
  %229 = vbcast.lane.b32.xlu0 %v223, %s228
  %v230 = vpop.permute.xlu0 %229
  %s232 = sor.u32 256, 16
  %233 = vbcast.lane.b32.xlu0 %v223, %s232
  %v234 = vpop.permute.xlu0 %233
  %s236 = sor.u32 256, 24
  %237 = vbcast.lane.b32.xlu0 %v223, %s236
  %v238 = vpop.permute.xlu0 %237
  %s240 = sor.u32 256, 32
  %241 = vbcast.lane.b32.xlu0 %v223, %s240
  %v242 = vpop.permute.xlu0 %241
  %s244 = sor.u32 256, 40
  %245 = vbcast.lane.b32.xlu0 %v223, %s244
  %v246 = vpop.permute.xlu0 %245
  %s248 = sor.u32 256, 48
  %249 = vbcast.lane.b32.xlu0 %v223, %s248
  %v250 = vpop.permute.xlu0 %249
  %s252 = sor.u32 256, 56
  %253 = vbcast.lane.b32.xlu0 %v223, %s252
  %v254 = vpop.permute.xlu0 %253
  %v255 = vlaneseq
  %v256 = vshrl.u32 %v255, 7
  %v257 = vsub.s32 1, %v256
  %v258 = vrot.slane %v204, %v257
  %260 = vbcast.lane.b32.xlu0 %v258, 256
  %v261 = vpop.permute.xlu0 %260
  %s263 = sor.u32 256, 8
  %264 = vbcast.lane.b32.xlu0 %v258, %s263
  %v265 = vpop.permute.xlu0 %264
  %s267 = sor.u32 256, 16
  %268 = vbcast.lane.b32.xlu0 %v258, %s267
  %v269 = vpop.permute.xlu0 %268
  %s271 = sor.u32 256, 24
  %272 = vbcast.lane.b32.xlu0 %v258, %s271
  %v273 = vpop.permute.xlu0 %272
  %s275 = sor.u32 256, 32
  %276 = vbcast.lane.b32.xlu0 %v258, %s275
  %v277 = vpop.permute.xlu0 %276
  %s279 = sor.u32 256, 40
  %280 = vbcast.lane.b32.xlu0 %v258, %s279
  %v281 = vpop.permute.xlu0 %280
  %s283 = sor.u32 256, 48
  %284 = vbcast.lane.b32.xlu0 %v258, %s283
  %v285 = vpop.permute.xlu0 %284
  %s287 = sor.u32 256, 56
  %288 = vbcast.lane.b32.xlu0 %v258, %s287
  %v289 = vpop.permute.xlu0 %288
  %v290 = vlaneseq
  %v291 = vshrl.u32 %v290, 7
  %v292 = vsub.s32 2, %v291
  %v293 = vrot.slane %v204, %v292
  %295 = vbcast.lane.b32.xlu0 %v293, 256
  %v296 = vpop.permute.xlu0 %295
  %s298 = sor.u32 256, 8
  %299 = vbcast.lane.b32.xlu0 %v293, %s298
  %v300 = vpop.permute.xlu0 %299
  %s302 = sor.u32 256, 16
  %303 = vbcast.lane.b32.xlu0 %v293, %s302
  %v304 = vpop.permute.xlu0 %303
  %s306 = sor.u32 256, 24
  %307 = vbcast.lane.b32.xlu0 %v293, %s306
  %v308 = vpop.permute.xlu0 %307
  %s310 = sor.u32 256, 32
  %311 = vbcast.lane.b32.xlu0 %v293, %s310
  %v312 = vpop.permute.xlu0 %311
  %s314 = sor.u32 256, 40
  %315 = vbcast.lane.b32.xlu0 %v293, %s314
  %v316 = vpop.permute.xlu0 %315
  %s318 = sor.u32 256, 48
  %319 = vbcast.lane.b32.xlu0 %v293, %s318
  %v320 = vpop.permute.xlu0 %319
  %s322 = sor.u32 256, 56
  %323 = vbcast.lane.b32.xlu0 %v293, %s322
  %v324 = vpop.permute.xlu0 %323
  %v325 = vlaneseq
  %v326 = vshrl.u32 %v325, 7
  %v327 = vsub.s32 3, %v326
  %v328 = vrot.slane %v204, %v327
  %330 = vbcast.lane.b32.xlu0 %v328, 256
  %v331 = vpop.permute.xlu0 %330
  %s333 = sor.u32 256, 8
  %334 = vbcast.lane.b32.xlu0 %v328, %s333
  %v335 = vpop.permute.xlu0 %334
  %s337 = sor.u32 256, 16
  %338 = vbcast.lane.b32.xlu0 %v328, %s337
  %v339 = vpop.permute.xlu0 %338
  %s341 = sor.u32 256, 24
  %342 = vbcast.lane.b32.xlu0 %v328, %s341
  %v343 = vpop.permute.xlu0 %342
  %s345 = sor.u32 256, 32
  %346 = vbcast.lane.b32.xlu0 %v328, %s345
  %v347 = vpop.permute.xlu0 %346
  %s349 = sor.u32 256, 40
  %350 = vbcast.lane.b32.xlu0 %v328, %s349
  %v351 = vpop.permute.xlu0 %350
  %s353 = sor.u32 256, 48
  %354 = vbcast.lane.b32.xlu0 %v328, %s353
  %v355 = vpop.permute.xlu0 %354
  %s357 = sor.u32 256, 56
  %358 = vbcast.lane.b32.xlu0 %v328, %s357
  %v359 = vpop.permute.xlu0 %358
  %v360 = vlaneseq
  %v361 = vshrl.u32 %v360, 7
  %v362 = vsub.s32 4, %v361
  %v363 = vrot.slane %v204, %v362
  %365 = vbcast.lane.b32.xlu0 %v363, 256
  %v366 = vpop.permute.xlu0 %365
  %s368 = sor.u32 256, 8
  %369 = vbcast.lane.b32.xlu0 %v363, %s368
  %v370 = vpop.permute.xlu0 %369
  %s372 = sor.u32 256, 16
  %373 = vbcast.lane.b32.xlu0 %v363, %s372
  %v374 = vpop.permute.xlu0 %373
  %s376 = sor.u32 256, 24
  %377 = vbcast.lane.b32.xlu0 %v363, %s376
  %v378 = vpop.permute.xlu0 %377
  %s380 = sor.u32 256, 32
  %381 = vbcast.lane.b32.xlu0 %v363, %s380
  %v382 = vpop.permute.xlu0 %381
  %s384 = sor.u32 256, 40
  %385 = vbcast.lane.b32.xlu0 %v363, %s384
  %v386 = vpop.permute.xlu0 %385
  %s388 = sor.u32 256, 48
  %389 = vbcast.lane.b32.xlu0 %v363, %s388
  %v390 = vpop.permute.xlu0 %389
  %s392 = sor.u32 256, 56
  %393 = vbcast.lane.b32.xlu0 %v363, %s392
  %v394 = vpop.permute.xlu0 %393
  %v395 = vlaneseq
  %v396 = vshrl.u32 %v395, 7
  %v397 = vsub.s32 5, %v396
  %v398 = vrot.slane %v204, %v397
  %400 = vbcast.lane.b32.xlu0 %v398, 256
  %v401 = vpop.permute.xlu0 %400
  %s403 = sor.u32 256, 8
  %404 = vbcast.lane.b32.xlu0 %v398, %s403
  %v405 = vpop.permute.xlu0 %404
  %s407 = sor.u32 256, 16
  %408 = vbcast.lane.b32.xlu0 %v398, %s407
  %v409 = vpop.permute.xlu0 %408
  %s411 = sor.u32 256, 24
  %412 = vbcast.lane.b32.xlu0 %v398, %s411
  %v413 = vpop.permute.xlu0 %412
  %s415 = sor.u32 256, 32
  %416 = vbcast.lane.b32.xlu0 %v398, %s415
  %v417 = vpop.permute.xlu0 %416
  %s419 = sor.u32 256, 40
  %420 = vbcast.lane.b32.xlu0 %v398, %s419
  %v421 = vpop.permute.xlu0 %420
  %s423 = sor.u32 256, 48
  %424 = vbcast.lane.b32.xlu0 %v398, %s423
  %v425 = vpop.permute.xlu0 %424
  %s427 = sor.u32 256, 56
  %428 = vbcast.lane.b32.xlu0 %v398, %s427
  %v429 = vpop.permute.xlu0 %428
  %v430 = vlaneseq
  %v431 = vshrl.u32 %v430, 7
  %v432 = vsub.s32 6, %v431
  %v433 = vrot.slane %v204, %v432
  %435 = vbcast.lane.b32.xlu0 %v433, 256
  %v436 = vpop.permute.xlu0 %435
  %s438 = sor.u32 256, 8
  %439 = vbcast.lane.b32.xlu0 %v433, %s438
  %v440 = vpop.permute.xlu0 %439
  %s442 = sor.u32 256, 16
  %443 = vbcast.lane.b32.xlu0 %v433, %s442
  %v444 = vpop.permute.xlu0 %443
  %s446 = sor.u32 256, 24
  %447 = vbcast.lane.b32.xlu0 %v433, %s446
  %v448 = vpop.permute.xlu0 %447
  %s450 = sor.u32 256, 32
  %451 = vbcast.lane.b32.xlu0 %v433, %s450
  %v452 = vpop.permute.xlu0 %451
  %s454 = sor.u32 256, 40
  %455 = vbcast.lane.b32.xlu0 %v433, %s454
  %v456 = vpop.permute.xlu0 %455
  %s458 = sor.u32 256, 48
  %459 = vbcast.lane.b32.xlu0 %v433, %s458
  %v460 = vpop.permute.xlu0 %459
  %s462 = sor.u32 256, 56
  %463 = vbcast.lane.b32.xlu0 %v433, %s462
  %v464 = vpop.permute.xlu0 %463
  %v465 = vlaneseq
  %v466 = vshrl.u32 %v465, 7
  %v467 = vsub.s32 7, %v466
  %v468 = vrot.slane %v204, %v467
  %470 = vbcast.lane.b32.xlu0 %v468, 256
  %v471 = vpop.permute.xlu0 %470
  %s473 = sor.u32 256, 8
  %474 = vbcast.lane.b32.xlu0 %v468, %s473
  %v475 = vpop.permute.xlu0 %474
  %s477 = sor.u32 256, 16
  %478 = vbcast.lane.b32.xlu0 %v468, %s477
  %v479 = vpop.permute.xlu0 %478
  %s481 = sor.u32 256, 24
  %482 = vbcast.lane.b32.xlu0 %v468, %s481
  %v483 = vpop.permute.xlu0 %482
  %s485 = sor.u32 256, 32
  %486 = vbcast.lane.b32.xlu0 %v468, %s485
  %v487 = vpop.permute.xlu0 %486
  %s489 = sor.u32 256, 40
  %490 = vbcast.lane.b32.xlu0 %v468, %s489
  %v491 = vpop.permute.xlu0 %490
  %s493 = sor.u32 256, 48
  %494 = vbcast.lane.b32.xlu0 %v468, %s493
  %v495 = vpop.permute.xlu0 %494
  %s497 = sor.u32 256, 56
  %498 = vbcast.lane.b32.xlu0 %v468, %s497
  %v499 = vpop.permute.xlu0 %498
  %v500 = vlaneseq
  %v501 = vshrl.u32 %v500, 7
  %v502 = vsub.s32 0, %v501
  %v503 = vrot.slane %v205, %v502
  %505 = vbcast.lane.b32.xlu0 %v503, 256
  %v506 = vpop.permute.xlu0 %505
  %s508 = sor.u32 256, 8
  %509 = vbcast.lane.b32.xlu0 %v503, %s508
  %v510 = vpop.permute.xlu0 %509
  %s512 = sor.u32 256, 16
  %513 = vbcast.lane.b32.xlu0 %v503, %s512
  %v514 = vpop.permute.xlu0 %513
  %s516 = sor.u32 256, 24
  %517 = vbcast.lane.b32.xlu0 %v503, %s516
  %v518 = vpop.permute.xlu0 %517
  %s520 = sor.u32 256, 32
  %521 = vbcast.lane.b32.xlu0 %v503, %s520
  %v522 = vpop.permute.xlu0 %521
  %s524 = sor.u32 256, 40
  %525 = vbcast.lane.b32.xlu0 %v503, %s524
  %v526 = vpop.permute.xlu0 %525
  %s528 = sor.u32 256, 48
  %529 = vbcast.lane.b32.xlu0 %v503, %s528
  %v530 = vpop.permute.xlu0 %529
  %s532 = sor.u32 256, 56
  %533 = vbcast.lane.b32.xlu0 %v503, %s532
  %v534 = vpop.permute.xlu0 %533
  %v535 = vlaneseq
  %v536 = vshrl.u32 %v535, 7
  %v537 = vsub.s32 1, %v536
  %v538 = vrot.slane %v205, %v537
  %540 = vbcast.lane.b32.xlu0 %v538, 256
  %v541 = vpop.permute.xlu0 %540
  %s543 = sor.u32 256, 8
  %544 = vbcast.lane.b32.xlu0 %v538, %s543
  %v545 = vpop.permute.xlu0 %544
  %s547 = sor.u32 256, 16
  %548 = vbcast.lane.b32.xlu0 %v538, %s547
  %v549 = vpop.permute.xlu0 %548
  %s551 = sor.u32 256, 24
  %552 = vbcast.lane.b32.xlu0 %v538, %s551
  %v553 = vpop.permute.xlu0 %552
  %s555 = sor.u32 256, 32
  %556 = vbcast.lane.b32.xlu0 %v538, %s555
  %v557 = vpop.permute.xlu0 %556
  %s559 = sor.u32 256, 40
  %560 = vbcast.lane.b32.xlu0 %v538, %s559
  %v561 = vpop.permute.xlu0 %560
  %s563 = sor.u32 256, 48
  %564 = vbcast.lane.b32.xlu0 %v538, %s563
  %v565 = vpop.permute.xlu0 %564
  %s567 = sor.u32 256, 56
  %568 = vbcast.lane.b32.xlu0 %v538, %s567
  %v569 = vpop.permute.xlu0 %568
  %v570 = vlaneseq
  %v571 = vshrl.u32 %v570, 7
  %v572 = vsub.s32 2, %v571
  %v573 = vrot.slane %v205, %v572
  %575 = vbcast.lane.b32.xlu0 %v573, 256
  %v576 = vpop.permute.xlu0 %575
  %s578 = sor.u32 256, 8
  %579 = vbcast.lane.b32.xlu0 %v573, %s578
  %v580 = vpop.permute.xlu0 %579
  %s582 = sor.u32 256, 16
  %583 = vbcast.lane.b32.xlu0 %v573, %s582
  %v584 = vpop.permute.xlu0 %583
  %s586 = sor.u32 256, 24
  %587 = vbcast.lane.b32.xlu0 %v573, %s586
  %v588 = vpop.permute.xlu0 %587
  %s590 = sor.u32 256, 32
  %591 = vbcast.lane.b32.xlu0 %v573, %s590
  %v592 = vpop.permute.xlu0 %591
  %s594 = sor.u32 256, 40
  %595 = vbcast.lane.b32.xlu0 %v573, %s594
  %v596 = vpop.permute.xlu0 %595
  %s598 = sor.u32 256, 48
  %599 = vbcast.lane.b32.xlu0 %v573, %s598
  %v600 = vpop.permute.xlu0 %599
  %s602 = sor.u32 256, 56
  %603 = vbcast.lane.b32.xlu0 %v573, %s602
  %v604 = vpop.permute.xlu0 %603
  %v605 = vlaneseq
  %v606 = vshrl.u32 %v605, 7
  %v607 = vsub.s32 3, %v606
  %v608 = vrot.slane %v205, %v607
  %610 = vbcast.lane.b32.xlu0 %v608, 256
  %v611 = vpop.permute.xlu0 %610
  %s613 = sor.u32 256, 8
  %614 = vbcast.lane.b32.xlu0 %v608, %s613
  %v615 = vpop.permute.xlu0 %614
  %s617 = sor.u32 256, 16
  %618 = vbcast.lane.b32.xlu0 %v608, %s617
  %v619 = vpop.permute.xlu0 %618
  %s621 = sor.u32 256, 24
  %622 = vbcast.lane.b32.xlu0 %v608, %s621
  %v623 = vpop.permute.xlu0 %622
  %s625 = sor.u32 256, 32
  %626 = vbcast.lane.b32.xlu0 %v608, %s625
  %v627 = vpop.permute.xlu0 %626
  %s629 = sor.u32 256, 40
  %630 = vbcast.lane.b32.xlu0 %v608, %s629
  %v631 = vpop.permute.xlu0 %630
  %s633 = sor.u32 256, 48
  %634 = vbcast.lane.b32.xlu0 %v608, %s633
  %v635 = vpop.permute.xlu0 %634
  %s637 = sor.u32 256, 56
  %638 = vbcast.lane.b32.xlu0 %v608, %s637
  %v639 = vpop.permute.xlu0 %638
  %v640 = vlaneseq
  %v641 = vshrl.u32 %v640, 7
  %v642 = vsub.s32 4, %v641
  %v643 = vrot.slane %v205, %v642
  %645 = vbcast.lane.b32.xlu0 %v643, 256
  %v646 = vpop.permute.xlu0 %645
  %s648 = sor.u32 256, 8
  %649 = vbcast.lane.b32.xlu0 %v643, %s648
  %v650 = vpop.permute.xlu0 %649
  %s652 = sor.u32 256, 16
  %653 = vbcast.lane.b32.xlu0 %v643, %s652
  %v654 = vpop.permute.xlu0 %653
  %s656 = sor.u32 256, 24
  %657 = vbcast.lane.b32.xlu0 %v643, %s656
  %v658 = vpop.permute.xlu0 %657
  %s660 = sor.u32 256, 32
  %661 = vbcast.lane.b32.xlu0 %v643, %s660
  %v662 = vpop.permute.xlu0 %661
  %s664 = sor.u32 256, 40
  %665 = vbcast.lane.b32.xlu0 %v643, %s664
  %v666 = vpop.permute.xlu0 %665
  %s668 = sor.u32 256, 48
  %669 = vbcast.lane.b32.xlu0 %v643, %s668
  %v670 = vpop.permute.xlu0 %669
  %s672 = sor.u32 256, 56
  %673 = vbcast.lane.b32.xlu0 %v643, %s672
  %v674 = vpop.permute.xlu0 %673
  %v675 = vlaneseq
  %v676 = vshrl.u32 %v675, 7
  %v677 = vsub.s32 5, %v676
  %v678 = vrot.slane %v205, %v677
  %680 = vbcast.lane.b32.xlu0 %v678, 256
  %v681 = vpop.permute.xlu0 %680
  %s683 = sor.u32 256, 8
  %684 = vbcast.lane.b32.xlu0 %v678, %s683
  %v685 = vpop.permute.xlu0 %684
  %s687 = sor.u32 256, 16
  %688 = vbcast.lane.b32.xlu0 %v678, %s687
  %v689 = vpop.permute.xlu0 %688
  %s691 = sor.u32 256, 24
  %692 = vbcast.lane.b32.xlu0 %v678, %s691
  %v693 = vpop.permute.xlu0 %692
  %s695 = sor.u32 256, 32
  %696 = vbcast.lane.b32.xlu0 %v678, %s695
  %v697 = vpop.permute.xlu0 %696
  %s699 = sor.u32 256, 40
  %700 = vbcast.lane.b32.xlu0 %v678, %s699
  %v701 = vpop.permute.xlu0 %700
  %s703 = sor.u32 256, 48
  %704 = vbcast.lane.b32.xlu0 %v678, %s703
  %v705 = vpop.permute.xlu0 %704
  %s707 = sor.u32 256, 56
  %708 = vbcast.lane.b32.xlu0 %v678, %s707
  %v709 = vpop.permute.xlu0 %708
  %v710 = vlaneseq
  %v711 = vshrl.u32 %v710, 7
  %v712 = vsub.s32 6, %v711
  %v713 = vrot.slane %v205, %v712
  %715 = vbcast.lane.b32.xlu0 %v713, 256
  %v716 = vpop.permute.xlu0 %715
  %s718 = sor.u32 256, 8
  %719 = vbcast.lane.b32.xlu0 %v713, %s718
  %v720 = vpop.permute.xlu0 %719
  %s722 = sor.u32 256, 16
  %723 = vbcast.lane.b32.xlu0 %v713, %s722
  %v724 = vpop.permute.xlu0 %723
  %s726 = sor.u32 256, 24
  %727 = vbcast.lane.b32.xlu0 %v713, %s726
  %v728 = vpop.permute.xlu0 %727
  %s730 = sor.u32 256, 32
  %731 = vbcast.lane.b32.xlu0 %v713, %s730
  %v732 = vpop.permute.xlu0 %731
  %s734 = sor.u32 256, 40
  %735 = vbcast.lane.b32.xlu0 %v713, %s734
  %v736 = vpop.permute.xlu0 %735
  %s738 = sor.u32 256, 48
  %739 = vbcast.lane.b32.xlu0 %v713, %s738
  %v740 = vpop.permute.xlu0 %739
  %s742 = sor.u32 256, 56
  %743 = vbcast.lane.b32.xlu0 %v713, %s742
  %v744 = vpop.permute.xlu0 %743
  %v745 = vlaneseq
  %v746 = vshrl.u32 %v745, 7
  %v747 = vsub.s32 7, %v746
  %v748 = vrot.slane %v205, %v747
  %750 = vbcast.lane.b32.xlu0 %v748, 256
  %v751 = vpop.permute.xlu0 %750
  %s753 = sor.u32 256, 8
  %754 = vbcast.lane.b32.xlu0 %v748, %s753
  %v755 = vpop.permute.xlu0 %754
  %s757 = sor.u32 256, 16
  %758 = vbcast.lane.b32.xlu0 %v748, %s757
  %v759 = vpop.permute.xlu0 %758
  %s761 = sor.u32 256, 24
  %762 = vbcast.lane.b32.xlu0 %v748, %s761
  %v763 = vpop.permute.xlu0 %762
  %s765 = sor.u32 256, 32
  %766 = vbcast.lane.b32.xlu0 %v748, %s765
  %v767 = vpop.permute.xlu0 %766
  %s769 = sor.u32 256, 40
  %770 = vbcast.lane.b32.xlu0 %v748, %s769
  %v771 = vpop.permute.xlu0 %770
  %s773 = sor.u32 256, 48
  %774 = vbcast.lane.b32.xlu0 %v748, %s773
  %v775 = vpop.permute.xlu0 %774
  %s777 = sor.u32 256, 56
  %778 = vbcast.lane.b32.xlu0 %v748, %s777
  %v779 = vpop.permute.xlu0 %778
  %v780 = vsel %vm37, 1, 0
  %v781 = vsel %vm38, 1, 0
  %v782 = vsel %vm39, 1, 0
  %v783 = vsel %vm40, 1, 0
  %v784 = vsel %vm41, 1, 0
  %v785 = vsel %vm42, 1, 0
  %v786 = vsel %vm43, 1, 0
  %v787 = vsel %vm44, 1, 0
  %vm788 = vcmp.eq.s32.totalorder %v780, 1
  %vm789 = vcmp.eq.s32.totalorder %v781, 1
  %vm790 = vcmp.eq.s32.totalorder %v782, 1
  %vm791 = vcmp.eq.s32.totalorder %v783, 1
  %vm792 = vcmp.eq.s32.totalorder %v784, 1
  %vm793 = vcmp.eq.s32.totalorder %v785, 1
  %vm794 = vcmp.eq.s32.totalorder %v786, 1
  %vm795 = vcmp.eq.s32.totalorder %v787, 1
  %v796 = vsel %vm788, %v226, inf
  %v797 = vsel %vm789, %v230, inf
  %v798 = vsel %vm790, %v234, inf
  %v799 = vsel %vm791, %v238, inf
  %v800 = vsel %vm792, %v242, inf
  %v801 = vsel %vm793, %v246, inf
  %v802 = vsel %vm794, %v250, inf
  %v803 = vsel %vm795, %v254, inf
  %v804 = vsel %vm788, %v261, inf
  %v805 = vsel %vm789, %v265, inf
  %v806 = vsel %vm790, %v269, inf
  %v807 = vsel %vm791, %v273, inf
  %v808 = vsel %vm792, %v277, inf
  %v809 = vsel %vm793, %v281, inf
  %v810 = vsel %vm794, %v285, inf
  %v811 = vsel %vm795, %v289, inf
  %v812 = vsel %vm788, %v296, inf
  %v813 = vsel %vm789, %v300, inf
  %v814 = vsel %vm790, %v304, inf
  %v815 = vsel %vm791, %v308, inf
  %v816 = vsel %vm792, %v312, inf
  %v817 = vsel %vm793, %v316, inf
  %v818 = vsel %vm794, %v320, inf
  %v819 = vsel %vm795, %v324, inf
  %v820 = vsel %vm788, %v331, inf
  %v821 = vsel %vm789, %v335, inf
  %v822 = vsel %vm790, %v339, inf
  %v823 = vsel %vm791, %v343, inf
  %v824 = vsel %vm792, %v347, inf
  %v825 = vsel %vm793, %v351, inf
  %v826 = vsel %vm794, %v355, inf
  %v827 = vsel %vm795, %v359, inf
  %v828 = vsel %vm788, %v366, inf
  %v829 = vsel %vm789, %v370, inf
  %v830 = vsel %vm790, %v374, inf
  %v831 = vsel %vm791, %v378, inf
  %v832 = vsel %vm792, %v382, inf
  %v833 = vsel %vm793, %v386, inf
  %v834 = vsel %vm794, %v390, inf
  %v835 = vsel %vm795, %v394, inf
  %v836 = vsel %vm788, %v401, inf
  %v837 = vsel %vm789, %v405, inf
  %v838 = vsel %vm790, %v409, inf
  %v839 = vsel %vm791, %v413, inf
  %v840 = vsel %vm792, %v417, inf
  %v841 = vsel %vm793, %v421, inf
  %v842 = vsel %vm794, %v425, inf
  %v843 = vsel %vm795, %v429, inf
  %v844 = vsel %vm788, %v436, inf
  %v845 = vsel %vm789, %v440, inf
  %v846 = vsel %vm790, %v444, inf
  %v847 = vsel %vm791, %v448, inf
  %v848 = vsel %vm792, %v452, inf
  %v849 = vsel %vm793, %v456, inf
  %v850 = vsel %vm794, %v460, inf
  %v851 = vsel %vm795, %v464, inf
  %v852 = vsel %vm788, %v471, inf
  %v853 = vsel %vm789, %v475, inf
  %v854 = vsel %vm790, %v479, inf
  %v855 = vsel %vm791, %v483, inf
  %v856 = vsel %vm792, %v487, inf
  %v857 = vsel %vm793, %v491, inf
  %v858 = vsel %vm794, %v495, inf
  %v859 = vsel %vm795, %v499, inf
  %v860 = vsel %vm788, %v506, inf
  %v861 = vsel %vm789, %v510, inf
  %v862 = vsel %vm790, %v514, inf
  %v863 = vsel %vm791, %v518, inf
  %v864 = vsel %vm792, %v522, inf
  %v865 = vsel %vm793, %v526, inf
  %v866 = vsel %vm794, %v530, inf
  %v867 = vsel %vm795, %v534, inf
  %v868 = vsel %vm788, %v541, inf
  %v869 = vsel %vm789, %v545, inf
  %v870 = vsel %vm790, %v549, inf
  %v871 = vsel %vm791, %v553, inf
  %v872 = vsel %vm792, %v557, inf
  %v873 = vsel %vm793, %v561, inf
  %v874 = vsel %vm794, %v565, inf
  %v875 = vsel %vm795, %v569, inf
  %v876 = vsel %vm788, %v576, inf
  %v877 = vsel %vm789, %v580, inf
  %v878 = vsel %vm790, %v584, inf
  %v879 = vsel %vm791, %v588, inf
  %v880 = vsel %vm792, %v592, inf
  %v881 = vsel %vm793, %v596, inf
  %v882 = vsel %vm794, %v600, inf
  %v883 = vsel %vm795, %v604, inf
  %v884 = vsel %vm788, %v611, inf
  %v885 = vsel %vm789, %v615, inf
  %v886 = vsel %vm790, %v619, inf
  %v887 = vsel %vm791, %v623, inf
  %v888 = vsel %vm792, %v627, inf
  %v889 = vsel %vm793, %v631, inf
  %v890 = vsel %vm794, %v635, inf
  %v891 = vsel %vm795, %v639, inf
  %v892 = vsel %vm788, %v646, inf
  %v893 = vsel %vm789, %v650, inf
  %v894 = vsel %vm790, %v654, inf
  %v895 = vsel %vm791, %v658, inf
  %v896 = vsel %vm792, %v662, inf
  %v897 = vsel %vm793, %v666, inf
  %v898 = vsel %vm794, %v670, inf
  %v899 = vsel %vm795, %v674, inf
  %v900 = vsel %vm788, %v681, inf
  %v901 = vsel %vm789, %v685, inf
  %v902 = vsel %vm790, %v689, inf
  %v903 = vsel %vm791, %v693, inf
  %v904 = vsel %vm792, %v697, inf
  %v905 = vsel %vm793, %v701, inf
  %v906 = vsel %vm794, %v705, inf
  %v907 = vsel %vm795, %v709, inf
  %v908 = vsel %vm788, %v716, inf
  %v909 = vsel %vm789, %v720, inf
  %v910 = vsel %vm790, %v724, inf
  %v911 = vsel %vm791, %v728, inf
  %v912 = vsel %vm792, %v732, inf
  %v913 = vsel %vm793, %v736, inf
  %v914 = vsel %vm794, %v740, inf
  %v915 = vsel %vm795, %v744, inf
  %v916 = vsel %vm788, %v751, inf
  %v917 = vsel %vm789, %v755, inf
  %v918 = vsel %vm790, %v759, inf
  %v919 = vsel %vm791, %v763, inf
  %v920 = vsel %vm792, %v767, inf
  %v921 = vsel %vm793, %v771, inf
  %v922 = vsel %vm794, %v775, inf
  %v923 = vsel %vm795, %v779, inf
  %vm924 = vcmask 523264
  %925 = vst.msk [vmem:[#allocation2] sm:$0xff] %vm924, %v796
  %926 = vst.msk [vmem:[#allocation2 + $0x8] sm:$0xff] %vm924, %v797
  %927 = vst.msk [vmem:[#allocation2 + $0x10] sm:$0xff] %vm924, %v798
  %928 = vst.msk [vmem:[#allocation2 + $0x18] sm:$0xff] %vm924, %v799
  %929 = vst.msk [vmem:[#allocation2 + $0x20] sm:$0xff] %vm924, %v800
  %930 = vst.msk [vmem:[#allocation2 + $0x28] sm:$0xff] %vm924, %v801
  %931 = vst.msk [vmem:[#allocation2 + $0x30] sm:$0xff] %vm924, %v802
  %932 = vst.msk [vmem:[#allocation2 + $0x38] sm:$0xff] %vm924, %v803
  %933 = vst.msk [vmem:[#allocation2 + $0x40] sm:$0xff] %vm924, %v804
  %934 = vst.msk [vmem:[#allocation2 + $0x48] sm:$0xff] %vm924, %v805
  %935 = vst.msk [vmem:[#allocation2 + $0x50] sm:$0xff] %vm924, %v806
  %936 = vst.msk [vmem:[#allocation2 + $0x58] sm:$0xff] %vm924, %v807
  %937 = vst.msk [vmem:[#allocation2 + $0x60] sm:$0xff] %vm924, %v808
  %938 = vst.msk [vmem:[#allocation2 + $0x68] sm:$0xff] %vm924, %v809
  %939 = vst.msk [vmem:[#allocation2 + $0x70] sm:$0xff] %vm924, %v810
  %940 = vst.msk [vmem:[#allocation2 + $0x78] sm:$0xff] %vm924, %v811
  %941 = vst.msk [vmem:[#allocation2 + $0x80] sm:$0xff] %vm924, %v812
  %942 = vst.msk [vmem:[#allocation2 + $0x88] sm:$0xff] %vm924, %v813
  %943 = vst.msk [vmem:[#allocation2 + $0x90] sm:$0xff] %vm924, %v814
  %944 = vst.msk [vmem:[#allocation2 + $0x98] sm:$0xff] %vm924, %v815
  %945 = vst.msk [vmem:[#allocation2 + $0xa0] sm:$0xff] %vm924, %v816
  %946 = vst.msk [vmem:[#allocation2 + $0xa8] sm:$0xff] %vm924, %v817
  %947 = vst.msk [vmem:[#allocation2 + $0xb0] sm:$0xff] %vm924, %v818
  %948 = vst.msk [vmem:[#allocation2 + $0xb8] sm:$0xff] %vm924, %v819
  %949 = vst.msk [vmem:[#allocation2 + $0xc0] sm:$0xff] %vm924, %v820
  %950 = vst.msk [vmem:[#allocation2 + $0xc8] sm:$0xff] %vm924, %v821
  %951 = vst.msk [vmem:[#allocation2 + $0xd0] sm:$0xff] %vm924, %v822
  %952 = vst.msk [vmem:[#allocation2 + $0xd8] sm:$0xff] %vm924, %v823
  %953 = vst.msk [vmem:[#allocation2 + $0xe0] sm:$0xff] %vm924, %v824
  %954 = vst.msk [vmem:[#allocation2 + $0xe8] sm:$0xff] %vm924, %v825
  %955 = vst.msk [vmem:[#allocation2 + $0xf0] sm:$0xff] %vm924, %v826
  %956 = vst.msk [vmem:[#allocation2 + $0xf8] sm:$0xff] %vm924, %v827
  %957 = vst.msk [vmem:[#allocation2 + $0x100] sm:$0xff] %vm924, %v828
  %958 = vst.msk [vmem:[#allocation2 + $0x108] sm:$0xff] %vm924, %v829
  %959 = vst.msk [vmem:[#allocation2 + $0x110] sm:$0xff] %vm924, %v830
  %960 = vst.msk [vmem:[#allocation2 + $0x118] sm:$0xff] %vm924, %v831
  %961 = vst.msk [vmem:[#allocation2 + $0x120] sm:$0xff] %vm924, %v832
  %962 = vst.msk [vmem:[#allocation2 + $0x128] sm:$0xff] %vm924, %v833
  %963 = vst.msk [vmem:[#allocation2 + $0x130] sm:$0xff] %vm924, %v834
  %964 = vst.msk [vmem:[#allocation2 + $0x138] sm:$0xff] %vm924, %v835
  %965 = vst.msk [vmem:[#allocation2 + $0x140] sm:$0xff] %vm924, %v836
  %966 = vst.msk [vmem:[#allocation2 + $0x148] sm:$0xff] %vm924, %v837
  %967 = vst.msk [vmem:[#allocation2 + $0x150] sm:$0xff] %vm924, %v838
  %968 = vst.msk [vmem:[#allocation2 + $0x158] sm:$0xff] %vm924, %v839
  %969 = vst.msk [vmem:[#allocation2 + $0x160] sm:$0xff] %vm924, %v840
  %970 = vst.msk [vmem:[#allocation2 + $0x168] sm:$0xff] %vm924, %v841
  %971 = vst.msk [vmem:[#allocation2 + $0x170] sm:$0xff] %vm924, %v842
  %972 = vst.msk [vmem:[#allocation2 + $0x178] sm:$0xff] %vm924, %v843
  %973 = vst.msk [vmem:[#allocation2 + $0x180] sm:$0xff] %vm924, %v844
  %974 = vst.msk [vmem:[#allocation2 + $0x188] sm:$0xff] %vm924, %v845
  %975 = vst.msk [vmem:[#allocation2 + $0x190] sm:$0xff] %vm924, %v846
  %976 = vst.msk [vmem:[#allocation2 + $0x198] sm:$0xff] %vm924, %v847
  %977 = vst.msk [vmem:[#allocation2 + $0x1a0] sm:$0xff] %vm924, %v848
  %978 = vst.msk [vmem:[#allocation2 + $0x1a8] sm:$0xff] %vm924, %v849
  %979 = vst.msk [vmem:[#allocation2 + $0x1b0] sm:$0xff] %vm924, %v850
  %980 = vst.msk [vmem:[#allocation2 + $0x1b8] sm:$0xff] %vm924, %v851
  %981 = vst.msk [vmem:[#allocation2 + $0x1c0] sm:$0xff] %vm924, %v852
  %982 = vst.msk [vmem:[#allocation2 + $0x1c8] sm:$0xff] %vm924, %v853
  %983 = vst.msk [vmem:[#allocation2 + $0x1d0] sm:$0xff] %vm924, %v854
  %984 = vst.msk [vmem:[#allocation2 + $0x1d8] sm:$0xff] %vm924, %v855
  %985 = vst.msk [vmem:[#allocation2 + $0x1e0] sm:$0xff] %vm924, %v856
  %986 = vst.msk [vmem:[#allocation2 + $0x1e8] sm:$0xff] %vm924, %v857
  %987 = vst.msk [vmem:[#allocation2 + $0x1f0] sm:$0xff] %vm924, %v858
  %988 = vst.msk [vmem:[#allocation2 + $0x1f8] sm:$0xff] %vm924, %v859
  %989 = vst.msk [vmem:[#allocation2 + $0x200] sm:$0xff] %vm924, %v860
  %990 = vst.msk [vmem:[#allocation2 + $0x208] sm:$0xff] %vm924, %v861
  %991 = vst.msk [vmem:[#allocation2 + $0x210] sm:$0xff] %vm924, %v862
  %992 = vst.msk [vmem:[#allocation2 + $0x218] sm:$0xff] %vm924, %v863
  %993 = vst.msk [vmem:[#allocation2 + $0x220] sm:$0xff] %vm924, %v864
  %994 = vst.msk [vmem:[#allocation2 + $0x228] sm:$0xff] %vm924, %v865
  %995 = vst.msk [vmem:[#allocation2 + $0x230] sm:$0xff] %vm924, %v866
  %996 = vst.msk [vmem:[#allocation2 + $0x238] sm:$0xff] %vm924, %v867
  %997 = vst.msk [vmem:[#allocation2 + $0x240] sm:$0xff] %vm924, %v868
  %998 = vst.msk [vmem:[#allocation2 + $0x248] sm:$0xff] %vm924, %v869
  %999 = vst.msk [vmem:[#allocation2 + $0x250] sm:$0xff] %vm924, %v870
  %1000 = vst.msk [vmem:[#allocation2 + $0x258] sm:$0xff] %vm924, %v871
  %1001 = vst.msk [vmem:[#allocation2 + $0x260] sm:$0xff] %vm924, %v872
  %1002 = vst.msk [vmem:[#allocation2 + $0x268] sm:$0xff] %vm924, %v873
  %1003 = vst.msk [vmem:[#allocation2 + $0x270] sm:$0xff] %vm924, %v874
  %1004 = vst.msk [vmem:[#allocation2 + $0x278] sm:$0xff] %vm924, %v875
  %1005 = vst.msk [vmem:[#allocation2 + $0x280] sm:$0xff] %vm924, %v876
  %1006 = vst.msk [vmem:[#allocation2 + $0x288] sm:$0xff] %vm924, %v877
  %1007 = vst.msk [vmem:[#allocation2 + $0x290] sm:$0xff] %vm924, %v878
  %1008 = vst.msk [vmem:[#allocation2 + $0x298] sm:$0xff] %vm924, %v879
  %1009 = vst.msk [vmem:[#allocation2 + $0x2a0] sm:$0xff] %vm924, %v880
  %1010 = vst.msk [vmem:[#allocation2 + $0x2a8] sm:$0xff] %vm924, %v881
  %1011 = vst.msk [vmem:[#allocation2 + $0x2b0] sm:$0xff] %vm924, %v882
  %1012 = vst.msk [vmem:[#allocation2 + $0x2b8] sm:$0xff] %vm924, %v883
  %1013 = vst.msk [vmem:[#allocation2 + $0x2c0] sm:$0xff] %vm924, %v884
  %1014 = vst.msk [vmem:[#allocation2 + $0x2c8] sm:$0xff] %vm924, %v885
  %1015 = vst.msk [vmem:[#allocation2 + $0x2d0] sm:$0xff] %vm924, %v886
  %1016 = vst.msk [vmem:[#allocation2 + $0x2d8] sm:$0xff] %vm924, %v887
  %1017 = vst.msk [vmem:[#allocation2 + $0x2e0] sm:$0xff] %vm924, %v888
  %1018 = vst.msk [vmem:[#allocation2 + $0x2e8] sm:$0xff] %vm924, %v889
  %1019 = vst.msk [vmem:[#allocation2 + $0x2f0] sm:$0xff] %vm924, %v890
  %1020 = vst.msk [vmem:[#allocation2 + $0x2f8] sm:$0xff] %vm924, %v891
  %1021 = vst.msk [vmem:[#allocation2 + $0x300] sm:$0xff] %vm924, %v892
  %1022 = vst.msk [vmem:[#allocation2 + $0x308] sm:$0xff] %vm924, %v893
  %1023 = vst.msk [vmem:[#allocation2 + $0x310] sm:$0xff] %vm924, %v894
  %1024 = vst.msk [vmem:[#allocation2 + $0x318] sm:$0xff] %vm924, %v895
  %1025 = vst.msk [vmem:[#allocation2 + $0x320] sm:$0xff] %vm924, %v896
  %1026 = vst.msk [vmem:[#allocation2 + $0x328] sm:$0xff] %vm924, %v897
  %1027 = vst.msk [vmem:[#allocation2 + $0x330] sm:$0xff] %vm924, %v898
  %1028 = vst.msk [vmem:[#allocation2 + $0x338] sm:$0xff] %vm924, %v899
  %1029 = vst.msk [vmem:[#allocation2 + $0x340] sm:$0xff] %vm924, %v900
  %1030 = vst.msk [vmem:[#allocation2 + $0x348] sm:$0xff] %vm924, %v901
  %1031 = vst.msk [vmem:[#allocation2 + $0x350] sm:$0xff] %vm924, %v902
  %1032 = vst.msk [vmem:[#allocation2 + $0x358] sm:$0xff] %vm924, %v903
  %1033 = vst.msk [vmem:[#allocation2 + $0x360] sm:$0xff] %vm924, %v904
  %1034 = vst.msk [vmem:[#allocation2 + $0x368] sm:$0xff] %vm924, %v905
  %1035 = vst.msk [vmem:[#allocation2 + $0x370] sm:$0xff] %vm924, %v906
  %1036 = vst.msk [vmem:[#allocation2 + $0x378] sm:$0xff] %vm924, %v907
  %1037 = vst.msk [vmem:[#allocation2 + $0x380] sm:$0xff] %vm924, %v908
  %1038 = vst.msk [vmem:[#allocation2 + $0x388] sm:$0xff] %vm924, %v909
  %1039 = vst.msk [vmem:[#allocation2 + $0x390] sm:$0xff] %vm924, %v910
  %1040 = vst.msk [vmem:[#allocation2 + $0x398] sm:$0xff] %vm924, %v911
  %1041 = vst.msk [vmem:[#allocation2 + $0x3a0] sm:$0xff] %vm924, %v912
  %1042 = vst.msk [vmem:[#allocation2 + $0x3a8] sm:$0xff] %vm924, %v913
  %1043 = vst.msk [vmem:[#allocation2 + $0x3b0] sm:$0xff] %vm924, %v914
  %1044 = vst.msk [vmem:[#allocation2 + $0x3b8] sm:$0xff] %vm924, %v915
  %1045 = vst.msk [vmem:[#allocation2 + $0x3c0] sm:$0xff] %vm924, %v916
  %1046 = vst.msk [vmem:[#allocation2 + $0x3c8] sm:$0xff] %vm924, %v917
  %1047 = vst.msk [vmem:[#allocation2 + $0x3d0] sm:$0xff] %vm924, %v918
  %1048 = vst.msk [vmem:[#allocation2 + $0x3d8] sm:$0xff] %vm924, %v919
  %1049 = vst.msk [vmem:[#allocation2 + $0x3e0] sm:$0xff] %vm924, %v920
  %1050 = vst.msk [vmem:[#allocation2 + $0x3e8] sm:$0xff] %vm924, %v921
  %1051 = vst.msk [vmem:[#allocation2 + $0x3f0] sm:$0xff] %vm924, %v922
  %1052 = vst.msk [vmem:[#allocation2 + $0x3f8] sm:$0xff] %vm924, %v923
  %1053 = vst.msk [vmem:[#allocation4] sm:$0xff] %vm924, 0.0
  %1054 = vst.msk [vmem:[#allocation4 + $0x8] sm:$0xff] %vm924, 0.0
  %1055 = vst.msk [vmem:[#allocation5] sm:$0xff] %vm924, 0.0
  %1056 = vst.msk [vmem:[#allocation5 + $0x8] sm:$0xff] %vm924, 0.0
  // While loop
  $region30: #{median_gcn_forward.1} parent=0 // loop_pre_header
    _
  $region31: #{median_gcn_forward.1} parent=0 // loop_header
    %s1058 = sphi 0, %s1060
    %p1059 = scmp.ge.s32.totalorder %s1058, %s28
  $region32: #{median_gcn_forward.1} parent=0 // loop_header_branch
    %1062 = sbr.rel (%p1059) target = $region36
  $region33: #{median_gcn_forward.1} parent=0 // loop_body
    %v1063 = vld [vmem:[#allocation2] sm:$0xff]
    %v1064 = vld [vmem:[#allocation2 + $0x8] sm:$0xff]
    %v1065 = vld [vmem:[#allocation2 + $0x10] sm:$0xff]
    %v1066 = vld [vmem:[#allocation2 + $0x18] sm:$0xff]
    %v1067 = vld [vmem:[#allocation2 + $0x20] sm:$0xff]
    %v1068 = vld [vmem:[#allocation2 + $0x28] sm:$0xff]
    %v1069 = vld [vmem:[#allocation2 + $0x30] sm:$0xff]
    %v1070 = vld [vmem:[#allocation2 + $0x38] sm:$0xff]
    %v1071 = vld [vmem:[#allocation2 + $0x40] sm:$0xff]
    %v1072 = vld [vmem:[#allocation2 + $0x48] sm:$0xff]
    %v1073 = vld [vmem:[#allocation2 + $0x50] sm:$0xff]
    %v1074 = vld [vmem:[#allocation2 + $0x58] sm:$0xff]
    %v1075 = vld [vmem:[#allocation2 + $0x60] sm:$0xff]
    %v1076 = vld [vmem:[#allocation2 + $0x68] sm:$0xff]
    %v1077 = vld [vmem:[#allocation2 + $0x70] sm:$0xff]
    %v1078 = vld [vmem:[#allocation2 + $0x78] sm:$0xff]
    %v1079 = vld [vmem:[#allocation2 + $0x80] sm:$0xff]
    %v1080 = vld [vmem:[#allocation2 + $0x88] sm:$0xff]
    %v1081 = vld [vmem:[#allocation2 + $0x90] sm:$0xff]
    %v1082 = vld [vmem:[#allocation2 + $0x98] sm:$0xff]
    %v1083 = vld [vmem:[#allocation2 + $0xa0] sm:$0xff]
    %v1084 = vld [vmem:[#allocation2 + $0xa8] sm:$0xff]
    %v1085 = vld [vmem:[#allocation2 + $0xb0] sm:$0xff]
    %v1086 = vld [vmem:[#allocation2 + $0xb8] sm:$0xff]
    %v1087 = vld [vmem:[#allocation2 + $0xc0] sm:$0xff]
    %v1088 = vld [vmem:[#allocation2 + $0xc8] sm:$0xff]
    %v1089 = vld [vmem:[#allocation2 + $0xd0] sm:$0xff]
    %v1090 = vld [vmem:[#allocation2 + $0xd8] sm:$0xff]
    %v1091 = vld [vmem:[#allocation2 + $0xe0] sm:$0xff]
    %v1092 = vld [vmem:[#allocation2 + $0xe8] sm:$0xff]
    %v1093 = vld [vmem:[#allocation2 + $0xf0] sm:$0xff]
    %v1094 = vld [vmem:[#allocation2 + $0xf8] sm:$0xff]
    %v1095 = vld [vmem:[#allocation2 + $0x100] sm:$0xff]
    %v1096 = vld [vmem:[#allocation2 + $0x108] sm:$0xff]
    %v1097 = vld [vmem:[#allocation2 + $0x110] sm:$0xff]
    %v1098 = vld [vmem:[#allocation2 + $0x118] sm:$0xff]
    %v1099 = vld [vmem:[#allocation2 + $0x120] sm:$0xff]
    %v1100 = vld [vmem:[#allocation2 + $0x128] sm:$0xff]
    %v1101 = vld [vmem:[#allocation2 + $0x130] sm:$0xff]
    %v1102 = vld [vmem:[#allocation2 + $0x138] sm:$0xff]
    %v1103 = vld [vmem:[#allocation2 + $0x140] sm:$0xff]
    %v1104 = vld [vmem:[#allocation2 + $0x148] sm:$0xff]
    %v1105 = vld [vmem:[#allocation2 + $0x150] sm:$0xff]
    %v1106 = vld [vmem:[#allocation2 + $0x158] sm:$0xff]
    %v1107 = vld [vmem:[#allocation2 + $0x160] sm:$0xff]
    %v1108 = vld [vmem:[#allocation2 + $0x168] sm:$0xff]
    %v1109 = vld [vmem:[#allocation2 + $0x170] sm:$0xff]
    %v1110 = vld [vmem:[#allocation2 + $0x178] sm:$0xff]
    %v1111 = vld [vmem:[#allocation2 + $0x180] sm:$0xff]
    %v1112 = vld [vmem:[#allocation2 + $0x188] sm:$0xff]
    %v1113 = vld [vmem:[#allocation2 + $0x190] sm:$0xff]
    %v1114 = vld [vmem:[#allocation2 + $0x198] sm:$0xff]
    %v1115 = vld [vmem:[#allocation2 + $0x1a0] sm:$0xff]
    %v1116 = vld [vmem:[#allocation2 + $0x1a8] sm:$0xff]
    %v1117 = vld [vmem:[#allocation2 + $0x1b0] sm:$0xff]
    %v1118 = vld [vmem:[#allocation2 + $0x1b8] sm:$0xff]
    %v1119 = vld [vmem:[#allocation2 + $0x1c0] sm:$0xff]
    %v1120 = vld [vmem:[#allocation2 + $0x1c8] sm:$0xff]
    %v1121 = vld [vmem:[#allocation2 + $0x1d0] sm:$0xff]
    %v1122 = vld [vmem:[#allocation2 + $0x1d8] sm:$0xff]
    %v1123 = vld [vmem:[#allocation2 + $0x1e0] sm:$0xff]
    %v1124 = vld [vmem:[#allocation2 + $0x1e8] sm:$0xff]
    %v1125 = vld [vmem:[#allocation2 + $0x1f0] sm:$0xff]
    %v1126 = vld [vmem:[#allocation2 + $0x1f8] sm:$0xff]
    %v1127 = vld [vmem:[#allocation2 + $0x200] sm:$0xff]
    %v1128 = vld [vmem:[#allocation2 + $0x208] sm:$0xff]
    %v1129 = vld [vmem:[#allocation2 + $0x210] sm:$0xff]
    %v1130 = vld [vmem:[#allocation2 + $0x218] sm:$0xff]
    %v1131 = vld [vmem:[#allocation2 + $0x220] sm:$0xff]
    %v1132 = vld [vmem:[#allocation2 + $0x228] sm:$0xff]
    %v1133 = vld [vmem:[#allocation2 + $0x230] sm:$0xff]
    %v1134 = vld [vmem:[#allocation2 + $0x238] sm:$0xff]
    %v1135 = vld [vmem:[#allocation2 + $0x240] sm:$0xff]
    %v1136 = vld [vmem:[#allocation2 + $0x248] sm:$0xff]
    %v1137 = vld [vmem:[#allocation2 + $0x250] sm:$0xff]
    %v1138 = vld [vmem:[#allocation2 + $0x258] sm:$0xff]
    %v1139 = vld [vmem:[#allocation2 + $0x260] sm:$0xff]
    %v1140 = vld [vmem:[#allocation2 + $0x268] sm:$0xff]
    %v1141 = vld [vmem:[#allocation2 + $0x270] sm:$0xff]
    %v1142 = vld [vmem:[#allocation2 + $0x278] sm:$0xff]
    %v1143 = vld [vmem:[#allocation2 + $0x280] sm:$0xff]
    %v1144 = vld [vmem:[#allocation2 + $0x288] sm:$0xff]
    %v1145 = vld [vmem:[#allocation2 + $0x290] sm:$0xff]
    %v1146 = vld [vmem:[#allocation2 + $0x298] sm:$0xff]
    %v1147 = vld [vmem:[#allocation2 + $0x2a0] sm:$0xff]
    %v1148 = vld [vmem:[#allocation2 + $0x2a8] sm:$0xff]
    %v1149 = vld [vmem:[#allocation2 + $0x2b0] sm:$0xff]
    %v1150 = vld [vmem:[#allocation2 + $0x2b8] sm:$0xff]
    %v1151 = vld [vmem:[#allocation2 + $0x2c0] sm:$0xff]
    %v1152 = vld [vmem:[#allocation2 + $0x2c8] sm:$0xff]
    %v1153 = vld [vmem:[#allocation2 + $0x2d0] sm:$0xff]
    %v1154 = vld [vmem:[#allocation2 + $0x2d8] sm:$0xff]
    %v1155 = vld [vmem:[#allocation2 + $0x2e0] sm:$0xff]
    %v1156 = vld [vmem:[#allocation2 + $0x2e8] sm:$0xff]
    %v1157 = vld [vmem:[#allocation2 + $0x2f0] sm:$0xff]
    %v1158 = vld [vmem:[#allocation2 + $0x2f8] sm:$0xff]
    %v1159 = vld [vmem:[#allocation2 + $0x300] sm:$0xff]
    %v1160 = vld [vmem:[#allocation2 + $0x308] sm:$0xff]
    %v1161 = vld [vmem:[#allocation2 + $0x310] sm:$0xff]
    %v1162 = vld [vmem:[#allocation2 + $0x318] sm:$0xff]
    %v1163 = vld [vmem:[#allocation2 + $0x320] sm:$0xff]
    %v1164 = vld [vmem:[#allocation2 + $0x328] sm:$0xff]
    %v1165 = vld [vmem:[#allocation2 + $0x330] sm:$0xff]
    %v1166 = vld [vmem:[#allocation2 + $0x338] sm:$0xff]
    %v1167 = vld [vmem:[#allocation2 + $0x340] sm:$0xff]
    %v1168 = vld [vmem:[#allocation2 + $0x348] sm:$0xff]
    %v1169 = vld [vmem:[#allocation2 + $0x350] sm:$0xff]
    %v1170 = vld [vmem:[#allocation2 + $0x358] sm:$0xff]
    %v1171 = vld [vmem:[#allocation2 + $0x360] sm:$0xff]
    %v1172 = vld [vmem:[#allocation2 + $0x368] sm:$0xff]
    %v1173 = vld [vmem:[#allocation2 + $0x370] sm:$0xff]
    %v1174 = vld [vmem:[#allocation2 + $0x378] sm:$0xff]
    %v1175 = vld [vmem:[#allocation2 + $0x380] sm:$0xff]
    %v1176 = vld [vmem:[#allocation2 + $0x388] sm:$0xff]
    %v1177 = vld [vmem:[#allocation2 + $0x390] sm:$0xff]
    %v1178 = vld [vmem:[#allocation2 + $0x398] sm:$0xff]
    %v1179 = vld [vmem:[#allocation2 + $0x3a0] sm:$0xff]
    %v1180 = vld [vmem:[#allocation2 + $0x3a8] sm:$0xff]
    %v1181 = vld [vmem:[#allocation2 + $0x3b0] sm:$0xff]
    %v1182 = vld [vmem:[#allocation2 + $0x3b8] sm:$0xff]
    %v1183 = vld [vmem:[#allocation2 + $0x3c0] sm:$0xff]
    %v1184 = vld [vmem:[#allocation2 + $0x3c8] sm:$0xff]
    %v1185 = vld [vmem:[#allocation2 + $0x3d0] sm:$0xff]
    %v1186 = vld [vmem:[#allocation2 + $0x3d8] sm:$0xff]
    %v1187 = vld [vmem:[#allocation2 + $0x3e0] sm:$0xff]
    %v1188 = vld [vmem:[#allocation2 + $0x3e8] sm:$0xff]
    %v1189 = vld [vmem:[#allocation2 + $0x3f0] sm:$0xff]
    %v1190 = vld [vmem:[#allocation2 + $0x3f8] sm:$0xff]
    %v1191 = vsel %vm924, %v1063, inf
    %v1192 = vsel %vm924, %v1064, inf
    %v1193 = vmin.f32 %v1191, %v1192
    %v1194 = vsel %vm924, %v1065, inf
    %v1195 = vmin.f32 %v1193, %v1194
    %v1196 = vsel %vm924, %v1066, inf
    %v1197 = vmin.f32 %v1195, %v1196
    %v1198 = vsel %vm924, %v1067, inf
    %v1199 = vmin.f32 %v1197, %v1198
    %v1200 = vsel %vm924, %v1068, inf
    %v1201 = vmin.f32 %v1199, %v1200
    %v1202 = vsel %vm924, %v1069, inf
    %v1203 = vmin.f32 %v1201, %v1202
    %v1204 = vsel %vm924, %v1070, inf
    %v1205 = vmin.f32 %v1203, %v1204
    %v1206 = vrot.slane %v1205, 4
    %v1207 = vmin.f32 %v1205, %v1206
    %v1208 = vrot.slane %v1207, 2
    %v1209 = vmin.f32 %v1207, %v1208
    %v1210 = vrot.slane %v1209, 1
    %v1211 = vmin.f32 %v1209, %v1210
    %v1212 = vsel %vm924, %v1071, inf
    %v1213 = vsel %vm924, %v1072, inf
    %v1214 = vmin.f32 %v1212, %v1213
    %v1215 = vsel %vm924, %v1073, inf
    %v1216 = vmin.f32 %v1214, %v1215
    %v1217 = vsel %vm924, %v1074, inf
    %v1218 = vmin.f32 %v1216, %v1217
    %v1219 = vsel %vm924, %v1075, inf
    %v1220 = vmin.f32 %v1218, %v1219
    %v1221 = vsel %vm924, %v1076, inf
    %v1222 = vmin.f32 %v1220, %v1221
    %v1223 = vsel %vm924, %v1077, inf
    %v1224 = vmin.f32 %v1222, %v1223
    %v1225 = vsel %vm924, %v1078, inf
    %v1226 = vmin.f32 %v1224, %v1225
    %v1227 = vrot.slane %v1226, 4
    %v1228 = vmin.f32 %v1226, %v1227
    %v1229 = vrot.slane %v1228, 2
    %v1230 = vmin.f32 %v1228, %v1229
    %v1231 = vrot.slane %v1230, 1
    %v1232 = vmin.f32 %v1230, %v1231
    %v1233 = vsel %vm924, %v1079, inf
    %v1234 = vsel %vm924, %v1080, inf
    %v1235 = vmin.f32 %v1233, %v1234
    %v1236 = vsel %vm924, %v1081, inf
    %v1237 = vmin.f32 %v1235, %v1236
    %v1238 = vsel %vm924, %v1082, inf
    %v1239 = vmin.f32 %v1237, %v1238
    %v1240 = vsel %vm924, %v1083, inf
    %v1241 = vmin.f32 %v1239, %v1240
    %v1242 = vsel %vm924, %v1084, inf
    %v1243 = vmin.f32 %v1241, %v1242
    %v1244 = vsel %vm924, %v1085, inf
    %v1245 = vmin.f32 %v1243, %v1244
    %v1246 = vsel %vm924, %v1086, inf
    %v1247 = vmin.f32 %v1245, %v1246
    %v1248 = vrot.slane %v1247, 4
    %v1249 = vmin.f32 %v1247, %v1248
    %v1250 = vrot.slane %v1249, 2
    %v1251 = vmin.f32 %v1249, %v1250
    %v1252 = vrot.slane %v1251, 1
    %v1253 = vmin.f32 %v1251, %v1252
    %v1254 = vsel %vm924, %v1087, inf
    %v1255 = vsel %vm924, %v1088, inf
    %v1256 = vmin.f32 %v1254, %v1255
    %v1257 = vsel %vm924, %v1089, inf
    %v1258 = vmin.f32 %v1256, %v1257
    %v1259 = vsel %vm924, %v1090, inf
    %v1260 = vmin.f32 %v1258, %v1259
    %v1261 = vsel %vm924, %v1091, inf
    %v1262 = vmin.f32 %v1260, %v1261
    %v1263 = vsel %vm924, %v1092, inf
    %v1264 = vmin.f32 %v1262, %v1263
    %v1265 = vsel %vm924, %v1093, inf
    %v1266 = vmin.f32 %v1264, %v1265
    %v1267 = vsel %vm924, %v1094, inf
    %v1268 = vmin.f32 %v1266, %v1267
    %v1269 = vrot.slane %v1268, 4
    %v1270 = vmin.f32 %v1268, %v1269
    %v1271 = vrot.slane %v1270, 2
    %v1272 = vmin.f32 %v1270, %v1271
    %v1273 = vrot.slane %v1272, 1
    %v1274 = vmin.f32 %v1272, %v1273
    %v1275 = vsel %vm924, %v1095, inf
    %v1276 = vsel %vm924, %v1096, inf
    %v1277 = vmin.f32 %v1275, %v1276
    %v1278 = vsel %vm924, %v1097, inf
    %v1279 = vmin.f32 %v1277, %v1278
    %v1280 = vsel %vm924, %v1098, inf
    %v1281 = vmin.f32 %v1279, %v1280
    %v1282 = vsel %vm924, %v1099, inf
    %v1283 = vmin.f32 %v1281, %v1282
    %v1284 = vsel %vm924, %v1100, inf
    %v1285 = vmin.f32 %v1283, %v1284
    %v1286 = vsel %vm924, %v1101, inf
    %v1287 = vmin.f32 %v1285, %v1286
    %v1288 = vsel %vm924, %v1102, inf
    %v1289 = vmin.f32 %v1287, %v1288
    %v1290 = vrot.slane %v1289, 4
    %v1291 = vmin.f32 %v1289, %v1290
    %v1292 = vrot.slane %v1291, 2
    %v1293 = vmin.f32 %v1291, %v1292
    %v1294 = vrot.slane %v1293, 1
    %v1295 = vmin.f32 %v1293, %v1294
    %v1296 = vsel %vm924, %v1103, inf
    %v1297 = vsel %vm924, %v1104, inf
    %v1298 = vmin.f32 %v1296, %v1297
    %v1299 = vsel %vm924, %v1105, inf
    %v1300 = vmin.f32 %v1298, %v1299
    %v1301 = vsel %vm924, %v1106, inf
    %v1302 = vmin.f32 %v1300, %v1301
    %v1303 = vsel %vm924, %v1107, inf
    %v1304 = vmin.f32 %v1302, %v1303
    %v1305 = vsel %vm924, %v1108, inf
    %v1306 = vmin.f32 %v1304, %v1305
    %v1307 = vsel %vm924, %v1109, inf
    %v1308 = vmin.f32 %v1306, %v1307
    %v1309 = vsel %vm924, %v1110, inf
    %v1310 = vmin.f32 %v1308, %v1309
    %v1311 = vrot.slane %v1310, 4
    %v1312 = vmin.f32 %v1310, %v1311
    %v1313 = vrot.slane %v1312, 2
    %v1314 = vmin.f32 %v1312, %v1313
    %v1315 = vrot.slane %v1314, 1
    %v1316 = vmin.f32 %v1314, %v1315
    %v1317 = vsel %vm924, %v1111, inf
    %v1318 = vsel %vm924, %v1112, inf
    %v1319 = vmin.f32 %v1317, %v1318
    %v1320 = vsel %vm924, %v1113, inf
    %v1321 = vmin.f32 %v1319, %v1320
    %v1322 = vsel %vm924, %v1114, inf
    %v1323 = vmin.f32 %v1321, %v1322
    %v1324 = vsel %vm924, %v1115, inf
    %v1325 = vmin.f32 %v1323, %v1324
    %v1326 = vsel %vm924, %v1116, inf
    %v1327 = vmin.f32 %v1325, %v1326
    %v1328 = vsel %vm924, %v1117, inf
    %v1329 = vmin.f32 %v1327, %v1328
    %v1330 = vsel %vm924, %v1118, inf
    %v1331 = vmin.f32 %v1329, %v1330
    %v1332 = vrot.slane %v1331, 4
    %v1333 = vmin.f32 %v1331, %v1332
    %v1334 = vrot.slane %v1333, 2
    %v1335 = vmin.f32 %v1333, %v1334
    %v1336 = vrot.slane %v1335, 1
    %v1337 = vmin.f32 %v1335, %v1336
    %v1338 = vsel %vm924, %v1119, inf
    %v1339 = vsel %vm924, %v1120, inf
    %v1340 = vmin.f32 %v1338, %v1339
    %v1341 = vsel %vm924, %v1121, inf
    %v1342 = vmin.f32 %v1340, %v1341
    %v1343 = vsel %vm924, %v1122, inf
    %v1344 = vmin.f32 %v1342, %v1343
    %v1345 = vsel %vm924, %v1123, inf
    %v1346 = vmin.f32 %v1344, %v1345
    %v1347 = vsel %vm924, %v1124, inf
    %v1348 = vmin.f32 %v1346, %v1347
    %v1349 = vsel %vm924, %v1125, inf
    %v1350 = vmin.f32 %v1348, %v1349
    %v1351 = vsel %vm924, %v1126, inf
    %v1352 = vmin.f32 %v1350, %v1351
    %v1353 = vrot.slane %v1352, 4
    %v1354 = vmin.f32 %v1352, %v1353
    %v1355 = vrot.slane %v1354, 2
    %v1356 = vmin.f32 %v1354, %v1355
    %v1357 = vrot.slane %v1356, 1
    %v1358 = vmin.f32 %v1356, %v1357
    %v1359 = vsel %vm924, %v1127, inf
    %v1360 = vsel %vm924, %v1128, inf
    %v1361 = vmin.f32 %v1359, %v1360
    %v1362 = vsel %vm924, %v1129, inf
    %v1363 = vmin.f32 %v1361, %v1362
    %v1364 = vsel %vm924, %v1130, inf
    %v1365 = vmin.f32 %v1363, %v1364
    %v1366 = vsel %vm924, %v1131, inf
    %v1367 = vmin.f32 %v1365, %v1366
    %v1368 = vsel %vm924, %v1132, inf
    %v1369 = vmin.f32 %v1367, %v1368
    %v1370 = vsel %vm924, %v1133, inf
    %v1371 = vmin.f32 %v1369, %v1370
    %v1372 = vsel %vm924, %v1134, inf
    %v1373 = vmin.f32 %v1371, %v1372
    %v1374 = vrot.slane %v1373, 4
    %v1375 = vmin.f32 %v1373, %v1374
    %v1376 = vrot.slane %v1375, 2
    %v1377 = vmin.f32 %v1375, %v1376
    %v1378 = vrot.slane %v1377, 1
    %v1379 = vmin.f32 %v1377, %v1378
    %v1380 = vsel %vm924, %v1135, inf
    %v1381 = vsel %vm924, %v1136, inf
    %v1382 = vmin.f32 %v1380, %v1381
    %v1383 = vsel %vm924, %v1137, inf
    %v1384 = vmin.f32 %v1382, %v1383
    %v1385 = vsel %vm924, %v1138, inf
    %v1386 = vmin.f32 %v1384, %v1385
    %v1387 = vsel %vm924, %v1139, inf
    %v1388 = vmin.f32 %v1386, %v1387
    %v1389 = vsel %vm924, %v1140, inf
    %v1390 = vmin.f32 %v1388, %v1389
    %v1391 = vsel %vm924, %v1141, inf
    %v1392 = vmin.f32 %v1390, %v1391
    %v1393 = vsel %vm924, %v1142, inf
    %v1394 = vmin.f32 %v1392, %v1393
    %v1395 = vrot.slane %v1394, 4
    %v1396 = vmin.f32 %v1394, %v1395
    %v1397 = vrot.slane %v1396, 2
    %v1398 = vmin.f32 %v1396, %v1397
    %v1399 = vrot.slane %v1398, 1
    %v1400 = vmin.f32 %v1398, %v1399
    %v1401 = vsel %vm924, %v1143, inf
    %v1402 = vsel %vm924, %v1144, inf
    %v1403 = vmin.f32 %v1401, %v1402
    %v1404 = vsel %vm924, %v1145, inf
    %v1405 = vmin.f32 %v1403, %v1404
    %v1406 = vsel %vm924, %v1146, inf
    %v1407 = vmin.f32 %v1405, %v1406
    %v1408 = vsel %vm924, %v1147, inf
    %v1409 = vmin.f32 %v1407, %v1408
    %v1410 = vsel %vm924, %v1148, inf
    %v1411 = vmin.f32 %v1409, %v1410
    %v1412 = vsel %vm924, %v1149, inf
    %v1413 = vmin.f32 %v1411, %v1412
    %v1414 = vsel %vm924, %v1150, inf
    %v1415 = vmin.f32 %v1413, %v1414
    %v1416 = vrot.slane %v1415, 4
    %v1417 = vmin.f32 %v1415, %v1416
    %v1418 = vrot.slane %v1417, 2
    %v1419 = vmin.f32 %v1417, %v1418
    %v1420 = vrot.slane %v1419, 1
    %v1421 = vmin.f32 %v1419, %v1420
    %v1422 = vsel %vm924, %v1151, inf
    %v1423 = vsel %vm924, %v1152, inf
    %v1424 = vmin.f32 %v1422, %v1423
    %v1425 = vsel %vm924, %v1153, inf
    %v1426 = vmin.f32 %v1424, %v1425
    %v1427 = vsel %vm924, %v1154, inf
    %v1428 = vmin.f32 %v1426, %v1427
    %v1429 = vsel %vm924, %v1155, inf
    %v1430 = vmin.f32 %v1428, %v1429
    %v1431 = vsel %vm924, %v1156, inf
    %v1432 = vmin.f32 %v1430, %v1431
    %v1433 = vsel %vm924, %v1157, inf
    %v1434 = vmin.f32 %v1432, %v1433
    %v1435 = vsel %vm924, %v1158, inf
    %v1436 = vmin.f32 %v1434, %v1435
    %v1437 = vrot.slane %v1436, 4
    %v1438 = vmin.f32 %v1436, %v1437
    %v1439 = vrot.slane %v1438, 2
    %v1440 = vmin.f32 %v1438, %v1439
    %v1441 = vrot.slane %v1440, 1
    %v1442 = vmin.f32 %v1440, %v1441
    %v1443 = vsel %vm924, %v1159, inf
    %v1444 = vsel %vm924, %v1160, inf
    %v1445 = vmin.f32 %v1443, %v1444
    %v1446 = vsel %vm924, %v1161, inf
    %v1447 = vmin.f32 %v1445, %v1446
    %v1448 = vsel %vm924, %v1162, inf
    %v1449 = vmin.f32 %v1447, %v1448
    %v1450 = vsel %vm924, %v1163, inf
    %v1451 = vmin.f32 %v1449, %v1450
    %v1452 = vsel %vm924, %v1164, inf
    %v1453 = vmin.f32 %v1451, %v1452
    %v1454 = vsel %vm924, %v1165, inf
    %v1455 = vmin.f32 %v1453, %v1454
    %v1456 = vsel %vm924, %v1166, inf
    %v1457 = vmin.f32 %v1455, %v1456
    %v1458 = vrot.slane %v1457, 4
    %v1459 = vmin.f32 %v1457, %v1458
    %v1460 = vrot.slane %v1459, 2
    %v1461 = vmin.f32 %v1459, %v1460
    %v1462 = vrot.slane %v1461, 1
    %v1463 = vmin.f32 %v1461, %v1462
    %v1464 = vsel %vm924, %v1167, inf
    %v1465 = vsel %vm924, %v1168, inf
    %v1466 = vmin.f32 %v1464, %v1465
    %v1467 = vsel %vm924, %v1169, inf
    %v1468 = vmin.f32 %v1466, %v1467
    %v1469 = vsel %vm924, %v1170, inf
    %v1470 = vmin.f32 %v1468, %v1469
    %v1471 = vsel %vm924, %v1171, inf
    %v1472 = vmin.f32 %v1470, %v1471
    %v1473 = vsel %vm924, %v1172, inf
    %v1474 = vmin.f32 %v1472, %v1473
    %v1475 = vsel %vm924, %v1173, inf
    %v1476 = vmin.f32 %v1474, %v1475
    %v1477 = vsel %vm924, %v1174, inf
    %v1478 = vmin.f32 %v1476, %v1477
    %v1479 = vrot.slane %v1478, 4
    %v1480 = vmin.f32 %v1478, %v1479
    %v1481 = vrot.slane %v1480, 2
    %v1482 = vmin.f32 %v1480, %v1481
    %v1483 = vrot.slane %v1482, 1
    %v1484 = vmin.f32 %v1482, %v1483
    %v1485 = vsel %vm924, %v1175, inf
    %v1486 = vsel %vm924, %v1176, inf
    %v1487 = vmin.f32 %v1485, %v1486
    %v1488 = vsel %vm924, %v1177, inf
    %v1489 = vmin.f32 %v1487, %v1488
    %v1490 = vsel %vm924, %v1178, inf
    %v1491 = vmin.f32 %v1489, %v1490
    %v1492 = vsel %vm924, %v1179, inf
    %v1493 = vmin.f32 %v1491, %v1492
    %v1494 = vsel %vm924, %v1180, inf
    %v1495 = vmin.f32 %v1493, %v1494
    %v1496 = vsel %vm924, %v1181, inf
    %v1497 = vmin.f32 %v1495, %v1496
    %v1498 = vsel %vm924, %v1182, inf
    %v1499 = vmin.f32 %v1497, %v1498
    %v1500 = vrot.slane %v1499, 4
    %v1501 = vmin.f32 %v1499, %v1500
    %v1502 = vrot.slane %v1501, 2
    %v1503 = vmin.f32 %v1501, %v1502
    %v1504 = vrot.slane %v1503, 1
    %v1505 = vmin.f32 %v1503, %v1504
    %v1506 = vsel %vm924, %v1183, inf
    %v1507 = vsel %vm924, %v1184, inf
    %v1508 = vmin.f32 %v1506, %v1507
    %v1509 = vsel %vm924, %v1185, inf
    %v1510 = vmin.f32 %v1508, %v1509
    %v1511 = vsel %vm924, %v1186, inf
    %v1512 = vmin.f32 %v1510, %v1511
    %v1513 = vsel %vm924, %v1187, inf
    %v1514 = vmin.f32 %v1512, %v1513
    %v1515 = vsel %vm924, %v1188, inf
    %v1516 = vmin.f32 %v1514, %v1515
    %v1517 = vsel %vm924, %v1189, inf
    %v1518 = vmin.f32 %v1516, %v1517
    %v1519 = vsel %vm924, %v1190, inf
    %v1520 = vmin.f32 %v1518, %v1519
    %v1521 = vrot.slane %v1520, 4
    %v1522 = vmin.f32 %v1520, %v1521
    %v1523 = vrot.slane %v1522, 2
    %v1524 = vmin.f32 %v1522, %v1523
    %v1525 = vrot.slane %v1524, 1
    %v1526 = vmin.f32 %v1524, %v1525
    %vm1527 = vcmp.eq.f32.partialorder %v1063, %v1211
    %vm1528 = vcmp.eq.f32.partialorder %v1064, %v1211
    %vm1529 = vcmp.eq.f32.partialorder %v1065, %v1211
    %vm1530 = vcmp.eq.f32.partialorder %v1066, %v1211
    %vm1531 = vcmp.eq.f32.partialorder %v1067, %v1211
    %vm1532 = vcmp.eq.f32.partialorder %v1068, %v1211
    %vm1533 = vcmp.eq.f32.partialorder %v1069, %v1211
    %vm1534 = vcmp.eq.f32.partialorder %v1070, %v1211
    %vm1535 = vcmp.eq.f32.partialorder %v1071, %v1232
    %vm1536 = vcmp.eq.f32.partialorder %v1072, %v1232
    %vm1537 = vcmp.eq.f32.partialorder %v1073, %v1232
    %vm1538 = vcmp.eq.f32.partialorder %v1074, %v1232
    %vm1539 = vcmp.eq.f32.partialorder %v1075, %v1232
    %vm1540 = vcmp.eq.f32.partialorder %v1076, %v1232
    %vm1541 = vcmp.eq.f32.partialorder %v1077, %v1232
    %vm1542 = vcmp.eq.f32.partialorder %v1078, %v1232
    %vm1543 = vcmp.eq.f32.partialorder %v1079, %v1253
    %vm1544 = vcmp.eq.f32.partialorder %v1080, %v1253
    %vm1545 = vcmp.eq.f32.partialorder %v1081, %v1253
    %vm1546 = vcmp.eq.f32.partialorder %v1082, %v1253
    %vm1547 = vcmp.eq.f32.partialorder %v1083, %v1253
    %vm1548 = vcmp.eq.f32.partialorder %v1084, %v1253
    %vm1549 = vcmp.eq.f32.partialorder %v1085, %v1253
    %vm1550 = vcmp.eq.f32.partialorder %v1086, %v1253
    %vm1551 = vcmp.eq.f32.partialorder %v1087, %v1274
    %vm1552 = vcmp.eq.f32.partialorder %v1088, %v1274
    %vm1553 = vcmp.eq.f32.partialorder %v1089, %v1274
    %vm1554 = vcmp.eq.f32.partialorder %v1090, %v1274
    %vm1555 = vcmp.eq.f32.partialorder %v1091, %v1274
    %vm1556 = vcmp.eq.f32.partialorder %v1092, %v1274
    %vm1557 = vcmp.eq.f32.partialorder %v1093, %v1274
    %vm1558 = vcmp.eq.f32.partialorder %v1094, %v1274
    %vm1559 = vcmp.eq.f32.partialorder %v1095, %v1295
    %vm1560 = vcmp.eq.f32.partialorder %v1096, %v1295
    %vm1561 = vcmp.eq.f32.partialorder %v1097, %v1295
    %vm1562 = vcmp.eq.f32.partialorder %v1098, %v1295
    %vm1563 = vcmp.eq.f32.partialorder %v1099, %v1295
    %vm1564 = vcmp.eq.f32.partialorder %v1100, %v1295
    %vm1565 = vcmp.eq.f32.partialorder %v1101, %v1295
    %vm1566 = vcmp.eq.f32.partialorder %v1102, %v1295
    %vm1567 = vcmp.eq.f32.partialorder %v1103, %v1316
    %vm1568 = vcmp.eq.f32.partialorder %v1104, %v1316
    %vm1569 = vcmp.eq.f32.partialorder %v1105, %v1316
    %vm1570 = vcmp.eq.f32.partialorder %v1106, %v1316
    %vm1571 = vcmp.eq.f32.partialorder %v1107, %v1316
    %vm1572 = vcmp.eq.f32.partialorder %v1108, %v1316
    %vm1573 = vcmp.eq.f32.partialorder %v1109, %v1316
    %vm1574 = vcmp.eq.f32.partialorder %v1110, %v1316
    %vm1575 = vcmp.eq.f32.partialorder %v1111, %v1337
    %vm1576 = vcmp.eq.f32.partialorder %v1112, %v1337
    %vm1577 = vcmp.eq.f32.partialorder %v1113, %v1337
    %vm1578 = vcmp.eq.f32.partialorder %v1114, %v1337
    %vm1579 = vcmp.eq.f32.partialorder %v1115, %v1337
    %vm1580 = vcmp.eq.f32.partialorder %v1116, %v1337
    %vm1581 = vcmp.eq.f32.partialorder %v1117, %v1337
    %vm1582 = vcmp.eq.f32.partialorder %v1118, %v1337
    %vm1583 = vcmp.eq.f32.partialorder %v1119, %v1358
    %vm1584 = vcmp.eq.f32.partialorder %v1120, %v1358
    %vm1585 = vcmp.eq.f32.partialorder %v1121, %v1358
    %vm1586 = vcmp.eq.f32.partialorder %v1122, %v1358
    %vm1587 = vcmp.eq.f32.partialorder %v1123, %v1358
    %vm1588 = vcmp.eq.f32.partialorder %v1124, %v1358
    %vm1589 = vcmp.eq.f32.partialorder %v1125, %v1358
    %vm1590 = vcmp.eq.f32.partialorder %v1126, %v1358
    %vm1591 = vcmp.eq.f32.partialorder %v1127, %v1379
    %vm1592 = vcmp.eq.f32.partialorder %v1128, %v1379
    %vm1593 = vcmp.eq.f32.partialorder %v1129, %v1379
    %vm1594 = vcmp.eq.f32.partialorder %v1130, %v1379
    %vm1595 = vcmp.eq.f32.partialorder %v1131, %v1379
    %vm1596 = vcmp.eq.f32.partialorder %v1132, %v1379
    %vm1597 = vcmp.eq.f32.partialorder %v1133, %v1379
    %vm1598 = vcmp.eq.f32.partialorder %v1134, %v1379
    %vm1599 = vcmp.eq.f32.partialorder %v1135, %v1400
    %vm1600 = vcmp.eq.f32.partialorder %v1136, %v1400
    %vm1601 = vcmp.eq.f32.partialorder %v1137, %v1400
    %vm1602 = vcmp.eq.f32.partialorder %v1138, %v1400
    %vm1603 = vcmp.eq.f32.partialorder %v1139, %v1400
    %vm1604 = vcmp.eq.f32.partialorder %v1140, %v1400
    %vm1605 = vcmp.eq.f32.partialorder %v1141, %v1400
    %vm1606 = vcmp.eq.f32.partialorder %v1142, %v1400
    %vm1607 = vcmp.eq.f32.partialorder %v1143, %v1421
    %vm1608 = vcmp.eq.f32.partialorder %v1144, %v1421
    %vm1609 = vcmp.eq.f32.partialorder %v1145, %v1421
    %vm1610 = vcmp.eq.f32.partialorder %v1146, %v1421
    %vm1611 = vcmp.eq.f32.partialorder %v1147, %v1421
    %vm1612 = vcmp.eq.f32.partialorder %v1148, %v1421
    %vm1613 = vcmp.eq.f32.partialorder %v1149, %v1421
    %vm1614 = vcmp.eq.f32.partialorder %v1150, %v1421
    %vm1615 = vcmp.eq.f32.partialorder %v1151, %v1442
    %vm1616 = vcmp.eq.f32.partialorder %v1152, %v1442
    %vm1617 = vcmp.eq.f32.partialorder %v1153, %v1442
    %vm1618 = vcmp.eq.f32.partialorder %v1154, %v1442
    %vm1619 = vcmp.eq.f32.partialorder %v1155, %v1442
    %vm1620 = vcmp.eq.f32.partialorder %v1156, %v1442
    %vm1621 = vcmp.eq.f32.partialorder %v1157, %v1442
    %vm1622 = vcmp.eq.f32.partialorder %v1158, %v1442
    %vm1623 = vcmp.eq.f32.partialorder %v1159, %v1463
    %vm1624 = vcmp.eq.f32.partialorder %v1160, %v1463
    %vm1625 = vcmp.eq.f32.partialorder %v1161, %v1463
    %vm1626 = vcmp.eq.f32.partialorder %v1162, %v1463
    %vm1627 = vcmp.eq.f32.partialorder %v1163, %v1463
    %vm1628 = vcmp.eq.f32.partialorder %v1164, %v1463
    %vm1629 = vcmp.eq.f32.partialorder %v1165, %v1463
    %vm1630 = vcmp.eq.f32.partialorder %v1166, %v1463
    %vm1631 = vcmp.eq.f32.partialorder %v1167, %v1484
    %vm1632 = vcmp.eq.f32.partialorder %v1168, %v1484
    %vm1633 = vcmp.eq.f32.partialorder %v1169, %v1484
    %vm1634 = vcmp.eq.f32.partialorder %v1170, %v1484
    %vm1635 = vcmp.eq.f32.partialorder %v1171, %v1484
    %vm1636 = vcmp.eq.f32.partialorder %v1172, %v1484
    %vm1637 = vcmp.eq.f32.partialorder %v1173, %v1484
    %vm1638 = vcmp.eq.f32.partialorder %v1174, %v1484
    %vm1639 = vcmp.eq.f32.partialorder %v1175, %v1505
    %vm1640 = vcmp.eq.f32.partialorder %v1176, %v1505
    %vm1641 = vcmp.eq.f32.partialorder %v1177, %v1505
    %vm1642 = vcmp.eq.f32.partialorder %v1178, %v1505
    %vm1643 = vcmp.eq.f32.partialorder %v1179, %v1505
    %vm1644 = vcmp.eq.f32.partialorder %v1180, %v1505
    %vm1645 = vcmp.eq.f32.partialorder %v1181, %v1505
    %vm1646 = vcmp.eq.f32.partialorder %v1182, %v1505
    %vm1647 = vcmp.eq.f32.partialorder %v1183, %v1526
    %vm1648 = vcmp.eq.f32.partialorder %v1184, %v1526
    %vm1649 = vcmp.eq.f32.partialorder %v1185, %v1526
    %vm1650 = vcmp.eq.f32.partialorder %v1186, %v1526
    %vm1651 = vcmp.eq.f32.partialorder %v1187, %v1526
    %vm1652 = vcmp.eq.f32.partialorder %v1188, %v1526
    %vm1653 = vcmp.eq.f32.partialorder %v1189, %v1526
    %vm1654 = vcmp.eq.f32.partialorder %v1190, %v1526
    %v1655 = vsel %vm1527, 1, 0
    %v1656 = vsel %vm1528, 1, 0
    %v1657 = vsel %vm1529, 1, 0
    %v1658 = vsel %vm1530, 1, 0
    %v1659 = vsel %vm1531, 1, 0
    %v1660 = vsel %vm1532, 1, 0
    %v1661 = vsel %vm1533, 1, 0
    %v1662 = vsel %vm1534, 1, 0
    %v1663 = vsel %vm1535, 1, 0
    %v1664 = vsel %vm1536, 1, 0
    %v1665 = vsel %vm1537, 1, 0
    %v1666 = vsel %vm1538, 1, 0
    %v1667 = vsel %vm1539, 1, 0
    %v1668 = vsel %vm1540, 1, 0
    %v1669 = vsel %vm1541, 1, 0
    %v1670 = vsel %vm1542, 1, 0
    %v1671 = vsel %vm1543, 1, 0
    %v1672 = vsel %vm1544, 1, 0
    %v1673 = vsel %vm1545, 1, 0
    %v1674 = vsel %vm1546, 1, 0
    %v1675 = vsel %vm1547, 1, 0
    %v1676 = vsel %vm1548, 1, 0
    %v1677 = vsel %vm1549, 1, 0
    %v1678 = vsel %vm1550, 1, 0
    %v1679 = vsel %vm1551, 1, 0
    %v1680 = vsel %vm1552, 1, 0
    %v1681 = vsel %vm1553, 1, 0
    %v1682 = vsel %vm1554, 1, 0
    %v1683 = vsel %vm1555, 1, 0
    %v1684 = vsel %vm1556, 1, 0
    %v1685 = vsel %vm1557, 1, 0
    %v1686 = vsel %vm1558, 1, 0
    %v1687 = vsel %vm1559, 1, 0
    %v1688 = vsel %vm1560, 1, 0
    %v1689 = vsel %vm1561, 1, 0
    %v1690 = vsel %vm1562, 1, 0
    %v1691 = vsel %vm1563, 1, 0
    %v1692 = vsel %vm1564, 1, 0
    %v1693 = vsel %vm1565, 1, 0
    %v1694 = vsel %vm1566, 1, 0
    %v1695 = vsel %vm1567, 1, 0
    %v1696 = vsel %vm1568, 1, 0
    %v1697 = vsel %vm1569, 1, 0
    %v1698 = vsel %vm1570, 1, 0
    %v1699 = vsel %vm1571, 1, 0
    %v1700 = vsel %vm1572, 1, 0
    %v1701 = vsel %vm1573, 1, 0
    %v1702 = vsel %vm1574, 1, 0
    %v1703 = vsel %vm1575, 1, 0
    %v1704 = vsel %vm1576, 1, 0
    %v1705 = vsel %vm1577, 1, 0
    %v1706 = vsel %vm1578, 1, 0
    %v1707 = vsel %vm1579, 1, 0
    %v1708 = vsel %vm1580, 1, 0
    %v1709 = vsel %vm1581, 1, 0
    %v1710 = vsel %vm1582, 1, 0
    %v1711 = vsel %vm1583, 1, 0
    %v1712 = vsel %vm1584, 1, 0
    %v1713 = vsel %vm1585, 1, 0
    %v1714 = vsel %vm1586, 1, 0
    %v1715 = vsel %vm1587, 1, 0
    %v1716 = vsel %vm1588, 1, 0
    %v1717 = vsel %vm1589, 1, 0
    %v1718 = vsel %vm1590, 1, 0
    %v1719 = vsel %vm1591, 1, 0
    %v1720 = vsel %vm1592, 1, 0
    %v1721 = vsel %vm1593, 1, 0
    %v1722 = vsel %vm1594, 1, 0
    %v1723 = vsel %vm1595, 1, 0
    %v1724 = vsel %vm1596, 1, 0
    %v1725 = vsel %vm1597, 1, 0
    %v1726 = vsel %vm1598, 1, 0
    %v1727 = vsel %vm1599, 1, 0
    %v1728 = vsel %vm1600, 1, 0
    %v1729 = vsel %vm1601, 1, 0
    %v1730 = vsel %vm1602, 1, 0
    %v1731 = vsel %vm1603, 1, 0
    %v1732 = vsel %vm1604, 1, 0
    %v1733 = vsel %vm1605, 1, 0
    %v1734 = vsel %vm1606, 1, 0
    %v1735 = vsel %vm1607, 1, 0
    %v1736 = vsel %vm1608, 1, 0
    %v1737 = vsel %vm1609, 1, 0
    %v1738 = vsel %vm1610, 1, 0
    %v1739 = vsel %vm1611, 1, 0
    %v1740 = vsel %vm1612, 1, 0
    %v1741 = vsel %vm1613, 1, 0
    %v1742 = vsel %vm1614, 1, 0
    %v1743 = vsel %vm1615, 1, 0
    %v1744 = vsel %vm1616, 1, 0
    %v1745 = vsel %vm1617, 1, 0
    %v1746 = vsel %vm1618, 1, 0
    %v1747 = vsel %vm1619, 1, 0
    %v1748 = vsel %vm1620, 1, 0
    %v1749 = vsel %vm1621, 1, 0
    %v1750 = vsel %vm1622, 1, 0
    %v1751 = vsel %vm1623, 1, 0
    %v1752 = vsel %vm1624, 1, 0
    %v1753 = vsel %vm1625, 1, 0
    %v1754 = vsel %vm1626, 1, 0
    %v1755 = vsel %vm1627, 1, 0
    %v1756 = vsel %vm1628, 1, 0
    %v1757 = vsel %vm1629, 1, 0
    %v1758 = vsel %vm1630, 1, 0
    %v1759 = vsel %vm1631, 1, 0
    %v1760 = vsel %vm1632, 1, 0
    %v1761 = vsel %vm1633, 1, 0
    %v1762 = vsel %vm1634, 1, 0
    %v1763 = vsel %vm1635, 1, 0
    %v1764 = vsel %vm1636, 1, 0
    %v1765 = vsel %vm1637, 1, 0
    %v1766 = vsel %vm1638, 1, 0
    %v1767 = vsel %vm1639, 1, 0
    %v1768 = vsel %vm1640, 1, 0
    %v1769 = vsel %vm1641, 1, 0
    %v1770 = vsel %vm1642, 1, 0
    %v1771 = vsel %vm1643, 1, 0
    %v1772 = vsel %vm1644, 1, 0
    %v1773 = vsel %vm1645, 1, 0
    %v1774 = vsel %vm1646, 1, 0
    %v1775 = vsel %vm1647, 1, 0
    %v1776 = vsel %vm1648, 1, 0
    %v1777 = vsel %vm1649, 1, 0
    %v1778 = vsel %vm1650, 1, 0
    %v1779 = vsel %vm1651, 1, 0
    %v1780 = vsel %vm1652, 1, 0
    %v1781 = vsel %vm1653, 1, 0
    %v1782 = vsel %vm1654, 1, 0
    %v1783 = vcvt.s32.f32 %v1655
    %v1784 = vcvt.s32.f32 %v1656
    %v1785 = vcvt.s32.f32 %v1657
    %v1786 = vcvt.s32.f32 %v1658
    %v1787 = vcvt.s32.f32 %v1659
    %v1788 = vcvt.s32.f32 %v1660
    %v1789 = vcvt.s32.f32 %v1661
    %v1790 = vcvt.s32.f32 %v1662
    %v1791 = vcvt.s32.f32 %v1663
    %v1792 = vcvt.s32.f32 %v1664
    %v1793 = vcvt.s32.f32 %v1665
    %v1794 = vcvt.s32.f32 %v1666
    %v1795 = vcvt.s32.f32 %v1667
    %v1796 = vcvt.s32.f32 %v1668
    %v1797 = vcvt.s32.f32 %v1669
    %v1798 = vcvt.s32.f32 %v1670
    %v1799 = vcvt.s32.f32 %v1671
    %v1800 = vcvt.s32.f32 %v1672
    %v1801 = vcvt.s32.f32 %v1673
    %v1802 = vcvt.s32.f32 %v1674
    %v1803 = vcvt.s32.f32 %v1675
    %v1804 = vcvt.s32.f32 %v1676
    %v1805 = vcvt.s32.f32 %v1677
    %v1806 = vcvt.s32.f32 %v1678
    %v1807 = vcvt.s32.f32 %v1679
    %v1808 = vcvt.s32.f32 %v1680
    %v1809 = vcvt.s32.f32 %v1681
    %v1810 = vcvt.s32.f32 %v1682
    %v1811 = vcvt.s32.f32 %v1683
    %v1812 = vcvt.s32.f32 %v1684
    %v1813 = vcvt.s32.f32 %v1685
    %v1814 = vcvt.s32.f32 %v1686
    %v1815 = vcvt.s32.f32 %v1687
    %v1816 = vcvt.s32.f32 %v1688
    %v1817 = vcvt.s32.f32 %v1689
    %v1818 = vcvt.s32.f32 %v1690
    %v1819 = vcvt.s32.f32 %v1691
    %v1820 = vcvt.s32.f32 %v1692
    %v1821 = vcvt.s32.f32 %v1693
    %v1822 = vcvt.s32.f32 %v1694
    %v1823 = vcvt.s32.f32 %v1695
    %v1824 = vcvt.s32.f32 %v1696
    %v1825 = vcvt.s32.f32 %v1697
    %v1826 = vcvt.s32.f32 %v1698
    %v1827 = vcvt.s32.f32 %v1699
    %v1828 = vcvt.s32.f32 %v1700
    %v1829 = vcvt.s32.f32 %v1701
    %v1830 = vcvt.s32.f32 %v1702
    %v1831 = vcvt.s32.f32 %v1703
    %v1832 = vcvt.s32.f32 %v1704
    %v1833 = vcvt.s32.f32 %v1705
    %v1834 = vcvt.s32.f32 %v1706
    %v1835 = vcvt.s32.f32 %v1707
    %v1836 = vcvt.s32.f32 %v1708
    %v1837 = vcvt.s32.f32 %v1709
    %v1838 = vcvt.s32.f32 %v1710
    %v1839 = vcvt.s32.f32 %v1711
    %v1840 = vcvt.s32.f32 %v1712
    %v1841 = vcvt.s32.f32 %v1713
    %v1842 = vcvt.s32.f32 %v1714
    %v1843 = vcvt.s32.f32 %v1715
    %v1844 = vcvt.s32.f32 %v1716
    %v1845 = vcvt.s32.f32 %v1717
    %v1846 = vcvt.s32.f32 %v1718
    %v1847 = vcvt.s32.f32 %v1719
    %v1848 = vcvt.s32.f32 %v1720
    %v1849 = vcvt.s32.f32 %v1721
    %v1850 = vcvt.s32.f32 %v1722
    %v1851 = vcvt.s32.f32 %v1723
    %v1852 = vcvt.s32.f32 %v1724
    %v1853 = vcvt.s32.f32 %v1725
    %v1854 = vcvt.s32.f32 %v1726
    %v1855 = vcvt.s32.f32 %v1727
    %v1856 = vcvt.s32.f32 %v1728
    %v1857 = vcvt.s32.f32 %v1729
    %v1858 = vcvt.s32.f32 %v1730
    %v1859 = vcvt.s32.f32 %v1731
    %v1860 = vcvt.s32.f32 %v1732
    %v1861 = vcvt.s32.f32 %v1733
    %v1862 = vcvt.s32.f32 %v1734
    %v1863 = vcvt.s32.f32 %v1735
    %v1864 = vcvt.s32.f32 %v1736
    %v1865 = vcvt.s32.f32 %v1737
    %v1866 = vcvt.s32.f32 %v1738
    %v1867 = vcvt.s32.f32 %v1739
    %v1868 = vcvt.s32.f32 %v1740
    %v1869 = vcvt.s32.f32 %v1741
    %v1870 = vcvt.s32.f32 %v1742
    %v1871 = vcvt.s32.f32 %v1743
    %v1872 = vcvt.s32.f32 %v1744
    %v1873 = vcvt.s32.f32 %v1745
    %v1874 = vcvt.s32.f32 %v1746
    %v1875 = vcvt.s32.f32 %v1747
    %v1876 = vcvt.s32.f32 %v1748
    %v1877 = vcvt.s32.f32 %v1749
    %v1878 = vcvt.s32.f32 %v1750
    %v1879 = vcvt.s32.f32 %v1751
    %v1880 = vcvt.s32.f32 %v1752
    %v1881 = vcvt.s32.f32 %v1753
    %v1882 = vcvt.s32.f32 %v1754
    %v1883 = vcvt.s32.f32 %v1755
    %v1884 = vcvt.s32.f32 %v1756
    %v1885 = vcvt.s32.f32 %v1757
    %v1886 = vcvt.s32.f32 %v1758
    %v1887 = vcvt.s32.f32 %v1759
    %v1888 = vcvt.s32.f32 %v1760
    %v1889 = vcvt.s32.f32 %v1761
    %v1890 = vcvt.s32.f32 %v1762
    %v1891 = vcvt.s32.f32 %v1763
    %v1892 = vcvt.s32.f32 %v1764
    %v1893 = vcvt.s32.f32 %v1765
    %v1894 = vcvt.s32.f32 %v1766
    %v1895 = vcvt.s32.f32 %v1767
    %v1896 = vcvt.s32.f32 %v1768
    %v1897 = vcvt.s32.f32 %v1769
    %v1898 = vcvt.s32.f32 %v1770
    %v1899 = vcvt.s32.f32 %v1771
    %v1900 = vcvt.s32.f32 %v1772
    %v1901 = vcvt.s32.f32 %v1773
    %v1902 = vcvt.s32.f32 %v1774
    %v1903 = vcvt.s32.f32 %v1775
    %v1904 = vcvt.s32.f32 %v1776
    %v1905 = vcvt.s32.f32 %v1777
    %v1906 = vcvt.s32.f32 %v1778
    %v1907 = vcvt.s32.f32 %v1779
    %v1908 = vcvt.s32.f32 %v1780
    %v1909 = vcvt.s32.f32 %v1781
    %v1910 = vcvt.s32.f32 %v1782
    %v1911 = vsel %vm924, %v1783, 0.0
    %v1912 = vsel %vm924, %v1784, 0.0
    %v1913 = vadd.f32 %v1911, %v1912
    %v1914 = vsel %vm924, %v1785, 0.0
    %v1915 = vadd.f32 %v1913, %v1914
    %v1916 = vsel %vm924, %v1786, 0.0
    %v1917 = vadd.f32 %v1915, %v1916
    %v1918 = vsel %vm924, %v1787, 0.0
    %v1919 = vadd.f32 %v1917, %v1918
    %v1920 = vsel %vm924, %v1788, 0.0
    %v1921 = vadd.f32 %v1919, %v1920
    %v1922 = vsel %vm924, %v1789, 0.0
    %v1923 = vadd.f32 %v1921, %v1922
    %v1924 = vsel %vm924, %v1790, 0.0
    %v1925 = vadd.f32 %v1923, %v1924
    %v1926 = vrot.slane %v1925, 4
    %v1927 = vadd.f32 %v1925, %v1926
    %v1928 = vrot.slane %v1927, 2
    %v1929 = vadd.f32 %v1927, %v1928
    %v1930 = vrot.slane %v1929, 1
    %v1931 = vadd.f32 %v1929, %v1930
    %v1932 = vsel %vm924, %v1791, 0.0
    %v1933 = vsel %vm924, %v1792, 0.0
    %v1934 = vadd.f32 %v1932, %v1933
    %v1935 = vsel %vm924, %v1793, 0.0
    %v1936 = vadd.f32 %v1934, %v1935
    %v1937 = vsel %vm924, %v1794, 0.0
    %v1938 = vadd.f32 %v1936, %v1937
    %v1939 = vsel %vm924, %v1795, 0.0
    %v1940 = vadd.f32 %v1938, %v1939
    %v1941 = vsel %vm924, %v1796, 0.0
    %v1942 = vadd.f32 %v1940, %v1941
    %v1943 = vsel %vm924, %v1797, 0.0
    %v1944 = vadd.f32 %v1942, %v1943
    %v1945 = vsel %vm924, %v1798, 0.0
    %v1946 = vadd.f32 %v1944, %v1945
    %v1947 = vrot.slane %v1946, 4
    %v1948 = vadd.f32 %v1946, %v1947
    %v1949 = vrot.slane %v1948, 2
    %v1950 = vadd.f32 %v1948, %v1949
    %v1951 = vrot.slane %v1950, 1
    %v1952 = vadd.f32 %v1950, %v1951
    %v1953 = vsel %vm924, %v1799, 0.0
    %v1954 = vsel %vm924, %v1800, 0.0
    %v1955 = vadd.f32 %v1953, %v1954
    %v1956 = vsel %vm924, %v1801, 0.0
    %v1957 = vadd.f32 %v1955, %v1956
    %v1958 = vsel %vm924, %v1802, 0.0
    %v1959 = vadd.f32 %v1957, %v1958
    %v1960 = vsel %vm924, %v1803, 0.0
    %v1961 = vadd.f32 %v1959, %v1960
    %v1962 = vsel %vm924, %v1804, 0.0
    %v1963 = vadd.f32 %v1961, %v1962
    %v1964 = vsel %vm924, %v1805, 0.0
    %v1965 = vadd.f32 %v1963, %v1964
    %v1966 = vsel %vm924, %v1806, 0.0
    %v1967 = vadd.f32 %v1965, %v1966
    %v1968 = vrot.slane %v1967, 4
    %v1969 = vadd.f32 %v1967, %v1968
    %v1970 = vrot.slane %v1969, 2
    %v1971 = vadd.f32 %v1969, %v1970
    %v1972 = vrot.slane %v1971, 1
    %v1973 = vadd.f32 %v1971, %v1972
    %v1974 = vsel %vm924, %v1807, 0.0
    %v1975 = vsel %vm924, %v1808, 0.0
    %v1976 = vadd.f32 %v1974, %v1975
    %v1977 = vsel %vm924, %v1809, 0.0
    %v1978 = vadd.f32 %v1976, %v1977
    %v1979 = vsel %vm924, %v1810, 0.0
    %v1980 = vadd.f32 %v1978, %v1979
    %v1981 = vsel %vm924, %v1811, 0.0
    %v1982 = vadd.f32 %v1980, %v1981
    %v1983 = vsel %vm924, %v1812, 0.0
    %v1984 = vadd.f32 %v1982, %v1983
    %v1985 = vsel %vm924, %v1813, 0.0
    %v1986 = vadd.f32 %v1984, %v1985
    %v1987 = vsel %vm924, %v1814, 0.0
    %v1988 = vadd.f32 %v1986, %v1987
    %v1989 = vrot.slane %v1988, 4
    %v1990 = vadd.f32 %v1988, %v1989
    %v1991 = vrot.slane %v1990, 2
    %v1992 = vadd.f32 %v1990, %v1991
    %v1993 = vrot.slane %v1992, 1
    %v1994 = vadd.f32 %v1992, %v1993
    %v1995 = vsel %vm924, %v1815, 0.0
    %v1996 = vsel %vm924, %v1816, 0.0
    %v1997 = vadd.f32 %v1995, %v1996
    %v1998 = vsel %vm924, %v1817, 0.0
    %v1999 = vadd.f32 %v1997, %v1998
    %v2000 = vsel %vm924, %v1818, 0.0
    %v2001 = vadd.f32 %v1999, %v2000
    %v2002 = vsel %vm924, %v1819, 0.0
    %v2003 = vadd.f32 %v2001, %v2002
    %v2004 = vsel %vm924, %v1820, 0.0
    %v2005 = vadd.f32 %v2003, %v2004
    %v2006 = vsel %vm924, %v1821, 0.0
    %v2007 = vadd.f32 %v2005, %v2006
    %v2008 = vsel %vm924, %v1822, 0.0
    %v2009 = vadd.f32 %v2007, %v2008
    %v2010 = vrot.slane %v2009, 4
    %v2011 = vadd.f32 %v2009, %v2010
    %v2012 = vrot.slane %v2011, 2
    %v2013 = vadd.f32 %v2011, %v2012
    %v2014 = vrot.slane %v2013, 1
    %v2015 = vadd.f32 %v2013, %v2014
    %v2016 = vsel %vm924, %v1823, 0.0
    %v2017 = vsel %vm924, %v1824, 0.0
    %v2018 = vadd.f32 %v2016, %v2017
    %v2019 = vsel %vm924, %v1825, 0.0
    %v2020 = vadd.f32 %v2018, %v2019
    %v2021 = vsel %vm924, %v1826, 0.0
    %v2022 = vadd.f32 %v2020, %v2021
    %v2023 = vsel %vm924, %v1827, 0.0
    %v2024 = vadd.f32 %v2022, %v2023
    %v2025 = vsel %vm924, %v1828, 0.0
    %v2026 = vadd.f32 %v2024, %v2025
    %v2027 = vsel %vm924, %v1829, 0.0
    %v2028 = vadd.f32 %v2026, %v2027
    %v2029 = vsel %vm924, %v1830, 0.0
    %v2030 = vadd.f32 %v2028, %v2029
    %v2031 = vrot.slane %v2030, 4
    %v2032 = vadd.f32 %v2030, %v2031
    %v2033 = vrot.slane %v2032, 2
    %v2034 = vadd.f32 %v2032, %v2033
    %v2035 = vrot.slane %v2034, 1
    %v2036 = vadd.f32 %v2034, %v2035
    %v2037 = vsel %vm924, %v1831, 0.0
    %v2038 = vsel %vm924, %v1832, 0.0
    %v2039 = vadd.f32 %v2037, %v2038
    %v2040 = vsel %vm924, %v1833, 0.0
    %v2041 = vadd.f32 %v2039, %v2040
    %v2042 = vsel %vm924, %v1834, 0.0
    %v2043 = vadd.f32 %v2041, %v2042
    %v2044 = vsel %vm924, %v1835, 0.0
    %v2045 = vadd.f32 %v2043, %v2044
    %v2046 = vsel %vm924, %v1836, 0.0
    %v2047 = vadd.f32 %v2045, %v2046
    %v2048 = vsel %vm924, %v1837, 0.0
    %v2049 = vadd.f32 %v2047, %v2048
    %v2050 = vsel %vm924, %v1838, 0.0
    %v2051 = vadd.f32 %v2049, %v2050
    %v2052 = vrot.slane %v2051, 4
    %v2053 = vadd.f32 %v2051, %v2052
    %v2054 = vrot.slane %v2053, 2
    %v2055 = vadd.f32 %v2053, %v2054
    %v2056 = vrot.slane %v2055, 1
    %v2057 = vadd.f32 %v2055, %v2056
    %v2058 = vsel %vm924, %v1839, 0.0
    %v2059 = vsel %vm924, %v1840, 0.0
    %v2060 = vadd.f32 %v2058, %v2059
    %v2061 = vsel %vm924, %v1841, 0.0
    %v2062 = vadd.f32 %v2060, %v2061
    %v2063 = vsel %vm924, %v1842, 0.0
    %v2064 = vadd.f32 %v2062, %v2063
    %v2065 = vsel %vm924, %v1843, 0.0
    %v2066 = vadd.f32 %v2064, %v2065
    %v2067 = vsel %vm924, %v1844, 0.0
    %v2068 = vadd.f32 %v2066, %v2067
    %v2069 = vsel %vm924, %v1845, 0.0
    %v2070 = vadd.f32 %v2068, %v2069
    %v2071 = vsel %vm924, %v1846, 0.0
    %v2072 = vadd.f32 %v2070, %v2071
    %v2073 = vrot.slane %v2072, 4
    %v2074 = vadd.f32 %v2072, %v2073
    %v2075 = vrot.slane %v2074, 2
    %v2076 = vadd.f32 %v2074, %v2075
    %v2077 = vrot.slane %v2076, 1
    %v2078 = vadd.f32 %v2076, %v2077
    %v2079 = vsel %vm924, %v1847, 0.0
    %v2080 = vsel %vm924, %v1848, 0.0
    %v2081 = vadd.f32 %v2079, %v2080
    %v2082 = vsel %vm924, %v1849, 0.0
    %v2083 = vadd.f32 %v2081, %v2082
    %v2084 = vsel %vm924, %v1850, 0.0
    %v2085 = vadd.f32 %v2083, %v2084
    %v2086 = vsel %vm924, %v1851, 0.0
    %v2087 = vadd.f32 %v2085, %v2086
    %v2088 = vsel %vm924, %v1852, 0.0
    %v2089 = vadd.f32 %v2087, %v2088
    %v2090 = vsel %vm924, %v1853, 0.0
    %v2091 = vadd.f32 %v2089, %v2090
    %v2092 = vsel %vm924, %v1854, 0.0
    %v2093 = vadd.f32 %v2091, %v2092
    %v2094 = vrot.slane %v2093, 4
    %v2095 = vadd.f32 %v2093, %v2094
    %v2096 = vrot.slane %v2095, 2
    %v2097 = vadd.f32 %v2095, %v2096
    %v2098 = vrot.slane %v2097, 1
    %v2099 = vadd.f32 %v2097, %v2098
    %v2100 = vsel %vm924, %v1855, 0.0
    %v2101 = vsel %vm924, %v1856, 0.0
    %v2102 = vadd.f32 %v2100, %v2101
    %v2103 = vsel %vm924, %v1857, 0.0
    %v2104 = vadd.f32 %v2102, %v2103
    %v2105 = vsel %vm924, %v1858, 0.0
    %v2106 = vadd.f32 %v2104, %v2105
    %v2107 = vsel %vm924, %v1859, 0.0
    %v2108 = vadd.f32 %v2106, %v2107
    %v2109 = vsel %vm924, %v1860, 0.0
    %v2110 = vadd.f32 %v2108, %v2109
    %v2111 = vsel %vm924, %v1861, 0.0
    %v2112 = vadd.f32 %v2110, %v2111
    %v2113 = vsel %vm924, %v1862, 0.0
    %v2114 = vadd.f32 %v2112, %v2113
    %v2115 = vrot.slane %v2114, 4
    %v2116 = vadd.f32 %v2114, %v2115
    %v2117 = vrot.slane %v2116, 2
    %v2118 = vadd.f32 %v2116, %v2117
    %v2119 = vrot.slane %v2118, 1
    %v2120 = vadd.f32 %v2118, %v2119
    %v2121 = vsel %vm924, %v1863, 0.0
    %v2122 = vsel %vm924, %v1864, 0.0
    %v2123 = vadd.f32 %v2121, %v2122
    %v2124 = vsel %vm924, %v1865, 0.0
    %v2125 = vadd.f32 %v2123, %v2124
    %v2126 = vsel %vm924, %v1866, 0.0
    %v2127 = vadd.f32 %v2125, %v2126
    %v2128 = vsel %vm924, %v1867, 0.0
    %v2129 = vadd.f32 %v2127, %v2128
    %v2130 = vsel %vm924, %v1868, 0.0
    %v2131 = vadd.f32 %v2129, %v2130
    %v2132 = vsel %vm924, %v1869, 0.0
    %v2133 = vadd.f32 %v2131, %v2132
    %v2134 = vsel %vm924, %v1870, 0.0
    %v2135 = vadd.f32 %v2133, %v2134
    %v2136 = vrot.slane %v2135, 4
    %v2137 = vadd.f32 %v2135, %v2136
    %v2138 = vrot.slane %v2137, 2
    %v2139 = vadd.f32 %v2137, %v2138
    %v2140 = vrot.slane %v2139, 1
    %v2141 = vadd.f32 %v2139, %v2140
    %v2142 = vsel %vm924, %v1871, 0.0
    %v2143 = vsel %vm924, %v1872, 0.0
    %v2144 = vadd.f32 %v2142, %v2143
    %v2145 = vsel %vm924, %v1873, 0.0
    %v2146 = vadd.f32 %v2144, %v2145
    %v2147 = vsel %vm924, %v1874, 0.0
    %v2148 = vadd.f32 %v2146, %v2147
    %v2149 = vsel %vm924, %v1875, 0.0
    %v2150 = vadd.f32 %v2148, %v2149
    %v2151 = vsel %vm924, %v1876, 0.0
    %v2152 = vadd.f32 %v2150, %v2151
    %v2153 = vsel %vm924, %v1877, 0.0
    %v2154 = vadd.f32 %v2152, %v2153
    %v2155 = vsel %vm924, %v1878, 0.0
    %v2156 = vadd.f32 %v2154, %v2155
    %v2157 = vrot.slane %v2156, 4
    %v2158 = vadd.f32 %v2156, %v2157
    %v2159 = vrot.slane %v2158, 2
    %v2160 = vadd.f32 %v2158, %v2159
    %v2161 = vrot.slane %v2160, 1
    %v2162 = vadd.f32 %v2160, %v2161
    %v2163 = vsel %vm924, %v1879, 0.0
    %v2164 = vsel %vm924, %v1880, 0.0
    %v2165 = vadd.f32 %v2163, %v2164
    %v2166 = vsel %vm924, %v1881, 0.0
    %v2167 = vadd.f32 %v2165, %v2166
    %v2168 = vsel %vm924, %v1882, 0.0
    %v2169 = vadd.f32 %v2167, %v2168
    %v2170 = vsel %vm924, %v1883, 0.0
    %v2171 = vadd.f32 %v2169, %v2170
    %v2172 = vsel %vm924, %v1884, 0.0
    %v2173 = vadd.f32 %v2171, %v2172
    %v2174 = vsel %vm924, %v1885, 0.0
    %v2175 = vadd.f32 %v2173, %v2174
    %v2176 = vsel %vm924, %v1886, 0.0
    %v2177 = vadd.f32 %v2175, %v2176
    %v2178 = vrot.slane %v2177, 4
    %v2179 = vadd.f32 %v2177, %v2178
    %v2180 = vrot.slane %v2179, 2
    %v2181 = vadd.f32 %v2179, %v2180
    %v2182 = vrot.slane %v2181, 1
    %v2183 = vadd.f32 %v2181, %v2182
    %v2184 = vsel %vm924, %v1887, 0.0
    %v2185 = vsel %vm924, %v1888, 0.0
    %v2186 = vadd.f32 %v2184, %v2185
    %v2187 = vsel %vm924, %v1889, 0.0
    %v2188 = vadd.f32 %v2186, %v2187
    %v2189 = vsel %vm924, %v1890, 0.0
    %v2190 = vadd.f32 %v2188, %v2189
    %v2191 = vsel %vm924, %v1891, 0.0
    %v2192 = vadd.f32 %v2190, %v2191
    %v2193 = vsel %vm924, %v1892, 0.0
    %v2194 = vadd.f32 %v2192, %v2193
    %v2195 = vsel %vm924, %v1893, 0.0
    %v2196 = vadd.f32 %v2194, %v2195
    %v2197 = vsel %vm924, %v1894, 0.0
    %v2198 = vadd.f32 %v2196, %v2197
    %v2199 = vrot.slane %v2198, 4
    %v2200 = vadd.f32 %v2198, %v2199
    %v2201 = vrot.slane %v2200, 2
    %v2202 = vadd.f32 %v2200, %v2201
    %v2203 = vrot.slane %v2202, 1
    %v2204 = vadd.f32 %v2202, %v2203
    %v2205 = vsel %vm924, %v1895, 0.0
    %v2206 = vsel %vm924, %v1896, 0.0
    %v2207 = vadd.f32 %v2205, %v2206
    %v2208 = vsel %vm924, %v1897, 0.0
    %v2209 = vadd.f32 %v2207, %v2208
    %v2210 = vsel %vm924, %v1898, 0.0
    %v2211 = vadd.f32 %v2209, %v2210
    %v2212 = vsel %vm924, %v1899, 0.0
    %v2213 = vadd.f32 %v2211, %v2212
    %v2214 = vsel %vm924, %v1900, 0.0
    %v2215 = vadd.f32 %v2213, %v2214
    %v2216 = vsel %vm924, %v1901, 0.0
    %v2217 = vadd.f32 %v2215, %v2216
    %v2218 = vsel %vm924, %v1902, 0.0
    %v2219 = vadd.f32 %v2217, %v2218
    %v2220 = vrot.slane %v2219, 4
    %v2221 = vadd.f32 %v2219, %v2220
    %v2222 = vrot.slane %v2221, 2
    %v2223 = vadd.f32 %v2221, %v2222
    %v2224 = vrot.slane %v2223, 1
    %v2225 = vadd.f32 %v2223, %v2224
    %v2226 = vsel %vm924, %v1903, 0.0
    %v2227 = vsel %vm924, %v1904, 0.0
    %v2228 = vadd.f32 %v2226, %v2227
    %v2229 = vsel %vm924, %v1905, 0.0
    %v2230 = vadd.f32 %v2228, %v2229
    %v2231 = vsel %vm924, %v1906, 0.0
    %v2232 = vadd.f32 %v2230, %v2231
    %v2233 = vsel %vm924, %v1907, 0.0
    %v2234 = vadd.f32 %v2232, %v2233
    %v2235 = vsel %vm924, %v1908, 0.0
    %v2236 = vadd.f32 %v2234, %v2235
    %v2237 = vsel %vm924, %v1909, 0.0
    %v2238 = vadd.f32 %v2236, %v2237
    %v2239 = vsel %vm924, %v1910, 0.0
    %v2240 = vadd.f32 %v2238, %v2239
    %v2241 = vrot.slane %v2240, 4
    %v2242 = vadd.f32 %v2240, %v2241
    %v2243 = vrot.slane %v2242, 2
    %v2244 = vadd.f32 %v2242, %v2243
    %v2245 = vrot.slane %v2244, 1
    %v2246 = vadd.f32 %v2244, %v2245
    %v2247 = vld [vmem:[#allocation4] sm:$0xff]
    %v2248 = vld [vmem:[#allocation4 + $0x8] sm:$0xff]
    %v2250 = vlaneseq
    %v2251 = vshrl.u32 %v2250, 7
    %v2252 = vsub.s32 0, %v2251
    %v2253 = vrot.slane %v45, %v2252
    %vm2255 = vcmp.le.f32.partialorder %v2247, %v2253
    %vm2256 = vcmp.le.f32.partialorder %v2248, %v2253
    %vm2273 = vcmask 1041409
    %v2274 = vsel %vm2273, %v1952, %v1931
    %vm2275 = vcmask 1042434
    %v2276 = vsel %vm2275, %v1973, %v2274
    %vm2277 = vcmask 1043459
    %v2278 = vsel %vm2277, %v1994, %v2276
    %vm2279 = vcmask 1044484
    %v2280 = vsel %vm2279, %v2015, %v2278
    %vm2281 = vcmask 1045509
    %v2282 = vsel %vm2281, %v2036, %v2280
    %vm2283 = vcmask 1046534
    %v2284 = vsel %vm2283, %v2057, %v2282
    %vm2285 = vcmask 1047559
    %v2286 = vsel %vm2285, %v2078, %v2284
    %v2287 = vsel %vm2273, %v2120, %v2099
    %v2288 = vsel %vm2275, %v2141, %v2287
    %v2289 = vsel %vm2277, %v2162, %v2288
    %v2290 = vsel %vm2279, %v2183, %v2289
    %v2291 = vsel %vm2281, %v2204, %v2290
    %v2292 = vsel %vm2283, %v2225, %v2291
    %v2293 = vsel %vm2285, %v2246, %v2292
    %v2296 = vadd.f32 %v2247, %v2286
    %v2297 = vadd.f32 %v2248, %v2293
    %vm2298 = vcmp.lt.f32.partialorder %v2253, %v2296
    %vm2299 = vcmp.lt.f32.partialorder %v2253, %v2297
    %vm2300 = vmand %vm2255, %vm2298
    %vm2301 = vmand %vm2256, %vm2299
    %v2302 = vld [vmem:[#allocation5] sm:$0xff]
    %v2303 = vld [vmem:[#allocation5 + $0x8] sm:$0xff]
    %v2320 = vsel %vm2273, %v1232, %v1211
    %v2321 = vsel %vm2275, %v1253, %v2320
    %v2322 = vsel %vm2277, %v1274, %v2321
    %v2323 = vsel %vm2279, %v1295, %v2322
    %v2324 = vsel %vm2281, %v1316, %v2323
    %v2325 = vsel %vm2283, %v1337, %v2324
    %v2326 = vsel %vm2285, %v1358, %v2325
    %v2327 = vsel %vm2273, %v1400, %v1379
    %v2328 = vsel %vm2275, %v1421, %v2327
    %v2329 = vsel %vm2277, %v1442, %v2328
    %v2330 = vsel %vm2279, %v1463, %v2329
    %v2331 = vsel %vm2281, %v1484, %v2330
    %v2332 = vsel %vm2283, %v1505, %v2331
    %v2333 = vsel %vm2285, %v1526, %v2332
    %v2336 = vsel %vm2300, %v2326, %v2302
    %v2337 = vsel %vm2301, %v2333, %v2303
    %2338 = vst.msk [vmem:[#allocation5] sm:$0xff] %vm924, %v2336
    %2339 = vst.msk [vmem:[#allocation5 + $0x8] sm:$0xff] %vm924, %v2337
    %2340 = vst.msk [vmem:[#allocation4] sm:$0xff] %vm924, %v2296
    %2341 = vst.msk [vmem:[#allocation4 + $0x8] sm:$0xff] %vm924, %v2297
    %v2342 = vsel %vm1527, inf, %v1063
    %v2343 = vsel %vm1528, inf, %v1064
    %v2344 = vsel %vm1529, inf, %v1065
    %v2345 = vsel %vm1530, inf, %v1066
    %v2346 = vsel %vm1531, inf, %v1067
    %v2347 = vsel %vm1532, inf, %v1068
    %v2348 = vsel %vm1533, inf, %v1069
    %v2349 = vsel %vm1534, inf, %v1070
    %v2350 = vsel %vm1535, inf, %v1071
    %v2351 = vsel %vm1536, inf, %v1072
    %v2352 = vsel %vm1537, inf, %v1073
    %v2353 = vsel %vm1538, inf, %v1074
    %v2354 = vsel %vm1539, inf, %v1075
    %v2355 = vsel %vm1540, inf, %v1076
    %v2356 = vsel %vm1541, inf, %v1077
    %v2357 = vsel %vm1542, inf, %v1078
    %v2358 = vsel %vm1543, inf, %v1079
    %v2359 = vsel %vm1544, inf, %v1080
    %v2360 = vsel %vm1545, inf, %v1081
    %v2361 = vsel %vm1546, inf, %v1082
    %v2362 = vsel %vm1547, inf, %v1083
    %v2363 = vsel %vm1548, inf, %v1084
    %v2364 = vsel %vm1549, inf, %v1085
    %v2365 = vsel %vm1550, inf, %v1086
    %v2366 = vsel %vm1551, inf, %v1087
    %v2367 = vsel %vm1552, inf, %v1088
    %v2368 = vsel %vm1553, inf, %v1089
    %v2369 = vsel %vm1554, inf, %v1090
    %v2370 = vsel %vm1555, inf, %v1091
    %v2371 = vsel %vm1556, inf, %v1092
    %v2372 = vsel %vm1557, inf, %v1093
    %v2373 = vsel %vm1558, inf, %v1094
    %v2374 = vsel %vm1559, inf, %v1095
    %v2375 = vsel %vm1560, inf, %v1096
    %v2376 = vsel %vm1561, inf, %v1097
    %v2377 = vsel %vm1562, inf, %v1098
    %v2378 = vsel %vm1563, inf, %v1099
    %v2379 = vsel %vm1564, inf, %v1100
    %v2380 = vsel %vm1565, inf, %v1101
    %v2381 = vsel %vm1566, inf, %v1102
    %v2382 = vsel %vm1567, inf, %v1103
    %v2383 = vsel %vm1568, inf, %v1104
    %v2384 = vsel %vm1569, inf, %v1105
    %v2385 = vsel %vm1570, inf, %v1106
    %v2386 = vsel %vm1571, inf, %v1107
    %v2387 = vsel %vm1572, inf, %v1108
    %v2388 = vsel %vm1573, inf, %v1109
    %v2389 = vsel %vm1574, inf, %v1110
    %v2390 = vsel %vm1575, inf, %v1111
    %v2391 = vsel %vm1576, inf, %v1112
    %v2392 = vsel %vm1577, inf, %v1113
    %v2393 = vsel %vm1578, inf, %v1114
    %v2394 = vsel %vm1579, inf, %v1115
    %v2395 = vsel %vm1580, inf, %v1116
    %v2396 = vsel %vm1581, inf, %v1117
    %v2397 = vsel %vm1582, inf, %v1118
    %v2398 = vsel %vm1583, inf, %v1119
    %v2399 = vsel %vm1584, inf, %v1120
    %v2400 = vsel %vm1585, inf, %v1121
    %v2401 = vsel %vm1586, inf, %v1122
    %v2402 = vsel %vm1587, inf, %v1123
    %v2403 = vsel %vm1588, inf, %v1124
    %v2404 = vsel %vm1589, inf, %v1125
    %v2405 = vsel %vm1590, inf, %v1126
    %v2406 = vsel %vm1591, inf, %v1127
    %v2407 = vsel %vm1592, inf, %v1128
    %v2408 = vsel %vm1593, inf, %v1129
    %v2409 = vsel %vm1594, inf, %v1130
    %v2410 = vsel %vm1595, inf, %v1131
    %v2411 = vsel %vm1596, inf, %v1132
    %v2412 = vsel %vm1597, inf, %v1133
    %v2413 = vsel %vm1598, inf, %v1134
    %v2414 = vsel %vm1599, inf, %v1135
    %v2415 = vsel %vm1600, inf, %v1136
    %v2416 = vsel %vm1601, inf, %v1137
    %v2417 = vsel %vm1602, inf, %v1138
    %v2418 = vsel %vm1603, inf, %v1139
    %v2419 = vsel %vm1604, inf, %v1140
    %v2420 = vsel %vm1605, inf, %v1141
    %v2421 = vsel %vm1606, inf, %v1142
    %v2422 = vsel %vm1607, inf, %v1143
    %v2423 = vsel %vm1608, inf, %v1144
    %v2424 = vsel %vm1609, inf, %v1145
    %v2425 = vsel %vm1610, inf, %v1146
    %v2426 = vsel %vm1611, inf, %v1147
    %v2427 = vsel %vm1612, inf, %v1148
    %v2428 = vsel %vm1613, inf, %v1149
    %v2429 = vsel %vm1614, inf, %v1150
    %v2430 = vsel %vm1615, inf, %v1151
    %v2431 = vsel %vm1616, inf, %v1152
    %v2432 = vsel %vm1617, inf, %v1153
    %v2433 = vsel %vm1618, inf, %v1154
    %v2434 = vsel %vm1619, inf, %v1155
    %v2435 = vsel %vm1620, inf, %v1156
    %v2436 = vsel %vm1621, inf, %v1157
    %v2437 = vsel %vm1622, inf, %v1158
    %v2438 = vsel %vm1623, inf, %v1159
    %v2439 = vsel %vm1624, inf, %v1160
    %v2440 = vsel %vm1625, inf, %v1161
    %v2441 = vsel %vm1626, inf, %v1162
    %v2442 = vsel %vm1627, inf, %v1163
    %v2443 = vsel %vm1628, inf, %v1164
    %v2444 = vsel %vm1629, inf, %v1165
    %v2445 = vsel %vm1630, inf, %v1166
    %v2446 = vsel %vm1631, inf, %v1167
    %v2447 = vsel %vm1632, inf, %v1168
    %v2448 = vsel %vm1633, inf, %v1169
    %v2449 = vsel %vm1634, inf, %v1170
    %v2450 = vsel %vm1635, inf, %v1171
    %v2451 = vsel %vm1636, inf, %v1172
    %v2452 = vsel %vm1637, inf, %v1173
    %v2453 = vsel %vm1638, inf, %v1174
    %v2454 = vsel %vm1639, inf, %v1175
    %v2455 = vsel %vm1640, inf, %v1176
    %v2456 = vsel %vm1641, inf, %v1177
    %v2457 = vsel %vm1642, inf, %v1178
    %v2458 = vsel %vm1643, inf, %v1179
    %v2459 = vsel %vm1644, inf, %v1180
    %v2460 = vsel %vm1645, inf, %v1181
    %v2461 = vsel %vm1646, inf, %v1182
    %v2462 = vsel %vm1647, inf, %v1183
    %v2463 = vsel %vm1648, inf, %v1184
    %v2464 = vsel %vm1649, inf, %v1185
    %v2465 = vsel %vm1650, inf, %v1186
    %v2466 = vsel %vm1651, inf, %v1187
    %v2467 = vsel %vm1652, inf, %v1188
    %v2468 = vsel %vm1653, inf, %v1189
    %v2469 = vsel %vm1654, inf, %v1190
    %2470 = vst.msk [vmem:[#allocation2] sm:$0xff] %vm924, %v2342
    %2471 = vst.msk [vmem:[#allocation2 + $0x8] sm:$0xff] %vm924, %v2343
    %2472 = vst.msk [vmem:[#allocation2 + $0x10] sm:$0xff] %vm924, %v2344
    %2473 = vst.msk [vmem:[#allocation2 + $0x18] sm:$0xff] %vm924, %v2345
    %2474 = vst.msk [vmem:[#allocation2 + $0x20] sm:$0xff] %vm924, %v2346
    %2475 = vst.msk [vmem:[#allocation2 + $0x28] sm:$0xff] %vm924, %v2347
    %2476 = vst.msk [vmem:[#allocation2 + $0x30] sm:$0xff] %vm924, %v2348
    %2477 = vst.msk [vmem:[#allocation2 + $0x38] sm:$0xff] %vm924, %v2349
    %2478 = vst.msk [vmem:[#allocation2 + $0x40] sm:$0xff] %vm924, %v2350
    %2479 = vst.msk [vmem:[#allocation2 + $0x48] sm:$0xff] %vm924, %v2351
    %2480 = vst.msk [vmem:[#allocation2 + $0x50] sm:$0xff] %vm924, %v2352
    %2481 = vst.msk [vmem:[#allocation2 + $0x58] sm:$0xff] %vm924, %v2353
    %2482 = vst.msk [vmem:[#allocation2 + $0x60] sm:$0xff] %vm924, %v2354
    %2483 = vst.msk [vmem:[#allocation2 + $0x68] sm:$0xff] %vm924, %v2355
    %2484 = vst.msk [vmem:[#allocation2 + $0x70] sm:$0xff] %vm924, %v2356
    %2485 = vst.msk [vmem:[#allocation2 + $0x78] sm:$0xff] %vm924, %v2357
    %2486 = vst.msk [vmem:[#allocation2 + $0x80] sm:$0xff] %vm924, %v2358
    %2487 = vst.msk [vmem:[#allocation2 + $0x88] sm:$0xff] %vm924, %v2359
    %2488 = vst.msk [vmem:[#allocation2 + $0x90] sm:$0xff] %vm924, %v2360
    %2489 = vst.msk [vmem:[#allocation2 + $0x98] sm:$0xff] %vm924, %v2361
    %2490 = vst.msk [vmem:[#allocation2 + $0xa0] sm:$0xff] %vm924, %v2362
    %2491 = vst.msk [vmem:[#allocation2 + $0xa8] sm:$0xff] %vm924, %v2363
    %2492 = vst.msk [vmem:[#allocation2 + $0xb0] sm:$0xff] %vm924, %v2364
    %2493 = vst.msk [vmem:[#allocation2 + $0xb8] sm:$0xff] %vm924, %v2365
    %2494 = vst.msk [vmem:[#allocation2 + $0xc0] sm:$0xff] %vm924, %v2366
    %2495 = vst.msk [vmem:[#allocation2 + $0xc8] sm:$0xff] %vm924, %v2367
    %2496 = vst.msk [vmem:[#allocation2 + $0xd0] sm:$0xff] %vm924, %v2368
    %2497 = vst.msk [vmem:[#allocation2 + $0xd8] sm:$0xff] %vm924, %v2369
    %2498 = vst.msk [vmem:[#allocation2 + $0xe0] sm:$0xff] %vm924, %v2370
    %2499 = vst.msk [vmem:[#allocation2 + $0xe8] sm:$0xff] %vm924, %v2371
    %2500 = vst.msk [vmem:[#allocation2 + $0xf0] sm:$0xff] %vm924, %v2372
    %2501 = vst.msk [vmem:[#allocation2 + $0xf8] sm:$0xff] %vm924, %v2373
    %2502 = vst.msk [vmem:[#allocation2 + $0x100] sm:$0xff] %vm924, %v2374
    %2503 = vst.msk [vmem:[#allocation2 + $0x108] sm:$0xff] %vm924, %v2375
    %2504 = vst.msk [vmem:[#allocation2 + $0x110] sm:$0xff] %vm924, %v2376
    %2505 = vst.msk [vmem:[#allocation2 + $0x118] sm:$0xff] %vm924, %v2377
    %2506 = vst.msk [vmem:[#allocation2 + $0x120] sm:$0xff] %vm924, %v2378
    %2507 = vst.msk [vmem:[#allocation2 + $0x128] sm:$0xff] %vm924, %v2379
    %2508 = vst.msk [vmem:[#allocation2 + $0x130] sm:$0xff] %vm924, %v2380
    %2509 = vst.msk [vmem:[#allocation2 + $0x138] sm:$0xff] %vm924, %v2381
    %2510 = vst.msk [vmem:[#allocation2 + $0x140] sm:$0xff] %vm924, %v2382
    %2511 = vst.msk [vmem:[#allocation2 + $0x148] sm:$0xff] %vm924, %v2383
    %2512 = vst.msk [vmem:[#allocation2 + $0x150] sm:$0xff] %vm924, %v2384
    %2513 = vst.msk [vmem:[#allocation2 + $0x158] sm:$0xff] %vm924, %v2385
    %2514 = vst.msk [vmem:[#allocation2 + $0x160] sm:$0xff] %vm924, %v2386
    %2515 = vst.msk [vmem:[#allocation2 + $0x168] sm:$0xff] %vm924, %v2387
    %2516 = vst.msk [vmem:[#allocation2 + $0x170] sm:$0xff] %vm924, %v2388
    %2517 = vst.msk [vmem:[#allocation2 + $0x178] sm:$0xff] %vm924, %v2389
    %2518 = vst.msk [vmem:[#allocation2 + $0x180] sm:$0xff] %vm924, %v2390
    %2519 = vst.msk [vmem:[#allocation2 + $0x188] sm:$0xff] %vm924, %v2391
    %2520 = vst.msk [vmem:[#allocation2 + $0x190] sm:$0xff] %vm924, %v2392
    %2521 = vst.msk [vmem:[#allocation2 + $0x198] sm:$0xff] %vm924, %v2393
    %2522 = vst.msk [vmem:[#allocation2 + $0x1a0] sm:$0xff] %vm924, %v2394
    %2523 = vst.msk [vmem:[#allocation2 + $0x1a8] sm:$0xff] %vm924, %v2395
    %2524 = vst.msk [vmem:[#allocation2 + $0x1b0] sm:$0xff] %vm924, %v2396
    %2525 = vst.msk [vmem:[#allocation2 + $0x1b8] sm:$0xff] %vm924, %v2397
    %2526 = vst.msk [vmem:[#allocation2 + $0x1c0] sm:$0xff] %vm924, %v2398
    %2527 = vst.msk [vmem:[#allocation2 + $0x1c8] sm:$0xff] %vm924, %v2399
    %2528 = vst.msk [vmem:[#allocation2 + $0x1d0] sm:$0xff] %vm924, %v2400
    %2529 = vst.msk [vmem:[#allocation2 + $0x1d8] sm:$0xff] %vm924, %v2401
    %2530 = vst.msk [vmem:[#allocation2 + $0x1e0] sm:$0xff] %vm924, %v2402
    %2531 = vst.msk [vmem:[#allocation2 + $0x1e8] sm:$0xff] %vm924, %v2403
    %2532 = vst.msk [vmem:[#allocation2 + $0x1f0] sm:$0xff] %vm924, %v2404
    %2533 = vst.msk [vmem:[#allocation2 + $0x1f8] sm:$0xff] %vm924, %v2405
    %2534 = vst.msk [vmem:[#allocation2 + $0x200] sm:$0xff] %vm924, %v2406
    %2535 = vst.msk [vmem:[#allocation2 + $0x208] sm:$0xff] %vm924, %v2407
    %2536 = vst.msk [vmem:[#allocation2 + $0x210] sm:$0xff] %vm924, %v2408
    %2537 = vst.msk [vmem:[#allocation2 + $0x218] sm:$0xff] %vm924, %v2409
    %2538 = vst.msk [vmem:[#allocation2 + $0x220] sm:$0xff] %vm924, %v2410
    %2539 = vst.msk [vmem:[#allocation2 + $0x228] sm:$0xff] %vm924, %v2411
    %2540 = vst.msk [vmem:[#allocation2 + $0x230] sm:$0xff] %vm924, %v2412
    %2541 = vst.msk [vmem:[#allocation2 + $0x238] sm:$0xff] %vm924, %v2413
    %2542 = vst.msk [vmem:[#allocation2 + $0x240] sm:$0xff] %vm924, %v2414
    %2543 = vst.msk [vmem:[#allocation2 + $0x248] sm:$0xff] %vm924, %v2415
    %2544 = vst.msk [vmem:[#allocation2 + $0x250] sm:$0xff] %vm924, %v2416
    %2545 = vst.msk [vmem:[#allocation2 + $0x258] sm:$0xff] %vm924, %v2417
    %2546 = vst.msk [vmem:[#allocation2 + $0x260] sm:$0xff] %vm924, %v2418
    %2547 = vst.msk [vmem:[#allocation2 + $0x268] sm:$0xff] %vm924, %v2419
    %2548 = vst.msk [vmem:[#allocation2 + $0x270] sm:$0xff] %vm924, %v2420
    %2549 = vst.msk [vmem:[#allocation2 + $0x278] sm:$0xff] %vm924, %v2421
    %2550 = vst.msk [vmem:[#allocation2 + $0x280] sm:$0xff] %vm924, %v2422
    %2551 = vst.msk [vmem:[#allocation2 + $0x288] sm:$0xff] %vm924, %v2423
    %2552 = vst.msk [vmem:[#allocation2 + $0x290] sm:$0xff] %vm924, %v2424
    %2553 = vst.msk [vmem:[#allocation2 + $0x298] sm:$0xff] %vm924, %v2425
    %2554 = vst.msk [vmem:[#allocation2 + $0x2a0] sm:$0xff] %vm924, %v2426
    %2555 = vst.msk [vmem:[#allocation2 + $0x2a8] sm:$0xff] %vm924, %v2427
    %2556 = vst.msk [vmem:[#allocation2 + $0x2b0] sm:$0xff] %vm924, %v2428
    %2557 = vst.msk [vmem:[#allocation2 + $0x2b8] sm:$0xff] %vm924, %v2429
    %2558 = vst.msk [vmem:[#allocation2 + $0x2c0] sm:$0xff] %vm924, %v2430
    %2559 = vst.msk [vmem:[#allocation2 + $0x2c8] sm:$0xff] %vm924, %v2431
    %2560 = vst.msk [vmem:[#allocation2 + $0x2d0] sm:$0xff] %vm924, %v2432
    %2561 = vst.msk [vmem:[#allocation2 + $0x2d8] sm:$0xff] %vm924, %v2433
    %2562 = vst.msk [vmem:[#allocation2 + $0x2e0] sm:$0xff] %vm924, %v2434
    %2563 = vst.msk [vmem:[#allocation2 + $0x2e8] sm:$0xff] %vm924, %v2435
    %2564 = vst.msk [vmem:[#allocation2 + $0x2f0] sm:$0xff] %vm924, %v2436
    %2565 = vst.msk [vmem:[#allocation2 + $0x2f8] sm:$0xff] %vm924, %v2437
    %2566 = vst.msk [vmem:[#allocation2 + $0x300] sm:$0xff] %vm924, %v2438
    %2567 = vst.msk [vmem:[#allocation2 + $0x308] sm:$0xff] %vm924, %v2439
    %2568 = vst.msk [vmem:[#allocation2 + $0x310] sm:$0xff] %vm924, %v2440
    %2569 = vst.msk [vmem:[#allocation2 + $0x318] sm:$0xff] %vm924, %v2441
    %2570 = vst.msk [vmem:[#allocation2 + $0x320] sm:$0xff] %vm924, %v2442
    %2571 = vst.msk [vmem:[#allocation2 + $0x328] sm:$0xff] %vm924, %v2443
    %2572 = vst.msk [vmem:[#allocation2 + $0x330] sm:$0xff] %vm924, %v2444
    %2573 = vst.msk [vmem:[#allocation2 + $0x338] sm:$0xff] %vm924, %v2445
    %2574 = vst.msk [vmem:[#allocation2 + $0x340] sm:$0xff] %vm924, %v2446
    %2575 = vst.msk [vmem:[#allocation2 + $0x348] sm:$0xff] %vm924, %v2447
    %2576 = vst.msk [vmem:[#allocation2 + $0x350] sm:$0xff] %vm924, %v2448
    %2577 = vst.msk [vmem:[#allocation2 + $0x358] sm:$0xff] %vm924, %v2449
    %2578 = vst.msk [vmem:[#allocation2 + $0x360] sm:$0xff] %vm924, %v2450
    %2579 = vst.msk [vmem:[#allocation2 + $0x368] sm:$0xff] %vm924, %v2451
    %2580 = vst.msk [vmem:[#allocation2 + $0x370] sm:$0xff] %vm924, %v2452
    %2581 = vst.msk [vmem:[#allocation2 + $0x378] sm:$0xff] %vm924, %v2453
    %2582 = vst.msk [vmem:[#allocation2 + $0x380] sm:$0xff] %vm924, %v2454
    %2583 = vst.msk [vmem:[#allocation2 + $0x388] sm:$0xff] %vm924, %v2455
    %2584 = vst.msk [vmem:[#allocation2 + $0x390] sm:$0xff] %vm924, %v2456
    %2585 = vst.msk [vmem:[#allocation2 + $0x398] sm:$0xff] %vm924, %v2457
    %2586 = vst.msk [vmem:[#allocation2 + $0x3a0] sm:$0xff] %vm924, %v2458
    %2587 = vst.msk [vmem:[#allocation2 + $0x3a8] sm:$0xff] %vm924, %v2459
    %2588 = vst.msk [vmem:[#allocation2 + $0x3b0] sm:$0xff] %vm924, %v2460
    %2589 = vst.msk [vmem:[#allocation2 + $0x3b8] sm:$0xff] %vm924, %v2461
    %2590 = vst.msk [vmem:[#allocation2 + $0x3c0] sm:$0xff] %vm924, %v2462
    %2591 = vst.msk [vmem:[#allocation2 + $0x3c8] sm:$0xff] %vm924, %v2463
    %2592 = vst.msk [vmem:[#allocation2 + $0x3d0] sm:$0xff] %vm924, %v2464
    %2593 = vst.msk [vmem:[#allocation2 + $0x3d8] sm:$0xff] %vm924, %v2465
    %2594 = vst.msk [vmem:[#allocation2 + $0x3e0] sm:$0xff] %vm924, %v2466
    %2595 = vst.msk [vmem:[#allocation2 + $0x3e8] sm:$0xff] %vm924, %v2467
    %2596 = vst.msk [vmem:[#allocation2 + $0x3f0] sm:$0xff] %vm924, %v2468
    %2597 = vst.msk [vmem:[#allocation2 + $0x3f8] sm:$0xff] %vm924, %v2469
  $region34: #{median_gcn_forward.1} parent=0 // loop_footer
    %s1060 = sadd.s32 %s1058, 1
  $region35: #{median_gcn_forward.1} parent=0 // loop_footer_branch
    %1057 = sbr.rel target = $region31
  $region36: #{median_gcn_forward.1} parent=0 // loop_exit
    _
  %v2598 = vld [vmem:[#allocation5] sm:$0xff]
  %v2599 = vld [vmem:[#allocation5 + $0x8] sm:$0xff]
  %v2600 = vld [vmem:[%s5] sm:$0xff]
  %v2601 = vld [vmem:[%s5 + $0x8] sm:$0xff]
  %2603 = vset.pattern.permute.xlu0 0
  %2604 = vperm.xlu0 %2603, %v2600
  %v2605 = vpop.permute.xlu0 %2604
  %2608 = vset.pattern.permute.xlu0 0
  %2609 = vperm.xlu0 %2608, %v2601
  %v2610 = vpop.permute.xlu0 %2609
  %v2612 = vadd.f32 %v2598, %v2605
  %v2613 = vadd.f32 %v2599, %v2610
  %v2614 = vmax.f32 %v2612, 0.0
  %v2615 = vmax.f32 %v2613, 0.0
  %v2616 = vld [vmem:[%s6] sm:$0xff]
  %v2617 = vld [vmem:[%s6 + $0x8] sm:$0xff]
  %2618 = vxpose.xlu0.b32.start [1/16] %v2616, 128
  %2619 = vxpose.xlu0.b32.cont [2/16] %v2617, 128
  %2620 = vxpose.xlu0.b32.cont [3/16] 0.0, 128
  %2621 = vxpose.xlu0.b32.cont [4/16] 0.0, 128
  %2622 = vxpose.xlu0.b32.cont [5/16] 0.0, 128
  %2623 = vxpose.xlu0.b32.cont [6/16] 0.0, 128
  %2624 = vxpose.xlu0.b32.cont [7/16] 0.0, 128
  %2625 = vxpose.xlu0.b32.cont [8/16] 0.0, 128
  %2626 = vxpose.xlu0.b32.cont [9/16] 0.0, 128
  %2627 = vxpose.xlu0.b32.cont [10/16] 0.0, 128
  %2628 = vxpose.xlu0.b32.cont [11/16] 0.0, 128
  %2629 = vxpose.xlu0.b32.cont [12/16] 0.0, 128
  %2630 = vxpose.xlu0.b32.cont [13/16] 0.0, 128
  %2631 = vxpose.xlu0.b32.cont [14/16] 0.0, 128
  %2632 = vxpose.xlu0.b32.cont [15/16] 0.0, 128
  %2633 = vxpose.xlu0.b32.end [16/16] 0.0, 128
  %v2634 = vpop.trf.xlu0
  %v2635 = vpop.trf.xlu0
  %v2636 = vpop.trf.xlu0
  %v2637 = vpop.trf.xlu0
  %v2638 = vpop.trf.xlu0
  %v2639 = vpop.trf.xlu0
  %v2640 = vpop.trf.xlu0
  %v2641 = vpop.trf.xlu0
  %v2642 = vpop.trf.xlu0
  %v2643 = vpop.trf.xlu0
  %v2644 = vpop.trf.xlu0
  %v2645 = vpop.trf.xlu0
  %v2646 = vpop.trf.xlu0
  %v2647 = vpop.trf.xlu0
  %v2648 = vpop.trf.xlu0
  %v2649 = vpop.trf.xlu0
  %vm2650 = vcmask 130048
  %v2652 = vsel %vm2650, %v2634, 0
  %2654 = vmatprep.subr.mxu0 0.0
  %2655 = vmatpush1.msra.mxu0 %v2614
  %2656 = vmatprep.subr.mxu0 0.0
  %2657 = vmatpush1.msra.mxu0 %v2615
  %2658 = vmatprep.subr.mxu0 0.0
  %2659 = vmatpush1.msra.mxu0 0.0
  %2660 = vmatprep.subr.mxu0 0.0
  %2661 = vmatpush1.msra.mxu0 0.0
  %2662 = vmatprep.subr.mxu0 0.0
  %2663 = vmatpush1.msra.mxu0 0.0
  %2664 = vmatprep.subr.mxu0 0.0
  %2665 = vmatpush1.msra.mxu0 0.0
  %2666 = vmatprep.subr.mxu0 0.0
  %2667 = vmatpush1.msra.mxu0 0.0
  %2668 = vmatprep.subr.mxu0 0.0
  %2669 = vmatpush1.msra.mxu0 0.0
  %2670 = vmatprep.subr.mxu0 0.0
  %2671 = vmatpush1.msra.mxu0 0.0
  %2672 = vmatprep.subr.mxu0 0.0
  %2673 = vmatpush1.msra.mxu0 0.0
  %2674 = vmatprep.subr.mxu0 0.0
  %2675 = vmatpush1.msra.mxu0 0.0
  %2676 = vmatprep.subr.mxu0 0.0
  %2677 = vmatpush1.msra.mxu0 0.0
  %2678 = vmatprep.subr.mxu0 0.0
  %2679 = vmatpush1.msra.mxu0 0.0
  %2680 = vmatprep.subr.mxu0 0.0
  %2681 = vmatpush1.msra.mxu0 0.0
  %2682 = vmatprep.subr.mxu0 0.0
  %2683 = vmatpush1.msra.mxu0 0.0
  %2684 = vmatprep.subr.mxu0 0.0
  %2685 = vmatpush1.msra.mxu0 0.0
  %2686 = vmatprep.subr.mxu0 0.0
  %2687 = vmatpush1.msra.mxu0 0.0
  %2688 = vmatprep.subr.mxu0 0.0
  %2689 = vmatpush1.msra.mxu0 0.0
  %2690 = vmatprep.subr.mxu0 0.0
  %2691 = vmatpush1.msra.mxu0 0.0
  %2692 = vmatprep.subr.mxu0 0.0
  %2693 = vmatpush1.msra.mxu0 0.0
  %2694 = vmatprep.subr.mxu0 0.0
  %2695 = vmatpush1.msra.mxu0 0.0
  %2696 = vmatprep.subr.mxu0 0.0
  %2697 = vmatpush1.msra.mxu0 0.0
  %2698 = vmatprep.subr.mxu0 0.0
  %2699 = vmatpush1.msra.mxu0 0.0
  %2700 = vmatprep.subr.mxu0 0.0
  %2701 = vmatpush1.msra.mxu0 0.0
  %2702 = vmatprep.subr.mxu0 0.0
  %2703 = vmatpush1.msra.mxu0 0.0
  %2704 = vmatprep.subr.mxu0 0.0
  %2705 = vmatpush1.msra.mxu0 0.0
  %2706 = vmatprep.subr.mxu0 0.0
  %2707 = vmatpush1.msra.mxu0 0.0
  %2708 = vmatprep.subr.mxu0 0.0
  %2709 = vmatpush1.msra.mxu0 0.0
  %2710 = vmatprep.subr.mxu0 0.0
  %2711 = vmatpush1.msra.mxu0 0.0
  %2712 = vmatprep.subr.mxu0 0.0
  %2713 = vmatpush1.msra.mxu0 0.0
  %2714 = vmatprep.subr.mxu0 0.0
  %2715 = vmatpush1.msra.mxu0 0.0
  %2716 = vmatprep.subr.mxu0 0.0
  %2717 = vmatpush1.msra.mxu0 0.0
  %2718 = vmatprep.mubr.f32.mxu0 0.0
  %2719 = vmatmul.mubr.f32.gmra.mrb[0].mxu0 %v2652
  %v2720 = vpop.f32.mrb[0].mxu0
  %v2721 = vadd.f32 0.0, %v2720
  %v2722 = vpop.f32.mrb[0].mxu0
  %2723 = vdwg.mxu0
  %v2724 = vlaneseq
  %v2725 = vshrl.u32 %v2724, 7
  %v2726 = vsub.s32 0, %v2725
  %v2727 = vrot.slane %v2721, %v2726
  %2729 = vbcast.lane.b32.xlu0 %v2727, 256
  %v2730 = vpop.permute.xlu0 %2729
  %s2732 = sor.u32 256, 8
  %2733 = vbcast.lane.b32.xlu0 %v2727, %s2732
  %v2734 = vpop.permute.xlu0 %2733
  %s2736 = sor.u32 256, 16
  %2737 = vbcast.lane.b32.xlu0 %v2727, %s2736
  %v2738 = vpop.permute.xlu0 %2737
  %s2740 = sor.u32 256, 24
  %2741 = vbcast.lane.b32.xlu0 %v2727, %s2740
  %v2742 = vpop.permute.xlu0 %2741
  %s2744 = sor.u32 256, 32
  %2745 = vbcast.lane.b32.xlu0 %v2727, %s2744
  %v2746 = vpop.permute.xlu0 %2745
  %s2748 = sor.u32 256, 40
  %2749 = vbcast.lane.b32.xlu0 %v2727, %s2748
  %v2750 = vpop.permute.xlu0 %2749
  %s2752 = sor.u32 256, 48
  %2753 = vbcast.lane.b32.xlu0 %v2727, %s2752
  %v2754 = vpop.permute.xlu0 %2753
  %s2756 = sor.u32 256, 56
  %2757 = vbcast.lane.b32.xlu0 %v2727, %s2756
  %v2758 = vpop.permute.xlu0 %2757
  %v2759 = vlaneseq
  %v2760 = vshrl.u32 %v2759, 7
  %v2761 = vsub.s32 1, %v2760
  %v2762 = vrot.slane %v2721, %v2761
  %2764 = vbcast.lane.b32.xlu0 %v2762, 256
  %v2765 = vpop.permute.xlu0 %2764
  %s2767 = sor.u32 256, 8
  %2768 = vbcast.lane.b32.xlu0 %v2762, %s2767
  %v2769 = vpop.permute.xlu0 %2768
  %s2771 = sor.u32 256, 16
  %2772 = vbcast.lane.b32.xlu0 %v2762, %s2771
  %v2773 = vpop.permute.xlu0 %2772
  %s2775 = sor.u32 256, 24
  %2776 = vbcast.lane.b32.xlu0 %v2762, %s2775
  %v2777 = vpop.permute.xlu0 %2776
  %s2779 = sor.u32 256, 32
  %2780 = vbcast.lane.b32.xlu0 %v2762, %s2779
  %v2781 = vpop.permute.xlu0 %2780
  %s2783 = sor.u32 256, 40
  %2784 = vbcast.lane.b32.xlu0 %v2762, %s2783
  %v2785 = vpop.permute.xlu0 %2784
  %s2787 = sor.u32 256, 48
  %2788 = vbcast.lane.b32.xlu0 %v2762, %s2787
  %v2789 = vpop.permute.xlu0 %2788
  %s2791 = sor.u32 256, 56
  %2792 = vbcast.lane.b32.xlu0 %v2762, %s2791
  %v2793 = vpop.permute.xlu0 %2792
  %v2794 = vlaneseq
  %v2795 = vshrl.u32 %v2794, 7
  %v2796 = vsub.s32 2, %v2795
  %v2797 = vrot.slane %v2721, %v2796
  %2799 = vbcast.lane.b32.xlu0 %v2797, 256
  %v2800 = vpop.permute.xlu0 %2799
  %s2802 = sor.u32 256, 8
  %2803 = vbcast.lane.b32.xlu0 %v2797, %s2802
  %v2804 = vpop.permute.xlu0 %2803
  %s2806 = sor.u32 256, 16
  %2807 = vbcast.lane.b32.xlu0 %v2797, %s2806
  %v2808 = vpop.permute.xlu0 %2807
  %s2810 = sor.u32 256, 24
  %2811 = vbcast.lane.b32.xlu0 %v2797, %s2810
  %v2812 = vpop.permute.xlu0 %2811
  %s2814 = sor.u32 256, 32
  %2815 = vbcast.lane.b32.xlu0 %v2797, %s2814
  %v2816 = vpop.permute.xlu0 %2815
  %s2818 = sor.u32 256, 40
  %2819 = vbcast.lane.b32.xlu0 %v2797, %s2818
  %v2820 = vpop.permute.xlu0 %2819
  %s2822 = sor.u32 256, 48
  %2823 = vbcast.lane.b32.xlu0 %v2797, %s2822
  %v2824 = vpop.permute.xlu0 %2823
  %s2826 = sor.u32 256, 56
  %2827 = vbcast.lane.b32.xlu0 %v2797, %s2826
  %v2828 = vpop.permute.xlu0 %2827
  %v2829 = vlaneseq
  %v2830 = vshrl.u32 %v2829, 7
  %v2831 = vsub.s32 3, %v2830
  %v2832 = vrot.slane %v2721, %v2831
  %2834 = vbcast.lane.b32.xlu0 %v2832, 256
  %v2835 = vpop.permute.xlu0 %2834
  %s2837 = sor.u32 256, 8
  %2838 = vbcast.lane.b32.xlu0 %v2832, %s2837
  %v2839 = vpop.permute.xlu0 %2838
  %s2841 = sor.u32 256, 16
  %2842 = vbcast.lane.b32.xlu0 %v2832, %s2841
  %v2843 = vpop.permute.xlu0 %2842
  %s2845 = sor.u32 256, 24
  %2846 = vbcast.lane.b32.xlu0 %v2832, %s2845
  %v2847 = vpop.permute.xlu0 %2846
  %s2849 = sor.u32 256, 32
  %2850 = vbcast.lane.b32.xlu0 %v2832, %s2849
  %v2851 = vpop.permute.xlu0 %2850
  %s2853 = sor.u32 256, 40
  %2854 = vbcast.lane.b32.xlu0 %v2832, %s2853
  %v2855 = vpop.permute.xlu0 %2854
  %s2857 = sor.u32 256, 48
  %2858 = vbcast.lane.b32.xlu0 %v2832, %s2857
  %v2859 = vpop.permute.xlu0 %2858
  %s2861 = sor.u32 256, 56
  %2862 = vbcast.lane.b32.xlu0 %v2832, %s2861
  %v2863 = vpop.permute.xlu0 %2862
  %v2864 = vlaneseq
  %v2865 = vshrl.u32 %v2864, 7
  %v2866 = vsub.s32 4, %v2865
  %v2867 = vrot.slane %v2721, %v2866
  %2869 = vbcast.lane.b32.xlu0 %v2867, 256
  %v2870 = vpop.permute.xlu0 %2869
  %s2872 = sor.u32 256, 8
  %2873 = vbcast.lane.b32.xlu0 %v2867, %s2872
  %v2874 = vpop.permute.xlu0 %2873
  %s2876 = sor.u32 256, 16
  %2877 = vbcast.lane.b32.xlu0 %v2867, %s2876
  %v2878 = vpop.permute.xlu0 %2877
  %s2880 = sor.u32 256, 24
  %2881 = vbcast.lane.b32.xlu0 %v2867, %s2880
  %v2882 = vpop.permute.xlu0 %2881
  %s2884 = sor.u32 256, 32
  %2885 = vbcast.lane.b32.xlu0 %v2867, %s2884
  %v2886 = vpop.permute.xlu0 %2885
  %s2888 = sor.u32 256, 40
  %2889 = vbcast.lane.b32.xlu0 %v2867, %s2888
  %v2890 = vpop.permute.xlu0 %2889
  %s2892 = sor.u32 256, 48
  %2893 = vbcast.lane.b32.xlu0 %v2867, %s2892
  %v2894 = vpop.permute.xlu0 %2893
  %s2896 = sor.u32 256, 56
  %2897 = vbcast.lane.b32.xlu0 %v2867, %s2896
  %v2898 = vpop.permute.xlu0 %2897
  %v2899 = vlaneseq
  %v2900 = vshrl.u32 %v2899, 7
  %v2901 = vsub.s32 5, %v2900
  %v2902 = vrot.slane %v2721, %v2901
  %2904 = vbcast.lane.b32.xlu0 %v2902, 256
  %v2905 = vpop.permute.xlu0 %2904
  %s2907 = sor.u32 256, 8
  %2908 = vbcast.lane.b32.xlu0 %v2902, %s2907
  %v2909 = vpop.permute.xlu0 %2908
  %s2911 = sor.u32 256, 16
  %2912 = vbcast.lane.b32.xlu0 %v2902, %s2911
  %v2913 = vpop.permute.xlu0 %2912
  %s2915 = sor.u32 256, 24
  %2916 = vbcast.lane.b32.xlu0 %v2902, %s2915
  %v2917 = vpop.permute.xlu0 %2916
  %s2919 = sor.u32 256, 32
  %2920 = vbcast.lane.b32.xlu0 %v2902, %s2919
  %v2921 = vpop.permute.xlu0 %2920
  %s2923 = sor.u32 256, 40
  %2924 = vbcast.lane.b32.xlu0 %v2902, %s2923
  %v2925 = vpop.permute.xlu0 %2924
  %s2927 = sor.u32 256, 48
  %2928 = vbcast.lane.b32.xlu0 %v2902, %s2927
  %v2929 = vpop.permute.xlu0 %2928
  %s2931 = sor.u32 256, 56
  %2932 = vbcast.lane.b32.xlu0 %v2902, %s2931
  %v2933 = vpop.permute.xlu0 %2932
  %v2934 = vlaneseq
  %v2935 = vshrl.u32 %v2934, 7
  %v2936 = vsub.s32 6, %v2935
  %v2937 = vrot.slane %v2721, %v2936
  %2939 = vbcast.lane.b32.xlu0 %v2937, 256
  %v2940 = vpop.permute.xlu0 %2939
  %s2942 = sor.u32 256, 8
  %2943 = vbcast.lane.b32.xlu0 %v2937, %s2942
  %v2944 = vpop.permute.xlu0 %2943
  %s2946 = sor.u32 256, 16
  %2947 = vbcast.lane.b32.xlu0 %v2937, %s2946
  %v2948 = vpop.permute.xlu0 %2947
  %s2950 = sor.u32 256, 24
  %2951 = vbcast.lane.b32.xlu0 %v2937, %s2950
  %v2952 = vpop.permute.xlu0 %2951
  %s2954 = sor.u32 256, 32
  %2955 = vbcast.lane.b32.xlu0 %v2937, %s2954
  %v2956 = vpop.permute.xlu0 %2955
  %s2958 = sor.u32 256, 40
  %2959 = vbcast.lane.b32.xlu0 %v2937, %s2958
  %v2960 = vpop.permute.xlu0 %2959
  %s2962 = sor.u32 256, 48
  %2963 = vbcast.lane.b32.xlu0 %v2937, %s2962
  %v2964 = vpop.permute.xlu0 %2963
  %s2966 = sor.u32 256, 56
  %2967 = vbcast.lane.b32.xlu0 %v2937, %s2966
  %v2968 = vpop.permute.xlu0 %2967
  %v2969 = vlaneseq
  %v2970 = vshrl.u32 %v2969, 7
  %v2971 = vsub.s32 7, %v2970
  %v2972 = vrot.slane %v2721, %v2971
  %2974 = vbcast.lane.b32.xlu0 %v2972, 256
  %v2975 = vpop.permute.xlu0 %2974
  %s2977 = sor.u32 256, 8
  %2978 = vbcast.lane.b32.xlu0 %v2972, %s2977
  %v2979 = vpop.permute.xlu0 %2978
  %s2981 = sor.u32 256, 16
  %2982 = vbcast.lane.b32.xlu0 %v2972, %s2981
  %v2983 = vpop.permute.xlu0 %2982
  %s2985 = sor.u32 256, 24
  %2986 = vbcast.lane.b32.xlu0 %v2972, %s2985
  %v2987 = vpop.permute.xlu0 %2986
  %s2989 = sor.u32 256, 32
  %2990 = vbcast.lane.b32.xlu0 %v2972, %s2989
  %v2991 = vpop.permute.xlu0 %2990
  %s2993 = sor.u32 256, 40
  %2994 = vbcast.lane.b32.xlu0 %v2972, %s2993
  %v2995 = vpop.permute.xlu0 %2994
  %s2997 = sor.u32 256, 48
  %2998 = vbcast.lane.b32.xlu0 %v2972, %s2997
  %v2999 = vpop.permute.xlu0 %2998
  %s3001 = sor.u32 256, 56
  %3002 = vbcast.lane.b32.xlu0 %v2972, %s3001
  %v3003 = vpop.permute.xlu0 %3002
  %v3004 = vsel %vm788, %v2730, inf
  %v3005 = vsel %vm789, %v2734, inf
  %v3006 = vsel %vm790, %v2738, inf
  %v3007 = vsel %vm791, %v2742, inf
  %v3008 = vsel %vm792, %v2746, inf
  %v3009 = vsel %vm793, %v2750, inf
  %v3010 = vsel %vm794, %v2754, inf
  %v3011 = vsel %vm795, %v2758, inf
  %v3012 = vsel %vm788, %v2765, inf
  %v3013 = vsel %vm789, %v2769, inf
  %v3014 = vsel %vm790, %v2773, inf
  %v3015 = vsel %vm791, %v2777, inf
  %v3016 = vsel %vm792, %v2781, inf
  %v3017 = vsel %vm793, %v2785, inf
  %v3018 = vsel %vm794, %v2789, inf
  %v3019 = vsel %vm795, %v2793, inf
  %v3020 = vsel %vm788, %v2800, inf
  %v3021 = vsel %vm789, %v2804, inf
  %v3022 = vsel %vm790, %v2808, inf
  %v3023 = vsel %vm791, %v2812, inf
  %v3024 = vsel %vm792, %v2816, inf
  %v3025 = vsel %vm793, %v2820, inf
  %v3026 = vsel %vm794, %v2824, inf
  %v3027 = vsel %vm795, %v2828, inf
  %v3028 = vsel %vm788, %v2835, inf
  %v3029 = vsel %vm789, %v2839, inf
  %v3030 = vsel %vm790, %v2843, inf
  %v3031 = vsel %vm791, %v2847, inf
  %v3032 = vsel %vm792, %v2851, inf
  %v3033 = vsel %vm793, %v2855, inf
  %v3034 = vsel %vm794, %v2859, inf
  %v3035 = vsel %vm795, %v2863, inf
  %v3036 = vsel %vm788, %v2870, inf
  %v3037 = vsel %vm789, %v2874, inf
  %v3038 = vsel %vm790, %v2878, inf
  %v3039 = vsel %vm791, %v2882, inf
  %v3040 = vsel %vm792, %v2886, inf
  %v3041 = vsel %vm793, %v2890, inf
  %v3042 = vsel %vm794, %v2894, inf
  %v3043 = vsel %vm795, %v2898, inf
  %v3044 = vsel %vm788, %v2905, inf
  %v3045 = vsel %vm789, %v2909, inf
  %v3046 = vsel %vm790, %v2913, inf
  %v3047 = vsel %vm791, %v2917, inf
  %v3048 = vsel %vm792, %v2921, inf
  %v3049 = vsel %vm793, %v2925, inf
  %v3050 = vsel %vm794, %v2929, inf
  %v3051 = vsel %vm795, %v2933, inf
  %v3052 = vsel %vm788, %v2940, inf
  %v3053 = vsel %vm789, %v2944, inf
  %v3054 = vsel %vm790, %v2948, inf
  %v3055 = vsel %vm791, %v2952, inf
  %v3056 = vsel %vm792, %v2956, inf
  %v3057 = vsel %vm793, %v2960, inf
  %v3058 = vsel %vm794, %v2964, inf
  %v3059 = vsel %vm795, %v2968, inf
  %v3060 = vsel %vm788, %v2975, inf
  %v3061 = vsel %vm789, %v2979, inf
  %v3062 = vsel %vm790, %v2983, inf
  %v3063 = vsel %vm791, %v2987, inf
  %v3064 = vsel %vm792, %v2991, inf
  %v3065 = vsel %vm793, %v2995, inf
  %v3066 = vsel %vm794, %v2999, inf
  %v3067 = vsel %vm795, %v3003, inf
  %3068 = vst.msk [vmem:[#allocation3] sm:$0xff] %vm924, %v3004
  %3069 = vst.msk [vmem:[#allocation3 + $0x8] sm:$0xff] %vm924, %v3005
  %3070 = vst.msk [vmem:[#allocation3 + $0x10] sm:$0xff] %vm924, %v3006
  %3071 = vst.msk [vmem:[#allocation3 + $0x18] sm:$0xff] %vm924, %v3007
  %3072 = vst.msk [vmem:[#allocation3 + $0x20] sm:$0xff] %vm924, %v3008
  %3073 = vst.msk [vmem:[#allocation3 + $0x28] sm:$0xff] %vm924, %v3009
  %3074 = vst.msk [vmem:[#allocation3 + $0x30] sm:$0xff] %vm924, %v3010
  %3075 = vst.msk [vmem:[#allocation3 + $0x38] sm:$0xff] %vm924, %v3011
  %3076 = vst.msk [vmem:[#allocation3 + $0x40] sm:$0xff] %vm924, %v3012
  %3077 = vst.msk [vmem:[#allocation3 + $0x48] sm:$0xff] %vm924, %v3013
  %3078 = vst.msk [vmem:[#allocation3 + $0x50] sm:$0xff] %vm924, %v3014
  %3079 = vst.msk [vmem:[#allocation3 + $0x58] sm:$0xff] %vm924, %v3015
  %3080 = vst.msk [vmem:[#allocation3 + $0x60] sm:$0xff] %vm924, %v3016
  %3081 = vst.msk [vmem:[#allocation3 + $0x68] sm:$0xff] %vm924, %v3017
  %3082 = vst.msk [vmem:[#allocation3 + $0x70] sm:$0xff] %vm924, %v3018
  %3083 = vst.msk [vmem:[#allocation3 + $0x78] sm:$0xff] %vm924, %v3019
  %3084 = vst.msk [vmem:[#allocation3 + $0x80] sm:$0xff] %vm924, %v3020
  %3085 = vst.msk [vmem:[#allocation3 + $0x88] sm:$0xff] %vm924, %v3021
  %3086 = vst.msk [vmem:[#allocation3 + $0x90] sm:$0xff] %vm924, %v3022
  %3087 = vst.msk [vmem:[#allocation3 + $0x98] sm:$0xff] %vm924, %v3023
  %3088 = vst.msk [vmem:[#allocation3 + $0xa0] sm:$0xff] %vm924, %v3024
  %3089 = vst.msk [vmem:[#allocation3 + $0xa8] sm:$0xff] %vm924, %v3025
  %3090 = vst.msk [vmem:[#allocation3 + $0xb0] sm:$0xff] %vm924, %v3026
  %3091 = vst.msk [vmem:[#allocation3 + $0xb8] sm:$0xff] %vm924, %v3027
  %3092 = vst.msk [vmem:[#allocation3 + $0xc0] sm:$0xff] %vm924, %v3028
  %3093 = vst.msk [vmem:[#allocation3 + $0xc8] sm:$0xff] %vm924, %v3029
  %3094 = vst.msk [vmem:[#allocation3 + $0xd0] sm:$0xff] %vm924, %v3030
  %3095 = vst.msk [vmem:[#allocation3 + $0xd8] sm:$0xff] %vm924, %v3031
  %3096 = vst.msk [vmem:[#allocation3 + $0xe0] sm:$0xff] %vm924, %v3032
  %3097 = vst.msk [vmem:[#allocation3 + $0xe8] sm:$0xff] %vm924, %v3033
  %3098 = vst.msk [vmem:[#allocation3 + $0xf0] sm:$0xff] %vm924, %v3034
  %3099 = vst.msk [vmem:[#allocation3 + $0xf8] sm:$0xff] %vm924, %v3035
  %3100 = vst.msk [vmem:[#allocation3 + $0x100] sm:$0xff] %vm924, %v3036
  %3101 = vst.msk [vmem:[#allocation3 + $0x108] sm:$0xff] %vm924, %v3037
  %3102 = vst.msk [vmem:[#allocation3 + $0x110] sm:$0xff] %vm924, %v3038
  %3103 = vst.msk [vmem:[#allocation3 + $0x118] sm:$0xff] %vm924, %v3039
  %3104 = vst.msk [vmem:[#allocation3 + $0x120] sm:$0xff] %vm924, %v3040
  %3105 = vst.msk [vmem:[#allocation3 + $0x128] sm:$0xff] %vm924, %v3041
  %3106 = vst.msk [vmem:[#allocation3 + $0x130] sm:$0xff] %vm924, %v3042
  %3107 = vst.msk [vmem:[#allocation3 + $0x138] sm:$0xff] %vm924, %v3043
  %3108 = vst.msk [vmem:[#allocation3 + $0x140] sm:$0xff] %vm924, %v3044
  %3109 = vst.msk [vmem:[#allocation3 + $0x148] sm:$0xff] %vm924, %v3045
  %3110 = vst.msk [vmem:[#allocation3 + $0x150] sm:$0xff] %vm924, %v3046
  %3111 = vst.msk [vmem:[#allocation3 + $0x158] sm:$0xff] %vm924, %v3047
  %3112 = vst.msk [vmem:[#allocation3 + $0x160] sm:$0xff] %vm924, %v3048
  %3113 = vst.msk [vmem:[#allocation3 + $0x168] sm:$0xff] %vm924, %v3049
  %3114 = vst.msk [vmem:[#allocation3 + $0x170] sm:$0xff] %vm924, %v3050
  %3115 = vst.msk [vmem:[#allocation3 + $0x178] sm:$0xff] %vm924, %v3051
  %3116 = vst.msk [vmem:[#allocation3 + $0x180] sm:$0xff] %vm924, %v3052
  %3117 = vst.msk [vmem:[#allocation3 + $0x188] sm:$0xff] %vm924, %v3053
  %3118 = vst.msk [vmem:[#allocation3 + $0x190] sm:$0xff] %vm924, %v3054
  %3119 = vst.msk [vmem:[#allocation3 + $0x198] sm:$0xff] %vm924, %v3055
  %3120 = vst.msk [vmem:[#allocation3 + $0x1a0] sm:$0xff] %vm924, %v3056
  %3121 = vst.msk [vmem:[#allocation3 + $0x1a8] sm:$0xff] %vm924, %v3057
  %3122 = vst.msk [vmem:[#allocation3 + $0x1b0] sm:$0xff] %vm924, %v3058
  %3123 = vst.msk [vmem:[#allocation3 + $0x1b8] sm:$0xff] %vm924, %v3059
  %3124 = vst.msk [vmem:[#allocation3 + $0x1c0] sm:$0xff] %vm924, %v3060
  %3125 = vst.msk [vmem:[#allocation3 + $0x1c8] sm:$0xff] %vm924, %v3061
  %3126 = vst.msk [vmem:[#allocation3 + $0x1d0] sm:$0xff] %vm924, %v3062
  %3127 = vst.msk [vmem:[#allocation3 + $0x1d8] sm:$0xff] %vm924, %v3063
  %3128 = vst.msk [vmem:[#allocation3 + $0x1e0] sm:$0xff] %vm924, %v3064
  %3129 = vst.msk [vmem:[#allocation3 + $0x1e8] sm:$0xff] %vm924, %v3065
  %3130 = vst.msk [vmem:[#allocation3 + $0x1f0] sm:$0xff] %vm924, %v3066
  %3131 = vst.msk [vmem:[#allocation3 + $0x1f8] sm:$0xff] %vm924, %v3067
  %3132 = vst.msk [vmem:[#allocation6] sm:$0xff] %vm924, 0.0
  %3133 = vst.msk [vmem:[#allocation7] sm:$0xff] %vm924, 0.0
  // While loop
  $region37: #{median_gcn_forward.1} parent=0 // loop_pre_header
    _
  $region38: #{median_gcn_forward.1} parent=0 // loop_header
    %s3135 = sphi 0, %s3137
    %p3136 = scmp.ge.s32.totalorder %s3135, %s28
  $region39: #{median_gcn_forward.1} parent=0 // loop_header_branch
    %3139 = sbr.rel (%p3136) target = $region43
  $region40: #{median_gcn_forward.1} parent=0 // loop_body
    %v3140 = vld [vmem:[#allocation3] sm:$0xff]
    %v3141 = vld [vmem:[#allocation3 + $0x8] sm:$0xff]
    %v3142 = vld [vmem:[#allocation3 + $0x10] sm:$0xff]
    %v3143 = vld [vmem:[#allocation3 + $0x18] sm:$0xff]
    %v3144 = vld [vmem:[#allocation3 + $0x20] sm:$0xff]
    %v3145 = vld [vmem:[#allocation3 + $0x28] sm:$0xff]
    %v3146 = vld [vmem:[#allocation3 + $0x30] sm:$0xff]
    %v3147 = vld [vmem:[#allocation3 + $0x38] sm:$0xff]
    %v3148 = vld [vmem:[#allocation3 + $0x40] sm:$0xff]
    %v3149 = vld [vmem:[#allocation3 + $0x48] sm:$0xff]
    %v3150 = vld [vmem:[#allocation3 + $0x50] sm:$0xff]
    %v3151 = vld [vmem:[#allocation3 + $0x58] sm:$0xff]
    %v3152 = vld [vmem:[#allocation3 + $0x60] sm:$0xff]
    %v3153 = vld [vmem:[#allocation3 + $0x68] sm:$0xff]
    %v3154 = vld [vmem:[#allocation3 + $0x70] sm:$0xff]
    %v3155 = vld [vmem:[#allocation3 + $0x78] sm:$0xff]
    %v3156 = vld [vmem:[#allocation3 + $0x80] sm:$0xff]
    %v3157 = vld [vmem:[#allocation3 + $0x88] sm:$0xff]
    %v3158 = vld [vmem:[#allocation3 + $0x90] sm:$0xff]
    %v3159 = vld [vmem:[#allocation3 + $0x98] sm:$0xff]
    %v3160 = vld [vmem:[#allocation3 + $0xa0] sm:$0xff]
    %v3161 = vld [vmem:[#allocation3 + $0xa8] sm:$0xff]
    %v3162 = vld [vmem:[#allocation3 + $0xb0] sm:$0xff]
    %v3163 = vld [vmem:[#allocation3 + $0xb8] sm:$0xff]
    %v3164 = vld [vmem:[#allocation3 + $0xc0] sm:$0xff]
    %v3165 = vld [vmem:[#allocation3 + $0xc8] sm:$0xff]
    %v3166 = vld [vmem:[#allocation3 + $0xd0] sm:$0xff]
    %v3167 = vld [vmem:[#allocation3 + $0xd8] sm:$0xff]
    %v3168 = vld [vmem:[#allocation3 + $0xe0] sm:$0xff]
    %v3169 = vld [vmem:[#allocation3 + $0xe8] sm:$0xff]
    %v3170 = vld [vmem:[#allocation3 + $0xf0] sm:$0xff]
    %v3171 = vld [vmem:[#allocation3 + $0xf8] sm:$0xff]
    %v3172 = vld [vmem:[#allocation3 + $0x100] sm:$0xff]
    %v3173 = vld [vmem:[#allocation3 + $0x108] sm:$0xff]
    %v3174 = vld [vmem:[#allocation3 + $0x110] sm:$0xff]
    %v3175 = vld [vmem:[#allocation3 + $0x118] sm:$0xff]
    %v3176 = vld [vmem:[#allocation3 + $0x120] sm:$0xff]
    %v3177 = vld [vmem:[#allocation3 + $0x128] sm:$0xff]
    %v3178 = vld [vmem:[#allocation3 + $0x130] sm:$0xff]
    %v3179 = vld [vmem:[#allocation3 + $0x138] sm:$0xff]
    %v3180 = vld [vmem:[#allocation3 + $0x140] sm:$0xff]
    %v3181 = vld [vmem:[#allocation3 + $0x148] sm:$0xff]
    %v3182 = vld [vmem:[#allocation3 + $0x150] sm:$0xff]
    %v3183 = vld [vmem:[#allocation3 + $0x158] sm:$0xff]
    %v3184 = vld [vmem:[#allocation3 + $0x160] sm:$0xff]
    %v3185 = vld [vmem:[#allocation3 + $0x168] sm:$0xff]
    %v3186 = vld [vmem:[#allocation3 + $0x170] sm:$0xff]
    %v3187 = vld [vmem:[#allocation3 + $0x178] sm:$0xff]
    %v3188 = vld [vmem:[#allocation3 + $0x180] sm:$0xff]
    %v3189 = vld [vmem:[#allocation3 + $0x188] sm:$0xff]
    %v3190 = vld [vmem:[#allocation3 + $0x190] sm:$0xff]
    %v3191 = vld [vmem:[#allocation3 + $0x198] sm:$0xff]
    %v3192 = vld [vmem:[#allocation3 + $0x1a0] sm:$0xff]
    %v3193 = vld [vmem:[#allocation3 + $0x1a8] sm:$0xff]
    %v3194 = vld [vmem:[#allocation3 + $0x1b0] sm:$0xff]
    %v3195 = vld [vmem:[#allocation3 + $0x1b8] sm:$0xff]
    %v3196 = vld [vmem:[#allocation3 + $0x1c0] sm:$0xff]
    %v3197 = vld [vmem:[#allocation3 + $0x1c8] sm:$0xff]
    %v3198 = vld [vmem:[#allocation3 + $0x1d0] sm:$0xff]
    %v3199 = vld [vmem:[#allocation3 + $0x1d8] sm:$0xff]
    %v3200 = vld [vmem:[#allocation3 + $0x1e0] sm:$0xff]
    %v3201 = vld [vmem:[#allocation3 + $0x1e8] sm:$0xff]
    %v3202 = vld [vmem:[#allocation3 + $0x1f0] sm:$0xff]
    %v3203 = vld [vmem:[#allocation3 + $0x1f8] sm:$0xff]
    %v3204 = vsel %vm924, %v3140, inf
    %v3205 = vsel %vm924, %v3141, inf
    %v3206 = vmin.f32 %v3204, %v3205
    %v3207 = vsel %vm924, %v3142, inf
    %v3208 = vmin.f32 %v3206, %v3207
    %v3209 = vsel %vm924, %v3143, inf
    %v3210 = vmin.f32 %v3208, %v3209
    %v3211 = vsel %vm924, %v3144, inf
    %v3212 = vmin.f32 %v3210, %v3211
    %v3213 = vsel %vm924, %v3145, inf
    %v3214 = vmin.f32 %v3212, %v3213
    %v3215 = vsel %vm924, %v3146, inf
    %v3216 = vmin.f32 %v3214, %v3215
    %v3217 = vsel %vm924, %v3147, inf
    %v3218 = vmin.f32 %v3216, %v3217
    %v3219 = vrot.slane %v3218, 4
    %v3220 = vmin.f32 %v3218, %v3219
    %v3221 = vrot.slane %v3220, 2
    %v3222 = vmin.f32 %v3220, %v3221
    %v3223 = vrot.slane %v3222, 1
    %v3224 = vmin.f32 %v3222, %v3223
    %v3225 = vsel %vm924, %v3148, inf
    %v3226 = vsel %vm924, %v3149, inf
    %v3227 = vmin.f32 %v3225, %v3226
    %v3228 = vsel %vm924, %v3150, inf
    %v3229 = vmin.f32 %v3227, %v3228
    %v3230 = vsel %vm924, %v3151, inf
    %v3231 = vmin.f32 %v3229, %v3230
    %v3232 = vsel %vm924, %v3152, inf
    %v3233 = vmin.f32 %v3231, %v3232
    %v3234 = vsel %vm924, %v3153, inf
    %v3235 = vmin.f32 %v3233, %v3234
    %v3236 = vsel %vm924, %v3154, inf
    %v3237 = vmin.f32 %v3235, %v3236
    %v3238 = vsel %vm924, %v3155, inf
    %v3239 = vmin.f32 %v3237, %v3238
    %v3240 = vrot.slane %v3239, 4
    %v3241 = vmin.f32 %v3239, %v3240
    %v3242 = vrot.slane %v3241, 2
    %v3243 = vmin.f32 %v3241, %v3242
    %v3244 = vrot.slane %v3243, 1
    %v3245 = vmin.f32 %v3243, %v3244
    %v3246 = vsel %vm924, %v3156, inf
    %v3247 = vsel %vm924, %v3157, inf
    %v3248 = vmin.f32 %v3246, %v3247
    %v3249 = vsel %vm924, %v3158, inf
    %v3250 = vmin.f32 %v3248, %v3249
    %v3251 = vsel %vm924, %v3159, inf
    %v3252 = vmin.f32 %v3250, %v3251
    %v3253 = vsel %vm924, %v3160, inf
    %v3254 = vmin.f32 %v3252, %v3253
    %v3255 = vsel %vm924, %v3161, inf
    %v3256 = vmin.f32 %v3254, %v3255
    %v3257 = vsel %vm924, %v3162, inf
    %v3258 = vmin.f32 %v3256, %v3257
    %v3259 = vsel %vm924, %v3163, inf
    %v3260 = vmin.f32 %v3258, %v3259
    %v3261 = vrot.slane %v3260, 4
    %v3262 = vmin.f32 %v3260, %v3261
    %v3263 = vrot.slane %v3262, 2
    %v3264 = vmin.f32 %v3262, %v3263
    %v3265 = vrot.slane %v3264, 1
    %v3266 = vmin.f32 %v3264, %v3265
    %v3267 = vsel %vm924, %v3164, inf
    %v3268 = vsel %vm924, %v3165, inf
    %v3269 = vmin.f32 %v3267, %v3268
    %v3270 = vsel %vm924, %v3166, inf
    %v3271 = vmin.f32 %v3269, %v3270
    %v3272 = vsel %vm924, %v3167, inf
    %v3273 = vmin.f32 %v3271, %v3272
    %v3274 = vsel %vm924, %v3168, inf
    %v3275 = vmin.f32 %v3273, %v3274
    %v3276 = vsel %vm924, %v3169, inf
    %v3277 = vmin.f32 %v3275, %v3276
    %v3278 = vsel %vm924, %v3170, inf
    %v3279 = vmin.f32 %v3277, %v3278
    %v3280 = vsel %vm924, %v3171, inf
    %v3281 = vmin.f32 %v3279, %v3280
    %v3282 = vrot.slane %v3281, 4
    %v3283 = vmin.f32 %v3281, %v3282
    %v3284 = vrot.slane %v3283, 2
    %v3285 = vmin.f32 %v3283, %v3284
    %v3286 = vrot.slane %v3285, 1
    %v3287 = vmin.f32 %v3285, %v3286
    %v3288 = vsel %vm924, %v3172, inf
    %v3289 = vsel %vm924, %v3173, inf
    %v3290 = vmin.f32 %v3288, %v3289
    %v3291 = vsel %vm924, %v3174, inf
    %v3292 = vmin.f32 %v3290, %v3291
    %v3293 = vsel %vm924, %v3175, inf
    %v3294 = vmin.f32 %v3292, %v3293
    %v3295 = vsel %vm924, %v3176, inf
    %v3296 = vmin.f32 %v3294, %v3295
    %v3297 = vsel %vm924, %v3177, inf
    %v3298 = vmin.f32 %v3296, %v3297
    %v3299 = vsel %vm924, %v3178, inf
    %v3300 = vmin.f32 %v3298, %v3299
    %v3301 = vsel %vm924, %v3179, inf
    %v3302 = vmin.f32 %v3300, %v3301
    %v3303 = vrot.slane %v3302, 4
    %v3304 = vmin.f32 %v3302, %v3303
    %v3305 = vrot.slane %v3304, 2
    %v3306 = vmin.f32 %v3304, %v3305
    %v3307 = vrot.slane %v3306, 1
    %v3308 = vmin.f32 %v3306, %v3307
    %v3309 = vsel %vm924, %v3180, inf
    %v3310 = vsel %vm924, %v3181, inf
    %v3311 = vmin.f32 %v3309, %v3310
    %v3312 = vsel %vm924, %v3182, inf
    %v3313 = vmin.f32 %v3311, %v3312
    %v3314 = vsel %vm924, %v3183, inf
    %v3315 = vmin.f32 %v3313, %v3314
    %v3316 = vsel %vm924, %v3184, inf
    %v3317 = vmin.f32 %v3315, %v3316
    %v3318 = vsel %vm924, %v3185, inf
    %v3319 = vmin.f32 %v3317, %v3318
    %v3320 = vsel %vm924, %v3186, inf
    %v3321 = vmin.f32 %v3319, %v3320
    %v3322 = vsel %vm924, %v3187, inf
    %v3323 = vmin.f32 %v3321, %v3322
    %v3324 = vrot.slane %v3323, 4
    %v3325 = vmin.f32 %v3323, %v3324
    %v3326 = vrot.slane %v3325, 2
    %v3327 = vmin.f32 %v3325, %v3326
    %v3328 = vrot.slane %v3327, 1
    %v3329 = vmin.f32 %v3327, %v3328
    %v3330 = vsel %vm924, %v3188, inf
    %v3331 = vsel %vm924, %v3189, inf
    %v3332 = vmin.f32 %v3330, %v3331
    %v3333 = vsel %vm924, %v3190, inf
    %v3334 = vmin.f32 %v3332, %v3333
    %v3335 = vsel %vm924, %v3191, inf
    %v3336 = vmin.f32 %v3334, %v3335
    %v3337 = vsel %vm924, %v3192, inf
    %v3338 = vmin.f32 %v3336, %v3337
    %v3339 = vsel %vm924, %v3193, inf
    %v3340 = vmin.f32 %v3338, %v3339
    %v3341 = vsel %vm924, %v3194, inf
    %v3342 = vmin.f32 %v3340, %v3341
    %v3343 = vsel %vm924, %v3195, inf
    %v3344 = vmin.f32 %v3342, %v3343
    %v3345 = vrot.slane %v3344, 4
    %v3346 = vmin.f32 %v3344, %v3345
    %v3347 = vrot.slane %v3346, 2
    %v3348 = vmin.f32 %v3346, %v3347
    %v3349 = vrot.slane %v3348, 1
    %v3350 = vmin.f32 %v3348, %v3349
    %v3351 = vsel %vm924, %v3196, inf
    %v3352 = vsel %vm924, %v3197, inf
    %v3353 = vmin.f32 %v3351, %v3352
    %v3354 = vsel %vm924, %v3198, inf
    %v3355 = vmin.f32 %v3353, %v3354
    %v3356 = vsel %vm924, %v3199, inf
    %v3357 = vmin.f32 %v3355, %v3356
    %v3358 = vsel %vm924, %v3200, inf
    %v3359 = vmin.f32 %v3357, %v3358
    %v3360 = vsel %vm924, %v3201, inf
    %v3361 = vmin.f32 %v3359, %v3360
    %v3362 = vsel %vm924, %v3202, inf
    %v3363 = vmin.f32 %v3361, %v3362
    %v3364 = vsel %vm924, %v3203, inf
    %v3365 = vmin.f32 %v3363, %v3364
    %v3366 = vrot.slane %v3365, 4
    %v3367 = vmin.f32 %v3365, %v3366
    %v3368 = vrot.slane %v3367, 2
    %v3369 = vmin.f32 %v3367, %v3368
    %v3370 = vrot.slane %v3369, 1
    %v3371 = vmin.f32 %v3369, %v3370
    %vm3372 = vcmp.eq.f32.partialorder %v3140, %v3224
    %vm3373 = vcmp.eq.f32.partialorder %v3141, %v3224
    %vm3374 = vcmp.eq.f32.partialorder %v3142, %v3224
    %vm3375 = vcmp.eq.f32.partialorder %v3143, %v3224
    %vm3376 = vcmp.eq.f32.partialorder %v3144, %v3224
    %vm3377 = vcmp.eq.f32.partialorder %v3145, %v3224
    %vm3378 = vcmp.eq.f32.partialorder %v3146, %v3224
    %vm3379 = vcmp.eq.f32.partialorder %v3147, %v3224
    %vm3380 = vcmp.eq.f32.partialorder %v3148, %v3245
    %vm3381 = vcmp.eq.f32.partialorder %v3149, %v3245
    %vm3382 = vcmp.eq.f32.partialorder %v3150, %v3245
    %vm3383 = vcmp.eq.f32.partialorder %v3151, %v3245
    %vm3384 = vcmp.eq.f32.partialorder %v3152, %v3245
    %vm3385 = vcmp.eq.f32.partialorder %v3153, %v3245
    %vm3386 = vcmp.eq.f32.partialorder %v3154, %v3245
    %vm3387 = vcmp.eq.f32.partialorder %v3155, %v3245
    %vm3388 = vcmp.eq.f32.partialorder %v3156, %v3266
    %vm3389 = vcmp.eq.f32.partialorder %v3157, %v3266
    %vm3390 = vcmp.eq.f32.partialorder %v3158, %v3266
    %vm3391 = vcmp.eq.f32.partialorder %v3159, %v3266
    %vm3392 = vcmp.eq.f32.partialorder %v3160, %v3266
    %vm3393 = vcmp.eq.f32.partialorder %v3161, %v3266
    %vm3394 = vcmp.eq.f32.partialorder %v3162, %v3266
    %vm3395 = vcmp.eq.f32.partialorder %v3163, %v3266
    %vm3396 = vcmp.eq.f32.partialorder %v3164, %v3287
    %vm3397 = vcmp.eq.f32.partialorder %v3165, %v3287
    %vm3398 = vcmp.eq.f32.partialorder %v3166, %v3287
    %vm3399 = vcmp.eq.f32.partialorder %v3167, %v3287
    %vm3400 = vcmp.eq.f32.partialorder %v3168, %v3287
    %vm3401 = vcmp.eq.f32.partialorder %v3169, %v3287
    %vm3402 = vcmp.eq.f32.partialorder %v3170, %v3287
    %vm3403 = vcmp.eq.f32.partialorder %v3171, %v3287
    %vm3404 = vcmp.eq.f32.partialorder %v3172, %v3308
    %vm3405 = vcmp.eq.f32.partialorder %v3173, %v3308
    %vm3406 = vcmp.eq.f32.partialorder %v3174, %v3308
    %vm3407 = vcmp.eq.f32.partialorder %v3175, %v3308
    %vm3408 = vcmp.eq.f32.partialorder %v3176, %v3308
    %vm3409 = vcmp.eq.f32.partialorder %v3177, %v3308
    %vm3410 = vcmp.eq.f32.partialorder %v3178, %v3308
    %vm3411 = vcmp.eq.f32.partialorder %v3179, %v3308
    %vm3412 = vcmp.eq.f32.partialorder %v3180, %v3329
    %vm3413 = vcmp.eq.f32.partialorder %v3181, %v3329
    %vm3414 = vcmp.eq.f32.partialorder %v3182, %v3329
    %vm3415 = vcmp.eq.f32.partialorder %v3183, %v3329
    %vm3416 = vcmp.eq.f32.partialorder %v3184, %v3329
    %vm3417 = vcmp.eq.f32.partialorder %v3185, %v3329
    %vm3418 = vcmp.eq.f32.partialorder %v3186, %v3329
    %vm3419 = vcmp.eq.f32.partialorder %v3187, %v3329
    %vm3420 = vcmp.eq.f32.partialorder %v3188, %v3350
    %vm3421 = vcmp.eq.f32.partialorder %v3189, %v3350
    %vm3422 = vcmp.eq.f32.partialorder %v3190, %v3350
    %vm3423 = vcmp.eq.f32.partialorder %v3191, %v3350
    %vm3424 = vcmp.eq.f32.partialorder %v3192, %v3350
    %vm3425 = vcmp.eq.f32.partialorder %v3193, %v3350
    %vm3426 = vcmp.eq.f32.partialorder %v3194, %v3350
    %vm3427 = vcmp.eq.f32.partialorder %v3195, %v3350
    %vm3428 = vcmp.eq.f32.partialorder %v3196, %v3371
    %vm3429 = vcmp.eq.f32.partialorder %v3197, %v3371
    %vm3430 = vcmp.eq.f32.partialorder %v3198, %v3371
    %vm3431 = vcmp.eq.f32.partialorder %v3199, %v3371
    %vm3432 = vcmp.eq.f32.partialorder %v3200, %v3371
    %vm3433 = vcmp.eq.f32.partialorder %v3201, %v3371
    %vm3434 = vcmp.eq.f32.partialorder %v3202, %v3371
    %vm3435 = vcmp.eq.f32.partialorder %v3203, %v3371
    %v3436 = vsel %vm3372, 1, 0
    %v3437 = vsel %vm3373, 1, 0
    %v3438 = vsel %vm3374, 1, 0
    %v3439 = vsel %vm3375, 1, 0
    %v3440 = vsel %vm3376, 1, 0
    %v3441 = vsel %vm3377, 1, 0
    %v3442 = vsel %vm3378, 1, 0
    %v3443 = vsel %vm3379, 1, 0
    %v3444 = vsel %vm3380, 1, 0
    %v3445 = vsel %vm3381, 1, 0
    %v3446 = vsel %vm3382, 1, 0
    %v3447 = vsel %vm3383, 1, 0
    %v3448 = vsel %vm3384, 1, 0
    %v3449 = vsel %vm3385, 1, 0
    %v3450 = vsel %vm3386, 1, 0
    %v3451 = vsel %vm3387, 1, 0
    %v3452 = vsel %vm3388, 1, 0
    %v3453 = vsel %vm3389, 1, 0
    %v3454 = vsel %vm3390, 1, 0
    %v3455 = vsel %vm3391, 1, 0
    %v3456 = vsel %vm3392, 1, 0
    %v3457 = vsel %vm3393, 1, 0
    %v3458 = vsel %vm3394, 1, 0
    %v3459 = vsel %vm3395, 1, 0
    %v3460 = vsel %vm3396, 1, 0
    %v3461 = vsel %vm3397, 1, 0
    %v3462 = vsel %vm3398, 1, 0
    %v3463 = vsel %vm3399, 1, 0
    %v3464 = vsel %vm3400, 1, 0
    %v3465 = vsel %vm3401, 1, 0
    %v3466 = vsel %vm3402, 1, 0
    %v3467 = vsel %vm3403, 1, 0
    %v3468 = vsel %vm3404, 1, 0
    %v3469 = vsel %vm3405, 1, 0
    %v3470 = vsel %vm3406, 1, 0
    %v3471 = vsel %vm3407, 1, 0
    %v3472 = vsel %vm3408, 1, 0
    %v3473 = vsel %vm3409, 1, 0
    %v3474 = vsel %vm3410, 1, 0
    %v3475 = vsel %vm3411, 1, 0
    %v3476 = vsel %vm3412, 1, 0
    %v3477 = vsel %vm3413, 1, 0
    %v3478 = vsel %vm3414, 1, 0
    %v3479 = vsel %vm3415, 1, 0
    %v3480 = vsel %vm3416, 1, 0
    %v3481 = vsel %vm3417, 1, 0
    %v3482 = vsel %vm3418, 1, 0
    %v3483 = vsel %vm3419, 1, 0
    %v3484 = vsel %vm3420, 1, 0
    %v3485 = vsel %vm3421, 1, 0
    %v3486 = vsel %vm3422, 1, 0
    %v3487 = vsel %vm3423, 1, 0
    %v3488 = vsel %vm3424, 1, 0
    %v3489 = vsel %vm3425, 1, 0
    %v3490 = vsel %vm3426, 1, 0
    %v3491 = vsel %vm3427, 1, 0
    %v3492 = vsel %vm3428, 1, 0
    %v3493 = vsel %vm3429, 1, 0
    %v3494 = vsel %vm3430, 1, 0
    %v3495 = vsel %vm3431, 1, 0
    %v3496 = vsel %vm3432, 1, 0
    %v3497 = vsel %vm3433, 1, 0
    %v3498 = vsel %vm3434, 1, 0
    %v3499 = vsel %vm3435, 1, 0
    %v3500 = vcvt.s32.f32 %v3436
    %v3501 = vcvt.s32.f32 %v3437
    %v3502 = vcvt.s32.f32 %v3438
    %v3503 = vcvt.s32.f32 %v3439
    %v3504 = vcvt.s32.f32 %v3440
    %v3505 = vcvt.s32.f32 %v3441
    %v3506 = vcvt.s32.f32 %v3442
    %v3507 = vcvt.s32.f32 %v3443
    %v3508 = vcvt.s32.f32 %v3444
    %v3509 = vcvt.s32.f32 %v3445
    %v3510 = vcvt.s32.f32 %v3446
    %v3511 = vcvt.s32.f32 %v3447
    %v3512 = vcvt.s32.f32 %v3448
    %v3513 = vcvt.s32.f32 %v3449
    %v3514 = vcvt.s32.f32 %v3450
    %v3515 = vcvt.s32.f32 %v3451
    %v3516 = vcvt.s32.f32 %v3452
    %v3517 = vcvt.s32.f32 %v3453
    %v3518 = vcvt.s32.f32 %v3454
    %v3519 = vcvt.s32.f32 %v3455
    %v3520 = vcvt.s32.f32 %v3456
    %v3521 = vcvt.s32.f32 %v3457
    %v3522 = vcvt.s32.f32 %v3458
    %v3523 = vcvt.s32.f32 %v3459
    %v3524 = vcvt.s32.f32 %v3460
    %v3525 = vcvt.s32.f32 %v3461
    %v3526 = vcvt.s32.f32 %v3462
    %v3527 = vcvt.s32.f32 %v3463
    %v3528 = vcvt.s32.f32 %v3464
    %v3529 = vcvt.s32.f32 %v3465
    %v3530 = vcvt.s32.f32 %v3466
    %v3531 = vcvt.s32.f32 %v3467
    %v3532 = vcvt.s32.f32 %v3468
    %v3533 = vcvt.s32.f32 %v3469
    %v3534 = vcvt.s32.f32 %v3470
    %v3535 = vcvt.s32.f32 %v3471
    %v3536 = vcvt.s32.f32 %v3472
    %v3537 = vcvt.s32.f32 %v3473
    %v3538 = vcvt.s32.f32 %v3474
    %v3539 = vcvt.s32.f32 %v3475
    %v3540 = vcvt.s32.f32 %v3476
    %v3541 = vcvt.s32.f32 %v3477
    %v3542 = vcvt.s32.f32 %v3478
    %v3543 = vcvt.s32.f32 %v3479
    %v3544 = vcvt.s32.f32 %v3480
    %v3545 = vcvt.s32.f32 %v3481
    %v3546 = vcvt.s32.f32 %v3482
    %v3547 = vcvt.s32.f32 %v3483
    %v3548 = vcvt.s32.f32 %v3484
    %v3549 = vcvt.s32.f32 %v3485
    %v3550 = vcvt.s32.f32 %v3486
    %v3551 = vcvt.s32.f32 %v3487
    %v3552 = vcvt.s32.f32 %v3488
    %v3553 = vcvt.s32.f32 %v3489
    %v3554 = vcvt.s32.f32 %v3490
    %v3555 = vcvt.s32.f32 %v3491
    %v3556 = vcvt.s32.f32 %v3492
    %v3557 = vcvt.s32.f32 %v3493
    %v3558 = vcvt.s32.f32 %v3494
    %v3559 = vcvt.s32.f32 %v3495
    %v3560 = vcvt.s32.f32 %v3496
    %v3561 = vcvt.s32.f32 %v3497
    %v3562 = vcvt.s32.f32 %v3498
    %v3563 = vcvt.s32.f32 %v3499
    %v3564 = vsel %vm924, %v3500, 0.0
    %v3565 = vsel %vm924, %v3501, 0.0
    %v3566 = vadd.f32 %v3564, %v3565
    %v3567 = vsel %vm924, %v3502, 0.0
    %v3568 = vadd.f32 %v3566, %v3567
    %v3569 = vsel %vm924, %v3503, 0.0
    %v3570 = vadd.f32 %v3568, %v3569
    %v3571 = vsel %vm924, %v3504, 0.0
    %v3572 = vadd.f32 %v3570, %v3571
    %v3573 = vsel %vm924, %v3505, 0.0
    %v3574 = vadd.f32 %v3572, %v3573
    %v3575 = vsel %vm924, %v3506, 0.0
    %v3576 = vadd.f32 %v3574, %v3575
    %v3577 = vsel %vm924, %v3507, 0.0
    %v3578 = vadd.f32 %v3576, %v3577
    %v3579 = vrot.slane %v3578, 4
    %v3580 = vadd.f32 %v3578, %v3579
    %v3581 = vrot.slane %v3580, 2
    %v3582 = vadd.f32 %v3580, %v3581
    %v3583 = vrot.slane %v3582, 1
    %v3584 = vadd.f32 %v3582, %v3583
    %v3585 = vsel %vm924, %v3508, 0.0
    %v3586 = vsel %vm924, %v3509, 0.0
    %v3587 = vadd.f32 %v3585, %v3586
    %v3588 = vsel %vm924, %v3510, 0.0
    %v3589 = vadd.f32 %v3587, %v3588
    %v3590 = vsel %vm924, %v3511, 0.0
    %v3591 = vadd.f32 %v3589, %v3590
    %v3592 = vsel %vm924, %v3512, 0.0
    %v3593 = vadd.f32 %v3591, %v3592
    %v3594 = vsel %vm924, %v3513, 0.0
    %v3595 = vadd.f32 %v3593, %v3594
    %v3596 = vsel %vm924, %v3514, 0.0
    %v3597 = vadd.f32 %v3595, %v3596
    %v3598 = vsel %vm924, %v3515, 0.0
    %v3599 = vadd.f32 %v3597, %v3598
    %v3600 = vrot.slane %v3599, 4
    %v3601 = vadd.f32 %v3599, %v3600
    %v3602 = vrot.slane %v3601, 2
    %v3603 = vadd.f32 %v3601, %v3602
    %v3604 = vrot.slane %v3603, 1
    %v3605 = vadd.f32 %v3603, %v3604
    %v3606 = vsel %vm924, %v3516, 0.0
    %v3607 = vsel %vm924, %v3517, 0.0
    %v3608 = vadd.f32 %v3606, %v3607
    %v3609 = vsel %vm924, %v3518, 0.0
    %v3610 = vadd.f32 %v3608, %v3609
    %v3611 = vsel %vm924, %v3519, 0.0
    %v3612 = vadd.f32 %v3610, %v3611
    %v3613 = vsel %vm924, %v3520, 0.0
    %v3614 = vadd.f32 %v3612, %v3613
    %v3615 = vsel %vm924, %v3521, 0.0
    %v3616 = vadd.f32 %v3614, %v3615
    %v3617 = vsel %vm924, %v3522, 0.0
    %v3618 = vadd.f32 %v3616, %v3617
    %v3619 = vsel %vm924, %v3523, 0.0
    %v3620 = vadd.f32 %v3618, %v3619
    %v3621 = vrot.slane %v3620, 4
    %v3622 = vadd.f32 %v3620, %v3621
    %v3623 = vrot.slane %v3622, 2
    %v3624 = vadd.f32 %v3622, %v3623
    %v3625 = vrot.slane %v3624, 1
    %v3626 = vadd.f32 %v3624, %v3625
    %v3627 = vsel %vm924, %v3524, 0.0
    %v3628 = vsel %vm924, %v3525, 0.0
    %v3629 = vadd.f32 %v3627, %v3628
    %v3630 = vsel %vm924, %v3526, 0.0
    %v3631 = vadd.f32 %v3629, %v3630
    %v3632 = vsel %vm924, %v3527, 0.0
    %v3633 = vadd.f32 %v3631, %v3632
    %v3634 = vsel %vm924, %v3528, 0.0
    %v3635 = vadd.f32 %v3633, %v3634
    %v3636 = vsel %vm924, %v3529, 0.0
    %v3637 = vadd.f32 %v3635, %v3636
    %v3638 = vsel %vm924, %v3530, 0.0
    %v3639 = vadd.f32 %v3637, %v3638
    %v3640 = vsel %vm924, %v3531, 0.0
    %v3641 = vadd.f32 %v3639, %v3640
    %v3642 = vrot.slane %v3641, 4
    %v3643 = vadd.f32 %v3641, %v3642
    %v3644 = vrot.slane %v3643, 2
    %v3645 = vadd.f32 %v3643, %v3644
    %v3646 = vrot.slane %v3645, 1
    %v3647 = vadd.f32 %v3645, %v3646
    %v3648 = vsel %vm924, %v3532, 0.0
    %v3649 = vsel %vm924, %v3533, 0.0
    %v3650 = vadd.f32 %v3648, %v3649
    %v3651 = vsel %vm924, %v3534, 0.0
    %v3652 = vadd.f32 %v3650, %v3651
    %v3653 = vsel %vm924, %v3535, 0.0
    %v3654 = vadd.f32 %v3652, %v3653
    %v3655 = vsel %vm924, %v3536, 0.0
    %v3656 = vadd.f32 %v3654, %v3655
    %v3657 = vsel %vm924, %v3537, 0.0
    %v3658 = vadd.f32 %v3656, %v3657
    %v3659 = vsel %vm924, %v3538, 0.0
    %v3660 = vadd.f32 %v3658, %v3659
    %v3661 = vsel %vm924, %v3539, 0.0
    %v3662 = vadd.f32 %v3660, %v3661
    %v3663 = vrot.slane %v3662, 4
    %v3664 = vadd.f32 %v3662, %v3663
    %v3665 = vrot.slane %v3664, 2
    %v3666 = vadd.f32 %v3664, %v3665
    %v3667 = vrot.slane %v3666, 1
    %v3668 = vadd.f32 %v3666, %v3667
    %v3669 = vsel %vm924, %v3540, 0.0
    %v3670 = vsel %vm924, %v3541, 0.0
    %v3671 = vadd.f32 %v3669, %v3670
    %v3672 = vsel %vm924, %v3542, 0.0
    %v3673 = vadd.f32 %v3671, %v3672
    %v3674 = vsel %vm924, %v3543, 0.0
    %v3675 = vadd.f32 %v3673, %v3674
    %v3676 = vsel %vm924, %v3544, 0.0
    %v3677 = vadd.f32 %v3675, %v3676
    %v3678 = vsel %vm924, %v3545, 0.0
    %v3679 = vadd.f32 %v3677, %v3678
    %v3680 = vsel %vm924, %v3546, 0.0
    %v3681 = vadd.f32 %v3679, %v3680
    %v3682 = vsel %vm924, %v3547, 0.0
    %v3683 = vadd.f32 %v3681, %v3682
    %v3684 = vrot.slane %v3683, 4
    %v3685 = vadd.f32 %v3683, %v3684
    %v3686 = vrot.slane %v3685, 2
    %v3687 = vadd.f32 %v3685, %v3686
    %v3688 = vrot.slane %v3687, 1
    %v3689 = vadd.f32 %v3687, %v3688
    %v3690 = vsel %vm924, %v3548, 0.0
    %v3691 = vsel %vm924, %v3549, 0.0
    %v3692 = vadd.f32 %v3690, %v3691
    %v3693 = vsel %vm924, %v3550, 0.0
    %v3694 = vadd.f32 %v3692, %v3693
    %v3695 = vsel %vm924, %v3551, 0.0
    %v3696 = vadd.f32 %v3694, %v3695
    %v3697 = vsel %vm924, %v3552, 0.0
    %v3698 = vadd.f32 %v3696, %v3697
    %v3699 = vsel %vm924, %v3553, 0.0
    %v3700 = vadd.f32 %v3698, %v3699
    %v3701 = vsel %vm924, %v3554, 0.0
    %v3702 = vadd.f32 %v3700, %v3701
    %v3703 = vsel %vm924, %v3555, 0.0
    %v3704 = vadd.f32 %v3702, %v3703
    %v3705 = vrot.slane %v3704, 4
    %v3706 = vadd.f32 %v3704, %v3705
    %v3707 = vrot.slane %v3706, 2
    %v3708 = vadd.f32 %v3706, %v3707
    %v3709 = vrot.slane %v3708, 1
    %v3710 = vadd.f32 %v3708, %v3709
    %v3711 = vsel %vm924, %v3556, 0.0
    %v3712 = vsel %vm924, %v3557, 0.0
    %v3713 = vadd.f32 %v3711, %v3712
    %v3714 = vsel %vm924, %v3558, 0.0
    %v3715 = vadd.f32 %v3713, %v3714
    %v3716 = vsel %vm924, %v3559, 0.0
    %v3717 = vadd.f32 %v3715, %v3716
    %v3718 = vsel %vm924, %v3560, 0.0
    %v3719 = vadd.f32 %v3717, %v3718
    %v3720 = vsel %vm924, %v3561, 0.0
    %v3721 = vadd.f32 %v3719, %v3720
    %v3722 = vsel %vm924, %v3562, 0.0
    %v3723 = vadd.f32 %v3721, %v3722
    %v3724 = vsel %vm924, %v3563, 0.0
    %v3725 = vadd.f32 %v3723, %v3724
    %v3726 = vrot.slane %v3725, 4
    %v3727 = vadd.f32 %v3725, %v3726
    %v3728 = vrot.slane %v3727, 2
    %v3729 = vadd.f32 %v3727, %v3728
    %v3730 = vrot.slane %v3729, 1
    %v3731 = vadd.f32 %v3729, %v3730
    %v3732 = vld [vmem:[#allocation6] sm:$0xff]
    %v3734 = vlaneseq
    %v3735 = vshrl.u32 %v3734, 7
    %v3736 = vsub.s32 0, %v3735
    %v3737 = vrot.slane %v45, %v3736
    %vm3739 = vcmp.le.f32.partialorder %v3732, %v3737
    %vm3748 = vcmask 1041409
    %v3749 = vsel %vm3748, %v3605, %v3584
    %vm3750 = vcmask 1042434
    %v3751 = vsel %vm3750, %v3626, %v3749
    %vm3752 = vcmask 1043459
    %v3753 = vsel %vm3752, %v3647, %v3751
    %vm3754 = vcmask 1044484
    %v3755 = vsel %vm3754, %v3668, %v3753
    %vm3756 = vcmask 1045509
    %v3757 = vsel %vm3756, %v3689, %v3755
    %vm3758 = vcmask 1046534
    %v3759 = vsel %vm3758, %v3710, %v3757
    %vm3760 = vcmask 1047559
    %v3761 = vsel %vm3760, %v3731, %v3759
    %v3763 = vadd.f32 %v3732, %v3761
    %vm3764 = vcmp.lt.f32.partialorder %v3737, %v3763
    %vm3765 = vmand %vm3739, %vm3764
    %v3766 = vld [vmem:[#allocation7] sm:$0xff]
    %v3775 = vsel %vm3748, %v3245, %v3224
    %v3776 = vsel %vm3750, %v3266, %v3775
    %v3777 = vsel %vm3752, %v3287, %v3776
    %v3778 = vsel %vm3754, %v3308, %v3777
    %v3779 = vsel %vm3756, %v3329, %v3778
    %v3780 = vsel %vm3758, %v3350, %v3779
    %v3781 = vsel %vm3760, %v3371, %v3780
    %v3783 = vsel %vm3765, %v3781, %v3766
    %3784 = vst.msk [vmem:[#allocation7] sm:$0xff] %vm924, %v3783
    %3785 = vst.msk [vmem:[#allocation6] sm:$0xff] %vm924, %v3763
    %v3786 = vsel %vm3372, inf, %v3140
    %v3787 = vsel %vm3373, inf, %v3141
    %v3788 = vsel %vm3374, inf, %v3142
    %v3789 = vsel %vm3375, inf, %v3143
    %v3790 = vsel %vm3376, inf, %v3144
    %v3791 = vsel %vm3377, inf, %v3145
    %v3792 = vsel %vm3378, inf, %v3146
    %v3793 = vsel %vm3379, inf, %v3147
    %v3794 = vsel %vm3380, inf, %v3148
    %v3795 = vsel %vm3381, inf, %v3149
    %v3796 = vsel %vm3382, inf, %v3150
    %v3797 = vsel %vm3383, inf, %v3151
    %v3798 = vsel %vm3384, inf, %v3152
    %v3799 = vsel %vm3385, inf, %v3153
    %v3800 = vsel %vm3386, inf, %v3154
    %v3801 = vsel %vm3387, inf, %v3155
    %v3802 = vsel %vm3388, inf, %v3156
    %v3803 = vsel %vm3389, inf, %v3157
    %v3804 = vsel %vm3390, inf, %v3158
    %v3805 = vsel %vm3391, inf, %v3159
    %v3806 = vsel %vm3392, inf, %v3160
    %v3807 = vsel %vm3393, inf, %v3161
    %v3808 = vsel %vm3394, inf, %v3162
    %v3809 = vsel %vm3395, inf, %v3163
    %v3810 = vsel %vm3396, inf, %v3164
    %v3811 = vsel %vm3397, inf, %v3165
    %v3812 = vsel %vm3398, inf, %v3166
    %v3813 = vsel %vm3399, inf, %v3167
    %v3814 = vsel %vm3400, inf, %v3168
    %v3815 = vsel %vm3401, inf, %v3169
    %v3816 = vsel %vm3402, inf, %v3170
    %v3817 = vsel %vm3403, inf, %v3171
    %v3818 = vsel %vm3404, inf, %v3172
    %v3819 = vsel %vm3405, inf, %v3173
    %v3820 = vsel %vm3406, inf, %v3174
    %v3821 = vsel %vm3407, inf, %v3175
    %v3822 = vsel %vm3408, inf, %v3176
    %v3823 = vsel %vm3409, inf, %v3177
    %v3824 = vsel %vm3410, inf, %v3178
    %v3825 = vsel %vm3411, inf, %v3179
    %v3826 = vsel %vm3412, inf, %v3180
    %v3827 = vsel %vm3413, inf, %v3181
    %v3828 = vsel %vm3414, inf, %v3182
    %v3829 = vsel %vm3415, inf, %v3183
    %v3830 = vsel %vm3416, inf, %v3184
    %v3831 = vsel %vm3417, inf, %v3185
    %v3832 = vsel %vm3418, inf, %v3186
    %v3833 = vsel %vm3419, inf, %v3187
    %v3834 = vsel %vm3420, inf, %v3188
    %v3835 = vsel %vm3421, inf, %v3189
    %v3836 = vsel %vm3422, inf, %v3190
    %v3837 = vsel %vm3423, inf, %v3191
    %v3838 = vsel %vm3424, inf, %v3192
    %v3839 = vsel %vm3425, inf, %v3193
    %v3840 = vsel %vm3426, inf, %v3194
    %v3841 = vsel %vm3427, inf, %v3195
    %v3842 = vsel %vm3428, inf, %v3196
    %v3843 = vsel %vm3429, inf, %v3197
    %v3844 = vsel %vm3430, inf, %v3198
    %v3845 = vsel %vm3431, inf, %v3199
    %v3846 = vsel %vm3432, inf, %v3200
    %v3847 = vsel %vm3433, inf, %v3201
    %v3848 = vsel %vm3434, inf, %v3202
    %v3849 = vsel %vm3435, inf, %v3203
    %3850 = vst.msk [vmem:[#allocation3] sm:$0xff] %vm924, %v3786
    %3851 = vst.msk [vmem:[#allocation3 + $0x8] sm:$0xff] %vm924, %v3787
    %3852 = vst.msk [vmem:[#allocation3 + $0x10] sm:$0xff] %vm924, %v3788
    %3853 = vst.msk [vmem:[#allocation3 + $0x18] sm:$0xff] %vm924, %v3789
    %3854 = vst.msk [vmem:[#allocation3 + $0x20] sm:$0xff] %vm924, %v3790
    %3855 = vst.msk [vmem:[#allocation3 + $0x28] sm:$0xff] %vm924, %v3791
    %3856 = vst.msk [vmem:[#allocation3 + $0x30] sm:$0xff] %vm924, %v3792
    %3857 = vst.msk [vmem:[#allocation3 + $0x38] sm:$0xff] %vm924, %v3793
    %3858 = vst.msk [vmem:[#allocation3 + $0x40] sm:$0xff] %vm924, %v3794
    %3859 = vst.msk [vmem:[#allocation3 + $0x48] sm:$0xff] %vm924, %v3795
    %3860 = vst.msk [vmem:[#allocation3 + $0x50] sm:$0xff] %vm924, %v3796
    %3861 = vst.msk [vmem:[#allocation3 + $0x58] sm:$0xff] %vm924, %v3797
    %3862 = vst.msk [vmem:[#allocation3 + $0x60] sm:$0xff] %vm924, %v3798
    %3863 = vst.msk [vmem:[#allocation3 + $0x68] sm:$0xff] %vm924, %v3799
    %3864 = vst.msk [vmem:[#allocation3 + $0x70] sm:$0xff] %vm924, %v3800
    %3865 = vst.msk [vmem:[#allocation3 + $0x78] sm:$0xff] %vm924, %v3801
    %3866 = vst.msk [vmem:[#allocation3 + $0x80] sm:$0xff] %vm924, %v3802
    %3867 = vst.msk [vmem:[#allocation3 + $0x88] sm:$0xff] %vm924, %v3803
    %3868 = vst.msk [vmem:[#allocation3 + $0x90] sm:$0xff] %vm924, %v3804
    %3869 = vst.msk [vmem:[#allocation3 + $0x98] sm:$0xff] %vm924, %v3805
    %3870 = vst.msk [vmem:[#allocation3 + $0xa0] sm:$0xff] %vm924, %v3806
    %3871 = vst.msk [vmem:[#allocation3 + $0xa8] sm:$0xff] %vm924, %v3807
    %3872 = vst.msk [vmem:[#allocation3 + $0xb0] sm:$0xff] %vm924, %v3808
    %3873 = vst.msk [vmem:[#allocation3 + $0xb8] sm:$0xff] %vm924, %v3809
    %3874 = vst.msk [vmem:[#allocation3 + $0xc0] sm:$0xff] %vm924, %v3810
    %3875 = vst.msk [vmem:[#allocation3 + $0xc8] sm:$0xff] %vm924, %v3811
    %3876 = vst.msk [vmem:[#allocation3 + $0xd0] sm:$0xff] %vm924, %v3812
    %3877 = vst.msk [vmem:[#allocation3 + $0xd8] sm:$0xff] %vm924, %v3813
    %3878 = vst.msk [vmem:[#allocation3 + $0xe0] sm:$0xff] %vm924, %v3814
    %3879 = vst.msk [vmem:[#allocation3 + $0xe8] sm:$0xff] %vm924, %v3815
    %3880 = vst.msk [vmem:[#allocation3 + $0xf0] sm:$0xff] %vm924, %v3816
    %3881 = vst.msk [vmem:[#allocation3 + $0xf8] sm:$0xff] %vm924, %v3817
    %3882 = vst.msk [vmem:[#allocation3 + $0x100] sm:$0xff] %vm924, %v3818
    %3883 = vst.msk [vmem:[#allocation3 + $0x108] sm:$0xff] %vm924, %v3819
    %3884 = vst.msk [vmem:[#allocation3 + $0x110] sm:$0xff] %vm924, %v3820
    %3885 = vst.msk [vmem:[#allocation3 + $0x118] sm:$0xff] %vm924, %v3821
    %3886 = vst.msk [vmem:[#allocation3 + $0x120] sm:$0xff] %vm924, %v3822
    %3887 = vst.msk [vmem:[#allocation3 + $0x128] sm:$0xff] %vm924, %v3823
    %3888 = vst.msk [vmem:[#allocation3 + $0x130] sm:$0xff] %vm924, %v3824
    %3889 = vst.msk [vmem:[#allocation3 + $0x138] sm:$0xff] %vm924, %v3825
    %3890 = vst.msk [vmem:[#allocation3 + $0x140] sm:$0xff] %vm924, %v3826
    %3891 = vst.msk [vmem:[#allocation3 + $0x148] sm:$0xff] %vm924, %v3827
    %3892 = vst.msk [vmem:[#allocation3 + $0x150] sm:$0xff] %vm924, %v3828
    %3893 = vst.msk [vmem:[#allocation3 + $0x158] sm:$0xff] %vm924, %v3829
    %3894 = vst.msk [vmem:[#allocation3 + $0x160] sm:$0xff] %vm924, %v3830
    %3895 = vst.msk [vmem:[#allocation3 + $0x168] sm:$0xff] %vm924, %v3831
    %3896 = vst.msk [vmem:[#allocation3 + $0x170] sm:$0xff] %vm924, %v3832
    %3897 = vst.msk [vmem:[#allocation3 + $0x178] sm:$0xff] %vm924, %v3833
    %3898 = vst.msk [vmem:[#allocation3 + $0x180] sm:$0xff] %vm924, %v3834
    %3899 = vst.msk [vmem:[#allocation3 + $0x188] sm:$0xff] %vm924, %v3835
    %3900 = vst.msk [vmem:[#allocation3 + $0x190] sm:$0xff] %vm924, %v3836
    %3901 = vst.msk [vmem:[#allocation3 + $0x198] sm:$0xff] %vm924, %v3837
    %3902 = vst.msk [vmem:[#allocation3 + $0x1a0] sm:$0xff] %vm924, %v3838
    %3903 = vst.msk [vmem:[#allocation3 + $0x1a8] sm:$0xff] %vm924, %v3839
    %3904 = vst.msk [vmem:[#allocation3 + $0x1b0] sm:$0xff] %vm924, %v3840
    %3905 = vst.msk [vmem:[#allocation3 + $0x1b8] sm:$0xff] %vm924, %v3841
    %3906 = vst.msk [vmem:[#allocation3 + $0x1c0] sm:$0xff] %vm924, %v3842
    %3907 = vst.msk [vmem:[#allocation3 + $0x1c8] sm:$0xff] %vm924, %v3843
    %3908 = vst.msk [vmem:[#allocation3 + $0x1d0] sm:$0xff] %vm924, %v3844
    %3909 = vst.msk [vmem:[#allocation3 + $0x1d8] sm:$0xff] %vm924, %v3845
    %3910 = vst.msk [vmem:[#allocation3 + $0x1e0] sm:$0xff] %vm924, %v3846
    %3911 = vst.msk [vmem:[#allocation3 + $0x1e8] sm:$0xff] %vm924, %v3847
    %3912 = vst.msk [vmem:[#allocation3 + $0x1f0] sm:$0xff] %vm924, %v3848
    %3913 = vst.msk [vmem:[#allocation3 + $0x1f8] sm:$0xff] %vm924, %v3849
  $region41: #{median_gcn_forward.1} parent=0 // loop_footer
    %s3137 = sadd.s32 %s3135, 1
  $region42: #{median_gcn_forward.1} parent=0 // loop_footer_branch
    %3134 = sbr.rel target = $region38
  $region43: #{median_gcn_forward.1} parent=0 // loop_exit
    _
  %v3914 = vld [vmem:[#allocation7] sm:$0xff]
  %v3915 = vld [vmem:[%s7] sm:$0xff]
  %3917 = vset.pattern.permute.xlu0 0
  %3918 = vperm.xlu0 %3917, %v3915
  %v3919 = vpop.permute.xlu0 %3918
  %v3921 = vadd.f32 %v3914, %v3919
  %3922 = vxpose.xlu0.b32.start [1/16] %v3921, 128
  %3923 = vxpose.xlu0.b32.cont [2/16] 0.0, 128
  %3924 = vxpose.xlu0.b32.cont [3/16] 0.0, 128
  %3925 = vxpose.xlu0.b32.cont [4/16] 0.0, 128
  %3926 = vxpose.xlu0.b32.cont [5/16] 0.0, 128
  %3927 = vxpose.xlu0.b32.cont [6/16] 0.0, 128
  %3928 = vxpose.xlu0.b32.cont [7/16] 0.0, 128
  %3929 = vxpose.xlu0.b32.cont [8/16] 0.0, 128
  %3930 = vxpose.xlu0.b32.cont [9/16] 0.0, 128
  %3931 = vxpose.xlu0.b32.cont [10/16] 0.0, 128
  %3932 = vxpose.xlu0.b32.cont [11/16] 0.0, 128
  %3933 = vxpose.xlu0.b32.cont [12/16] 0.0, 128
  %3934 = vxpose.xlu0.b32.cont [13/16] 0.0, 128
  %3935 = vxpose.xlu0.b32.cont [14/16] 0.0, 128
  %3936 = vxpose.xlu0.b32.cont [15/16] 0.0, 128
  %3937 = vxpose.xlu0.b32.end [16/16] 0.0, 128
  %v3938 = vpop.trf.xlu0
  %v3939 = vpop.trf.xlu0
  %v3940 = vpop.trf.xlu0
  %v3941 = vpop.trf.xlu0
  %v3942 = vpop.trf.xlu0
  %v3943 = vpop.trf.xlu0
  %v3944 = vpop.trf.xlu0
  %v3945 = vpop.trf.xlu0
  %v3946 = vpop.trf.xlu0
  %v3947 = vpop.trf.xlu0
  %v3948 = vpop.trf.xlu0
  %v3949 = vpop.trf.xlu0
  %v3950 = vpop.trf.xlu0
  %v3951 = vpop.trf.xlu0
  %v3952 = vpop.trf.xlu0
  %v3953 = vpop.trf.xlu0
  %vm3954 = vcmask 64512
  %3955 = vst.msk [vmem:[%s8] sm:$0xff] %vm3954, %v3938
  %3956 = vst.msk [vmem:[%s8 + $0x8] sm:$0xff] %vm3954, %v3939
  %3957 = vst.msk [vmem:[%s8 + $0x10] sm:$0xff] %vm3954, %v3940
  %3958 = vst.msk [vmem:[%s8 + $0x18] sm:$0xff] %vm3954, %v3941
  %3959 = vst.msk [vmem:[%s8 + $0x20] sm:$0xff] %vm3954, %v3942
  %3960 = vst.msk [vmem:[%s8 + $0x28] sm:$0xff] %vm3954, %v3943
  %3961 = vst.msk [vmem:[%s8 + $0x30] sm:$0xff] %vm3954, %v3944
  %3962 = vst.msk [vmem:[%s8 + $0x38] sm:$0xff] %vm3954, %v3945
  // Predicated region
  $region44: #{median_gcn_forward.1} parent=0 // pred_check
    _
  $region45: #{median_gcn_forward.1} parent=0 // pred_check_branch
    %3964 = sbr.rel (0) target = $region47
  $region46: #{median_gcn_forward.1} parent=0 // pred_region
    _
  $region47: #{median_gcn_forward.1} parent=0 // pred_fallthru
    _
  // Predicated region
  $region48: #{median_gcn_forward.1} parent=0 // pred_check
    _
  $region49: #{median_gcn_forward.1} parent=0 // pred_check_branch
    %3966 = sbr.rel (0) target = $region51
  $region50: #{median_gcn_forward.1} parent=0 // pred_region
    _
  $region51: #{median_gcn_forward.1} parent=0 // pred_fallthru
    _

</llo_original>
